<compile_context>
chip_gen: v5e
topology: v5e:2x2
jax: 0.10.0
libtpu: 0.0.40
codegen_flags: <defaults>
</compile_context>

<pallas_src>
import math
from functools import partial

import jax
import jax.numpy as jnp
from jax.experimental import pallas as pl
from jax.experimental.pallas import tpu as pltpu


def _vmem_limit_bytes():
    """Generation-aware scoped-VMEM limit (v7x has 64 MiB physical VMEM)."""
    try:
        cap = pltpu.get_tpu_info().vmem_capacity_bytes
        return int(min(64 * 1024 * 1024, cap // 2))
    except Exception:
        return 32 * 1024 * 1024


_VMEM_LIMIT = _vmem_limit_bytes()
_VMEM = partial(pl.BlockSpec, memory_space=pltpu.MemorySpace.VMEM)


def _round16(k):
    return -(-k // 16) * 16


def _choose_tile(m):
    """Largest lane tile (multiple of 128, <=1024) dividing m; prefer >=2 grid
    steps when m >= 256 so the parallel axis feeds both v7x TensorCores."""
    if m % 128 != 0:
        return m
    cands = [t for t in (1024, 512, 256, 128) if m % t == 0]
    if not cands:
        return m
    if m >= 256:
        two = [t for t in cands if m // t >= 2]
        if two:
            return two[0]
    return cands[0]


# ---------------------------------------------------------------------------
# Conv kernel: matmul + BN shift (+ residual) (+ ReLU), optional fused 1x1
# downsample second output sharing the im2col centre tap.
# ---------------------------------------------------------------------------
def _make_conv_kernel(cm, relu, has_res, has_ds, cin):
    """cm=True: (Cout,K)@(K,tm) layout;  cm=False: (M,K)@(K,Cout) (NHWC) layout."""

    def kernel(*refs):
        it = iter(refs)
        a_ref = next(it)
        w_ref = next(it)
        t_ref = next(it)
        wd_ref = td_ref = r_ref = d_ref = None
        if has_ds:
            wd_ref = next(it)
            td_ref = next(it)
        if has_res:
            r_ref = next(it)
        o_ref = next(it)
        if has_ds:
            d_ref = next(it)

        if cm:
            acc = jnp.dot(w_ref[...], a_ref[...],
                          preferred_element_type=jnp.float32)
        else:
            acc = jnp.dot(a_ref[...], w_ref[...],
                          preferred_element_type=jnp.float32)
        y = acc + t_ref[...]
        if has_res:
            y = y + r_ref[...].astype(jnp.float32)
        if relu:
            y = jnp.maximum(y, 0.0)
        o_ref[...] = y.astype(o_ref.dtype)

        if has_ds:
            # 1x1 / stride-s downsample input == centre tap of the padded 3x3
            # window (pad=1), i.e. the K-rows/cols [4*Cin, 5*Cin) of the slab.
            c0 = 4 * cin
            if cm:
                ctr = a_ref[c0:c0 + cin, :]
                accd = jnp.dot(wd_ref[...], ctr,
                               preferred_element_type=jnp.float32)
            else:
                ctr = a_ref[:, c0:c0 + cin]
                accd = jnp.dot(ctr, wd_ref[...],
                               preferred_element_type=jnp.float32)
            d_ref[...] = (accd + td_ref[...]).astype(d_ref.dtype)

    return kernel


# ---------------------------------------------------------------------------
# Plain-JAX im2col glue (K ordering = tap-major, then Cin; K padded to mult of 16)
# TODO(synk): replace with in-kernel tap accumulation for large batches.
# ---------------------------------------------------------------------------
def _im2col_cm(x_flat, spatial, cin, kh, kw, stride, pad):
    n, h, w = spatial
    x = x_flat.reshape(cin, n, h, w)
    oh = (h + 2 * pad - kh) // stride + 1
    ow = (w + 2 * pad - kw) // stride + 1
    xp = jnp.pad(x, ((0, 0), (0, 0), (pad, pad), (pad, pad)))
    taps = [xp[:, :, dy:dy + stride * (oh - 1) + 1:stride,
                     dx:dx + stride * (ow - 1) + 1:stride]
            for dy in range(kh) for dx in range(kw)]
    a = jnp.stack(taps, axis=0).reshape(kh * kw * cin, n * oh * ow)
    k = kh * kw * cin
    kp = _round16(k)
    if kp != k:
        a = jnp.pad(a, ((0, kp - k), (0, 0)))
    return a, (n, oh, ow)


def _im2col_mc(x_flat, spatial, cin, kh, kw, stride, pad):
    n, h, w = spatial
    x = x_flat.reshape(n, h, w, cin)
    oh = (h + 2 * pad - kh) // stride + 1
    ow = (w + 2 * pad - kw) // stride + 1
    xp = jnp.pad(x, ((0, 0), (pad, pad), (pad, pad), (0, 0)))
    taps = [xp[:, dy:dy + stride * (oh - 1) + 1:stride,
                   dx:dx + stride * (ow - 1) + 1:stride, :]
            for dy in range(kh) for dx in range(kw)]
    a = jnp.stack(taps, axis=3).reshape(n * oh * ow, kh * kw * cin)
    k = kh * kw * cin
    kp = _round16(k)
    if kp != k:
        a = jnp.pad(a, ((0, 0), (0, kp - k)))
    return a, (n, oh, ow)


# ---------------------------------------------------------------------------
# Conv wrappers
# ---------------------------------------------------------------------------
def conv_cm(x_flat, spatial, w, bn, *, stride, pad, relu, residual=None, ds=None):
    """(C, M)-layout conv+BN(+res)(+ReLU), optional fused 1x1 downsample output.
    x_flat: (Cin, N*H*W) bf16;  w: PyTorch (Cout, Cin, KH, KW) f32."""
    cout, cin, kh, kw = w.shape
    a, sp_out = _im2col_cm(x_flat, spatial, cin, kh, kw, stride, pad)
    kdim, m = a.shape
    scale, shift = bn
    wf = w.transpose(0, 2, 3, 1).reshape(cout, kh * kw * cin) * scale[:, None]
    if kdim != kh * kw * cin:
        wf = jnp.pad(wf, ((0, 0), (0, kdim - kh * kw * cin)))
    wf = wf.astype(jnp.bfloat16)
    t = shift.reshape(cout, 1).astype(jnp.float32)

    tm = _choose_tile(m)
    grid = (m // tm,)
    in_specs = [pl.BlockSpec((kdim, tm), lambda i: (0, i)),
                pl.BlockSpec((cout, kdim), lambda i: (0, 0)),
                pl.BlockSpec((cout, 1), lambda i: (0, 0))]
    args = [a, wf, t]
    flops = 2 * m * kdim * cout

    if ds is not None:
        ds_w, (ds_scale, ds_shift) = ds
        wdf = (ds_w.reshape(cout, cin) * ds_scale[:, None]).astype(jnp.bfloat16)
        td = ds_shift.reshape(cout, 1).astype(jnp.float32)
        in_specs += [pl.BlockSpec((cout, cin), lambda i: (0, 0)),
                     pl.BlockSpec((cout, 1), lambda i: (0, 0))]
        args += [wdf, td]
        flops += 2 * m * cin * cout
    if residual is not None:
        in_specs.append(pl.BlockSpec((cout, tm), lambda i: (0, i)))
        args.append(residual)

    n_out = 2 if ds is not None else 1
    out_spec = pl.BlockSpec((cout, tm), lambda i: (0, i))
    out_shape = jax.ShapeDtypeStruct((cout, m), jnp.bfloat16)
    bytes_accessed = int(sum(x.size * x.dtype.itemsize for x in args)
                         + n_out * m * cout * 2)

    outs = pl.pallas_call(
        _make_conv_kernel(cm=True, relu=relu, has_res=residual is not None,
                          has_ds=ds is not None, cin=cin),
        grid=grid,
        in_specs=in_specs,
        out_specs=(out_spec,) * n_out if n_out > 1 else out_spec,
        out_shape=(out_shape,) * n_out if n_out > 1 else out_shape,
        compiler_params=pltpu.CompilerParams(
            dimension_semantics=("parallel",),
            vmem_limit_bytes=_VMEM_LIMIT),
        cost_estimate=pl.CostEstimate(flops=flops, transcendentals=0,
                                      bytes_accessed=bytes_accessed),
    )(*args)
    if ds is not None:
        return outs[0], outs[1], sp_out
    return outs, sp_out


def conv_mc(x_flat, spatial, w, bn, *, stride, pad, relu, residual=None, ds=None):
    """NHWC (M, C)-layout conv (lane axis = Cout) for the deep layers.
    x_flat: (N*H*W, Cin) bf16.  Whole-array VMEM blocks (tiny M)."""
    cout, cin, kh, kw = w.shape
    a, sp_out = _im2col_mc(x_flat, spatial, cin, kh, kw, stride, pad)
    m, kdim = a.shape
    scale, shift = bn
    wf = w.transpose(2, 3, 1, 0).reshape(kh * kw * cin, cout) * scale[None, :]
    if kdim != kh * kw * cin:
        wf = jnp.pad(wf, ((0, kdim - kh * kw * cin), (0, 0)))
    wf = wf.astype(jnp.bfloat16)
    t = shift.reshape(1, cout).astype(jnp.float32)

    in_specs = [_VMEM(), _VMEM(), _VMEM()]
    args = [a, wf, t]
    flops = 2 * m * kdim * cout

    if ds is not None:
        ds_w, (ds_scale, ds_shift) = ds
        wdf = (ds_w.reshape(cout, cin).T * ds_scale[None, :]).astype(jnp.bfloat16)
        td = ds_shift.reshape(1, cout).astype(jnp.float32)
        in_specs += [_VMEM(), _VMEM()]
        args += [wdf, td]
        flops += 2 * m * cin * cout
    if residual is not None:
        in_specs.append(_VMEM())
        args.append(residual)

    n_out = 2 if ds is not None else 1
    out_shape = jax.ShapeDtypeStruct((m, cout), jnp.bfloat16)
    bytes_accessed = int(sum(x.size * x.dtype.itemsize for x in args)
                         + n_out * m * cout * 2)

    outs = pl.pallas_call(
        _make_conv_kernel(cm=False, relu=relu, has_res=residual is not None,
                          has_ds=ds is not None, cin=cin),
        in_specs=in_specs,
        out_specs=(_VMEM(),) * n_out if n_out > 1 else _VMEM(),
        out_shape=(out_shape,) * n_out if n_out > 1 else out_shape,
        compiler_params=pltpu.CompilerParams(vmem_limit_bytes=_VMEM_LIMIT),
        cost_estimate=pl.CostEstimate(flops=flops, transcendentals=0,
                                      bytes_accessed=bytes_accessed),
    )(*args)
    if ds is not None:
        return outs[0], outs[1], sp_out
    return outs, sp_out


# ---------------------------------------------------------------------------
# MaxPool 3x3 / stride 2 / pad 1 -- plain-JAX tap max-tree (single XLA fusion,
# no 9x slab).  TODO(synk): could be folded into the next conv's glue entirely.
# ---------------------------------------------------------------------------
def maxpool_3x3_s2_p1(x_flat, spatial):
    n, h, w = spatial
    c = x_flat.shape[0]
    x = x_flat.reshape(c, n, h, w)
    oh = (h + 2 - 3) // 2 + 1
    ow = (w + 2 - 3) // 2 + 1
    xp = jnp.pad(x, ((0, 0), (0, 0), (1, 1), (1, 1)),
                 constant_values=-jnp.inf)
    out = None
    for dy in range(3):
        for dx in range(3):
            tap = xp[:, :, dy:dy + 2 * (oh - 1) + 1:2,
                           dx:dx + 2 * (ow - 1) + 1:2]
            out = tap if out is None else jnp.maximum(out, tap)
    return out.reshape(c, n * oh * ow), (n, oh, ow)


# ---------------------------------------------------------------------------
# Head: adaptive avg pool + Linear + optional log_softmax
# ---------------------------------------------------------------------------
def _head_kernel(x_ref, w_ref, b_ref, o_ref, *, log_softmax):
    xf = x_ref[...].astype(jnp.float32)          # (N, H*W, C)
    pooled = jnp.mean(xf, axis=1)                # (N, C)
    logits = jnp.dot(pooled.astype(jnp.bfloat16), w_ref[...],
                     preferred_element_type=jnp.float32) + b_ref[...]
    if log_softmax:
        mx = jnp.max(logits, axis=-1, keepdims=True)
        z = logits - mx
        logits = z - jnp.log(jnp.sum(jnp.exp(z), axis=-1, keepdims=True))
    o_ref[...] = logits


def head(x_nmc, fc_w, fc_b, *, log_softmax):
    n = x_nmc.shape[0]
    ncls = fc_w.shape[1]
    return pl.pallas_call(
        partial(_head_kernel, log_softmax=log_softmax),
        out_shape=jax.ShapeDtypeStruct((n, ncls), jnp.float32),
        in_specs=[_VMEM(), _VMEM(), _VMEM()],
        out_specs=_VMEM(),
        compiler_params=pltpu.CompilerParams(vmem_limit_bytes=_VMEM_LIMIT),
    )(x_nmc, fc_w.astype(jnp.bfloat16), fc_b)


# ---------------------------------------------------------------------------
# Model definition (BasicBlock ResNet, expansion=1)
# ---------------------------------------------------------------------------
def _make_bn(c, eps=1e-5):
    gamma = jnp.ones((c,), jnp.float32)
    beta = jnp.zeros((c,), jnp.float32)
    mean = jnp.zeros((c,), jnp.float32)
    var = jnp.ones((c,), jnp.float32)
    scale = gamma / jnp.sqrt(var + eps)
    shift = beta - mean * scale
    return scale, shift


def init_params(key, layers=(1, 1, 1, 1), num_classes=10):
    keys = iter(jax.random.split(key, 64))

    def conv_w(cout, cin, k):
        # kaiming_normal_(mode='fan_out', nonlinearity='relu')
        std = math.sqrt(2.0 / (cout * k * k))
        return std * jax.random.normal(next(keys), (cout, cin, k, k), jnp.float32)

    params = {"conv1_w": conv_w(16, 1, 7), "bn1": _make_bn(16)}
    inplanes = 16
    for li, (planes, nblocks, stride) in enumerate(
            zip((16, 32, 64, 128), layers, (1, 2, 2, 2)), start=1):
        blocks = []
        for bi in range(nblocks):
            s = stride if bi == 0 else 1
            bp = {"conv1_w": conv_w(planes, inplanes, 3), "bn1": _make_bn(planes),
                  "conv2_w": conv_w(planes, planes, 3), "bn2": _make_bn(planes)}
            if s != 1 or inplanes != planes:
                bp["ds_w"] = conv_w(planes, inplanes, 1)
                bp["ds_bn"] = _make_bn(planes)
            inplanes = planes
            blocks.append(bp)
        params[f"layer{li}"] = blocks
    bound = 1.0 / math.sqrt(128)
    params["fc_w"] = jax.random.uniform(next(keys), (128, num_classes),
                                        jnp.float32, -bound, bound)
    params["fc_b"] = jax.random.uniform(next(keys), (1, num_classes),
                                        jnp.float32, -bound, bound)
    return params


def basic_block(x_flat, spatial, p, stride, conv_fn):
    """One BasicBlock in the layout handled by conv_fn (conv_cm or conv_mc)."""
    if "ds_w" in p:
        out, identity, sp = conv_fn(x_flat, spatial, p["conv1_w"], p["bn1"],
                                    stride=stride, pad=1, relu=True,
                                    ds=(p["ds_w"], p["ds_bn"]))
    else:
        out, sp = conv_fn(x_flat, spatial, p["conv1_w"], p["bn1"],
                          stride=stride, pad=1, relu=True)
        identity = x_flat
    out, sp = conv_fn(out, sp, p["conv2_w"], p["bn2"],
                      stride=1, pad=1, relu=True, residual=identity)
    return out, sp


def resnet_forward(params, x_nchw, focal_loss=False):
    n, _, h, w = x_nchw.shape
    # (C, M) bf16 slabs for the wide/shallow layers (lane axis = N*H*W)
    x = jnp.transpose(x_nchw, (1, 0, 2, 3)).astype(jnp.bfloat16).reshape(1, n * h * w)
    x, sp = conv_cm(x, (n, h, w), params["conv1_w"], params["bn1"],
                    stride=2, pad=3, relu=True)
    x, sp = maxpool_3x3_s2_p1(x, sp)
    for bi, bp in enumerate(params["layer1"]):
        x, sp = basic_block(x, sp, bp, 1, conv_cm)
    for bi, bp in enumerate(params["layer2"]):
        x, sp = basic_block(x, sp, bp, 2 if bi == 0 else 1, conv_cm)
    # Orientation flip for the deep layers: lane axis becomes Cout (64 / 128)
    c = x.shape[0]
    n2, h2, w2 = sp
    x = x.reshape(c, n2, h2, w2).transpose(1, 2, 3, 0).reshape(n2 * h2 * w2, c)
    for bi, bp in enumerate(params["layer3"]):
        x, sp = basic_block(x, sp, bp, 2 if bi == 0 else 1, conv_mc)
    for bi, bp in enumerate(params["layer4"]):
        x, sp = basic_block(x, sp, bp, 2 if bi == 0 else 1, conv_mc)
    n2, h2, w2 = sp
    x_head = x.reshape(n2, h2 * w2, x.shape[1])
    return head(x_head, params["fc_w"], params["fc_b"],
                log_softmax=not focal_loss)


# ---------------------------------------------------------------------------
if __name__ == "__main__":
    key = jax.random.PRNGKey(0)
    pkey, xkey = jax.random.split(key)
    params = init_params(pkey, layers=(1, 1, 1, 1), num_classes=10)
    x = jax.random.normal(xkey, (2, 1, 64, 64), jnp.float32)  # NCHW, Cin=1 per module

    fwd = jax.jit(partial(resnet_forward, focal_loss=False))
    out = jax.block_until_ready(fwd(params, x))
    assert out.shape == (2, 10)
    assert bool(jnp.all(jnp.isfinite(out)))
    # log_softmax rows must (approximately) exp-sum to 1
    assert bool(jnp.allclose(jnp.sum(jnp.exp(out), axis=-1), 1.0, atol=1e-4))
    print("KERNEL_OK")
</pallas_src>

<mosaic_0001>
module attributes {stable_mosaic.version = 11 : i64} {
  func.func @kernel(%arg0: i32, %arg1: memref<64x1024xbf16, #tpu.memory_space<vmem>>, %arg2: memref<16x64xbf16, #tpu.memory_space<vmem>>, %arg3: memref<16x1xf32, #tpu.memory_space<vmem>>, %arg4: memref<16x1024xbf16, #tpu.memory_space<vmem>>) attributes {dimension_semantics = [#tpu.dimension_semantics<parallel>], iteration_bounds = array<i64: 2>, scalar_prefetch = 0 : i64, scratch_operands = 0 : i64, tpu.core_type = #tpu.core_type<tc>, window_params = [{transform_indices = @transform_0, window_bounds = array<i64: 64, 1024>}, {pipeline_mode = #tpu.pipeline_mode<synchronous>, transform_indices = @transform_1, window_bounds = array<i64: 16, 64>}, {pipeline_mode = #tpu.pipeline_mode<synchronous>, transform_indices = @transform_2, window_bounds = array<i64: 16, 1>}, {transform_indices = @transform_3, window_bounds = array<i64: 16, 1024>}]} {
    %c0 = arith.constant 0 : index
    %c0_0 = arith.constant 0 : index
    %0 = vector.load %arg2[%c0, %c0_0] : memref<16x64xbf16, #tpu.memory_space<vmem>>, vector<16x64xbf16>
    %c0_1 = arith.constant 0 : index
    %c0_2 = arith.constant 0 : index
    %1 = vector.load %arg1[%c0_1, %c0_2] : memref<64x1024xbf16, #tpu.memory_space<vmem>>, vector<64x1024xbf16>
    %cst = arith.constant dense<0.000000e+00> : vector<16x1024xf32>
    %2 = tpu.matmul %0, %1, %cst {dimension_numbers = #tpu.dot_dimension_numbers<[1], [0], [0], [1], [0, 0, 1, 1], [], []>} : vector<16x64xbf16>, vector<64x1024xbf16>, vector<16x1024xf32> -> vector<16x1024xf32>
    %c0_3 = arith.constant 0 : index
    %c0_4 = arith.constant 0 : index
    %3 = vector.load %arg3[%c0_3, %c0_4] : memref<16x1xf32, #tpu.memory_space<vmem>>, vector<16x1xf32>
    %4 = vector.broadcast %3 : vector<16x1xf32> to vector<16x1024xf32>
    %5 = arith.addf %2, %4 : vector<16x1024xf32>
    %cst_5 = arith.constant 0.000000e+00 : f32
    %6 = vector.broadcast %cst_5 : f32 to vector<16x1024xf32>
    %7 = arith.maximumf %5, %6 : vector<16x1024xf32>
    %8 = arith.truncf %7 : vector<16x1024xf32> to vector<16x1024xbf16>
    %c0_6 = arith.constant 0 : index
    %c0_7 = arith.constant 0 : index
    %9 = vector.load %arg4[%c0_6, %c0_7] : memref<16x1024xbf16, #tpu.memory_space<vmem>>, vector<16x1024xbf16>
    tpu.vector_store %arg4[%c0_6, %c0_7], %8 {strides = array<i32>} : memref<16x1024xbf16, #tpu.memory_space<vmem>>, vector<16x1024xbf16>,
    return
  }
  func.func @transform_0(%arg0: i32) -> (i32, i32) {
    %c0_i32 = arith.constant 0 : i32
    %c0_i32_0 = arith.constant 0 : i32
    return %c0_i32, %arg0 : i32, i32
  }
  func.func @transform_1(%arg0: i32) -> (i32, i32) {
    %c0_i32 = arith.constant 0 : i32
    %c0_i32_0 = arith.constant 0 : i32
    %c0_i32_1 = arith.constant 0 : i32
    return %c0_i32, %c0_i32_0 : i32, i32
  }
  func.func @transform_2(%arg0: i32) -> (i32, i32) {
    %c0_i32 = arith.constant 0 : i32
    %c0_i32_0 = arith.constant 0 : i32
    %c0_i32_1 = arith.constant 0 : i32
    return %c0_i32, %c0_i32_0 : i32, i32
  }
  func.func @transform_3(%arg0: i32) -> (i32, i32) {
    %c0_i32 = arith.constant 0 : i32
    %c0_i32_0 = arith.constant 0 : i32
    return %c0_i32, %arg0 : i32, i32
  }
}

module attributes {stable_mosaic.version = 11 : i64} {
  func.func @kernel(%arg0: i32, %arg1: memref<144x256xbf16, #tpu.memory_space<vmem>>, %arg2: memref<16x144xbf16, #tpu.memory_space<vmem>>, %arg3: memref<16x1xf32, #tpu.memory_space<vmem>>, %arg4: memref<16x256xbf16, #tpu.memory_space<vmem>>) attributes {dimension_semantics = [#tpu.dimension_semantics<parallel>], iteration_bounds = array<i64: 2>, scalar_prefetch = 0 : i64, scratch_operands = 0 : i64, tpu.core_type = #tpu.core_type<tc>, window_params = [{transform_indices = @transform_0, window_bounds = array<i64: 144, 256>}, {pipeline_mode = #tpu.pipeline_mode<synchronous>, transform_indices = @transform_1, window_bounds = array<i64: 16, 144>}, {pipeline_mode = #tpu.pipeline_mode<synchronous>, transform_indices = @transform_2, window_bounds = array<i64: 16, 1>}, {transform_indices = @transform_3, window_bounds = array<i64: 16, 256>}]} {
    %c0 = arith.constant 0 : index
    %c0_0 = arith.constant 0 : index
    %0 = vector.load %arg2[%c0, %c0_0] : memref<16x144xbf16, #tpu.memory_space<vmem>>, vector<16x144xbf16>
    %c0_1 = arith.constant 0 : index
    %c0_2 = arith.constant 0 : index
    %1 = vector.load %arg1[%c0_1, %c0_2] : memref<144x256xbf16, #tpu.memory_space<vmem>>, vector<144x256xbf16>
    %cst = arith.constant dense<0.000000e+00> : vector<16x256xf32>
    %2 = tpu.matmul %0, %1, %cst {dimension_numbers = #tpu.dot_dimension_numbers<[1], [0], [0], [1], [0, 0, 1, 1], [], []>} : vector<16x144xbf16>, vector<144x256xbf16>, vector<16x256xf32> -> vector<16x256xf32>
    %c0_3 = arith.constant 0 : index
    %c0_4 = arith.constant 0 : index
    %3 = vector.load %arg3[%c0_3, %c0_4] : memref<16x1xf32, #tpu.memory_space<vmem>>, vector<16x1xf32>
    %4 = vector.broadcast %3 : vector<16x1xf32> to vector<16x256xf32>
    %5 = arith.addf %2, %4 : vector<16x256xf32>
    %cst_5 = arith.constant 0.000000e+00 : f32
    %6 = vector.broadcast %cst_5 : f32 to vector<16x256xf32>
    %7 = arith.maximumf %5, %6 : vector<16x256xf32>
    %8 = arith.truncf %7 : vector<16x256xf32> to vector<16x256xbf16>
    %c0_6 = arith.constant 0 : index
    %c0_7 = arith.constant 0 : index
    %9 = vector.load %arg4[%c0_6, %c0_7] : memref<16x256xbf16, #tpu.memory_space<vmem>>, vector<16x256xbf16>
    tpu.vector_store %arg4[%c0_6, %c0_7], %8 {strides = array<i32>} : memref<16x256xbf16, #tpu.memory_space<vmem>>, vector<16x256xbf16>,
    return
  }
  func.func @transform_0(%arg0: i32) -> (i32, i32) {
    %c0_i32 = arith.constant 0 : i32
    %c0_i32_0 = arith.constant 0 : i32
    return %c0_i32, %arg0 : i32, i32
  }
  func.func @transform_1(%arg0: i32) -> (i32, i32) {
    %c0_i32 = arith.constant 0 : i32
    %c0_i32_0 = arith.constant 0 : i32
    %c0_i32_1 = arith.constant 0 : i32
    return %c0_i32, %c0_i32_0 : i32, i32
  }
  func.func @transform_2(%arg0: i32) -> (i32, i32) {
    %c0_i32 = arith.constant 0 : i32
    %c0_i32_0 = arith.constant 0 : i32
    %c0_i32_1 = arith.constant 0 : i32
    return %c0_i32, %c0_i32_0 : i32, i32
  }
  func.func @transform_3(%arg0: i32) -> (i32, i32) {
    %c0_i32 = arith.constant 0 : i32
    %c0_i32_0 = arith.constant 0 : i32
    return %c0_i32, %arg0 : i32, i32
  }
}

module attributes {stable_mosaic.version = 11 : i64} {
  func.func @kernel(%arg0: i32, %arg1: memref<144x256xbf16, #tpu.memory_space<vmem>>, %arg2: memref<16x144xbf16, #tpu.memory_space<vmem>>, %arg3: memref<16x1xf32, #tpu.memory_space<vmem>>, %arg4: memref<16x256xbf16, #tpu.memory_space<vmem>>, %arg5: memref<16x256xbf16, #tpu.memory_space<vmem>>) attributes {dimension_semantics = [#tpu.dimension_semantics<parallel>], iteration_bounds = array<i64: 2>, scalar_prefetch = 0 : i64, scratch_operands = 0 : i64, tpu.core_type = #tpu.core_type<tc>, window_params = [{transform_indices = @transform_0, window_bounds = array<i64: 144, 256>}, {pipeline_mode = #tpu.pipeline_mode<synchronous>, transform_indices = @transform_1, window_bounds = array<i64: 16, 144>}, {pipeline_mode = #tpu.pipeline_mode<synchronous>, transform_indices = @transform_2, window_bounds = array<i64: 16, 1>}, {transform_indices = @transform_3, window_bounds = array<i64: 16, 256>}, {transform_indices = @transform_4, window_bounds = array<i64: 16, 256>}]} {
    %c0 = arith.constant 0 : index
    %c0_0 = arith.constant 0 : index
    %0 = vector.load %arg2[%c0, %c0_0] : memref<16x144xbf16, #tpu.memory_space<vmem>>, vector<16x144xbf16>
    %c0_1 = arith.constant 0 : index
    %c0_2 = arith.constant 0 : index
    %1 = vector.load %arg1[%c0_1, %c0_2] : memref<144x256xbf16, #tpu.memory_space<vmem>>, vector<144x256xbf16>
    %cst = arith.constant dense<0.000000e+00> : vector<16x256xf32>
    %2 = tpu.matmul %0, %1, %cst {dimension_numbers = #tpu.dot_dimension_numbers<[1], [0], [0], [1], [0, 0, 1, 1], [], []>} : vector<16x144xbf16>, vector<144x256xbf16>, vector<16x256xf32> -> vector<16x256xf32>
    %c0_3 = arith.constant 0 : index
    %c0_4 = arith.constant 0 : index
    %3 = vector.load %arg3[%c0_3, %c0_4] : memref<16x1xf32, #tpu.memory_space<vmem>>, vector<16x1xf32>
    %4 = vector.broadcast %3 : vector<16x1xf32> to vector<16x256xf32>
    %5 = arith.addf %2, %4 : vector<16x256xf32>
    %c0_5 = arith.constant 0 : index
    %c0_6 = arith.constant 0 : index
    %6 = vector.load %arg4[%c0_5, %c0_6] : memref<16x256xbf16, #tpu.memory_space<vmem>>, vector<16x256xbf16>
    %7 = arith.extf %6 : vector<16x256xbf16> to vector<16x256xf32>
    %8 = arith.addf %5, %7 : vector<16x256xf32>
    %cst_7 = arith.constant 0.000000e+00 : f32
    %9 = vector.broadcast %cst_7 : f32 to vector<16x256xf32>
    %10 = arith.maximumf %8, %9 : vector<16x256xf32>
    %11 = arith.truncf %10 : vector<16x256xf32> to vector<16x256xbf16>
    %c0_8 = arith.constant 0 : index
    %c0_9 = arith.constant 0 : index
    %12 = vector.load %arg5[%c0_8, %c0_9] : memref<16x256xbf16, #tpu.memory_space<vmem>>, vector<16x256xbf16>
    tpu.vector_store %arg5[%c0_8, %c0_9], %11 {strides = array<i32>} : memref<16x256xbf16, #tpu.memory_space<vmem>>, vector<16x256xbf16>,
    return
  }
  func.func @transform_0(%arg0: i32) -> (i32, i32) {
    %c0_i32 = arith.constant 0 : i32
    %c0_i32_0 = arith.constant 0 : i32
    return %c0_i32, %arg0 : i32, i32
  }
  func.func @transform_1(%arg0: i32) -> (i32, i32) {
    %c0_i32 = arith.constant 0 : i32
    %c0_i32_0 = arith.constant 0 : i32
    %c0_i32_1 = arith.constant 0 : i32
    return %c0_i32, %c0_i32_0 : i32, i32
  }
  func.func @transform_2(%arg0: i32) -> (i32, i32) {
    %c0_i32 = arith.constant 0 : i32
    %c0_i32_0 = arith.constant 0 : i32
    %c0_i32_1 = arith.constant 0 : i32
    return %c0_i32, %c0_i32_0 : i32, i32
  }
  func.func @transform_3(%arg0: i32) -> (i32, i32) {
    %c0_i32 = arith.constant 0 : i32
    %c0_i32_0 = arith.constant 0 : i32
    return %c0_i32, %arg0 : i32, i32
  }
  func.func @transform_4(%arg0: i32) -> (i32, i32) {
    %c0_i32 = arith.constant 0 : i32
    %c0_i32_0 = arith.constant 0 : i32
    return %c0_i32, %arg0 : i32, i32
  }
}

module attributes {stable_mosaic.version = 11 : i64} {
  func.func @kernel(%arg0: i32, %arg1: memref<144x128xbf16, #tpu.memory_space<vmem>>, %arg2: memref<32x144xbf16, #tpu.memory_space<vmem>>, %arg3: memref<32x1xf32, #tpu.memory_space<vmem>>, %arg4: memref<32x16xbf16, #tpu.memory_space<vmem>>, %arg5: memref<32x1xf32, #tpu.memory_space<vmem>>, %arg6: memref<32x128xbf16, #tpu.memory_space<vmem>>, %arg7: memref<32x128xbf16, #tpu.memory_space<vmem>>) attributes {dimension_semantics = [#tpu.dimension_semantics<parallel>], iteration_bounds = array<i64: 1>, scalar_prefetch = 0 : i64, scratch_operands = 0 : i64, tpu.core_type = #tpu.core_type<tc>, window_params = [{transform_indices = @transform_0, window_bounds = array<i64: 144, 128>}, {pipeline_mode = #tpu.pipeline_mode<synchronous>, transform_indices = @transform_1, window_bounds = array<i64: 32, 144>}, {pipeline_mode = #tpu.pipeline_mode<synchronous>, transform_indices = @transform_2, window_bounds = array<i64: 32, 1>}, {pipeline_mode = #tpu.pipeline_mode<synchronous>, transform_indices = @transform_3, window_bounds = array<i64: 32, 16>}, {pipeline_mode = #tpu.pipeline_mode<synchronous>, transform_indices = @transform_4, window_bounds = array<i64: 32, 1>}, {transform_indices = @transform_5, window_bounds = array<i64: 32, 128>}, {transform_indices = @transform_6, window_bounds = array<i64: 32, 128>}]} {
    %c0 = arith.constant 0 : index
    %c0_0 = arith.constant 0 : index
    %0 = vector.load %arg2[%c0, %c0_0] : memref<32x144xbf16, #tpu.memory_space<vmem>>, vector<32x144xbf16>
    %c0_1 = arith.constant 0 : index
    %c0_2 = arith.constant 0 : index
    %1 = vector.load %arg1[%c0_1, %c0_2] : memref<144x128xbf16, #tpu.memory_space<vmem>>, vector<144x128xbf16>
    %cst = arith.constant dense<0.000000e+00> : vector<32x128xf32>
    %2 = tpu.matmul %0, %1, %cst {dimension_numbers = #tpu.dot_dimension_numbers<[1], [0], [0], [1], [0, 0, 1, 1], [], []>} : vector<32x144xbf16>, vector<144x128xbf16>, vector<32x128xf32> -> vector<32x128xf32>
    %c0_3 = arith.constant 0 : index
    %c0_4 = arith.constant 0 : index
    %3 = vector.load %arg3[%c0_3, %c0_4] : memref<32x1xf32, #tpu.memory_space<vmem>>, vector<32x1xf32>
    %4 = vector.broadcast %3 : vector<32x1xf32> to vector<32x128xf32>
    %5 = arith.addf %2, %4 : vector<32x128xf32>
    %cst_5 = arith.constant 0.000000e+00 : f32
    %6 = vector.broadcast %cst_5 : f32 to vector<32x128xf32>
    %7 = arith.maximumf %5, %6 : vector<32x128xf32>
    %8 = arith.truncf %7 : vector<32x128xf32> to vector<32x128xbf16>
    %c0_6 = arith.constant 0 : index
    %c0_7 = arith.constant 0 : index
    %9 = vector.load %arg6[%c0_6, %c0_7] : memref<32x128xbf16, #tpu.memory_space<vmem>>, vector<32x128xbf16>
    tpu.vector_store %arg6[%c0_6, %c0_7], %8 {strides = array<i32>} : memref<32x128xbf16, #tpu.memory_space<vmem>>, vector<32x128xbf16>,
    %c64 = arith.constant 64 : index
    %c0_8 = arith.constant 0 : index
    %10 = vector.load %arg1[%c64, %c0_8] : memref<144x128xbf16, #tpu.memory_space<vmem>>, vector<16x128xbf16>
    %c0_9 = arith.constant 0 : index
    %c0_10 = arith.constant 0 : index
    %11 = vector.load %arg4[%c0_9, %c0_10] : memref<32x16xbf16, #tpu.memory_space<vmem>>, vector<32x16xbf16>
    %cst_11 = arith.constant dense<0.000000e+00> : vector<32x128xf32>
    %12 = tpu.matmul %11, %10, %cst_11 {dimension_numbers = #tpu.dot_dimension_numbers<[1], [0], [0], [1], [0, 0, 1, 1], [], []>} : vector<32x16xbf16>, vector<16x128xbf16>, vector<32x128xf32> -> vector<32x128xf32>
    %c0_12 = arith.constant 0 : index
    %c0_13 = arith.constant 0 : index
    %13 = vector.load %arg5[%c0_12, %c0_13] : memref<32x1xf32, #tpu.memory_space<vmem>>, vector<32x1xf32>
    %14 = vector.broadcast %13 : vector<32x1xf32> to vector<32x128xf32>
    %15 = arith.addf %12, %14 : vector<32x128xf32>
    %16 = arith.truncf %15 : vector<32x128xf32> to vector<32x128xbf16>
    %c0_14 = arith.constant 0 : index
    %c0_15 = arith.constant 0 : index
    %17 = vector.load %arg7[%c0_14, %c0_15] : memref<32x128xbf16, #tpu.memory_space<vmem>>, vector<32x128xbf16>
    tpu.vector_store %arg7[%c0_14, %c0_15], %16 {strides = array<i32>} : memref<32x128xbf16, #tpu.memory_space<vmem>>, vector<32x128xbf16>,
    return
  }
  func.func @transform_0(%arg0: i32) -> (i32, i32) {
    %c0_i32 = arith.constant 0 : i32
    %c0_i32_0 = arith.constant 0 : i32
    return %c0_i32, %arg0 : i32, i32
  }
  func.func @transform_1(%arg0: i32) -> (i32, i32) {
    %c0_i32 = arith.constant 0 : i32
    %c0_i32_0 = arith.constant 0 : i32
    %c0_i32_1 = arith.constant 0 : i32
    return %c0_i32, %c0_i32_0 : i32, i32
  }
  func.func @transform_2(%arg0: i32) -> (i32, i32) {
    %c0_i32 = arith.constant 0 : i32
    %c0_i32_0 = arith.constant 0 : i32
    %c0_i32_1 = arith.constant 0 : i32
    return %c0_i32, %c0_i32_0 : i32, i32
  }
  func.func @transform_3(%arg0: i32) -> (i32, i32) {
    %c0_i32 = arith.constant 0 : i32
    %c0_i32_0 = arith.constant 0 : i32
    %c0_i32_1 = arith.constant 0 : i32
    return %c0_i32, %c0_i32_0 : i32, i32
  }
  func.func @transform_4(%arg0: i32) -> (i32, i32) {
    %c0_i32 = arith.constant 0 : i32
    %c0_i32_0 = arith.constant 0 : i32
    %c0_i32_1 = arith.constant 0 : i32
    return %c0_i32, %c0_i32_0 : i32, i32
  }
  func.func @transform_5(%arg0: i32) -> (i32, i32) {
    %c0_i32 = arith.constant 0 : i32
    %c0_i32_0 = arith.constant 0 : i32
    return %c0_i32, %arg0 : i32, i32
  }
  func.func @transform_6(%arg0: i32) -> (i32, i32) {
    %c0_i32 = arith.constant 0 : i32
    %c0_i32_0 = arith.constant 0 : i32
    return %c0_i32, %arg0 : i32, i32
  }
}

module attributes {stable_mosaic.version = 11 : i64} {
  func.func @kernel(%arg0: i32, %arg1: memref<288x128xbf16, #tpu.memory_space<vmem>>, %arg2: memref<32x288xbf16, #tpu.memory_space<vmem>>, %arg3: memref<32x1xf32, #tpu.memory_space<vmem>>, %arg4: memref<32x128xbf16, #tpu.memory_space<vmem>>, %arg5: memref<32x128xbf16, #tpu.memory_space<vmem>>) attributes {dimension_semantics = [#tpu.dimension_semantics<parallel>], iteration_bounds = array<i64: 1>, scalar_prefetch = 0 : i64, scratch_operands = 0 : i64, tpu.core_type = #tpu.core_type<tc>, window_params = [{transform_indices = @transform_0, window_bounds = array<i64: 288, 128>}, {pipeline_mode = #tpu.pipeline_mode<synchronous>, transform_indices = @transform_1, window_bounds = array<i64: 32, 288>}, {pipeline_mode = #tpu.pipeline_mode<synchronous>, transform_indices = @transform_2, window_bounds = array<i64: 32, 1>}, {transform_indices = @transform_3, window_bounds = array<i64: 32, 128>}, {transform_indices = @transform_4, window_bounds = array<i64: 32, 128>}]} {
    %c0 = arith.constant 0 : index
    %c0_0 = arith.constant 0 : index
    %0 = vector.load %arg2[%c0, %c0_0] : memref<32x288xbf16, #tpu.memory_space<vmem>>, vector<32x288xbf16>
    %c0_1 = arith.constant 0 : index
    %c0_2 = arith.constant 0 : index
    %1 = vector.load %arg1[%c0_1, %c0_2] : memref<288x128xbf16, #tpu.memory_space<vmem>>, vector<288x128xbf16>
    %cst = arith.constant dense<0.000000e+00> : vector<32x128xf32>
    %2 = tpu.matmul %0, %1, %cst {dimension_numbers = #tpu.dot_dimension_numbers<[1], [0], [0], [1], [0, 0, 1, 1], [], []>} : vector<32x288xbf16>, vector<288x128xbf16>, vector<32x128xf32> -> vector<32x128xf32>
    %c0_3 = arith.constant 0 : index
    %c0_4 = arith.constant 0 : index
    %3 = vector.load %arg3[%c0_3, %c0_4] : memref<32x1xf32, #tpu.memory_space<vmem>>, vector<32x1xf32>
    %4 = vector.broadcast %3 : vector<32x1xf32> to vector<32x128xf32>
    %5 = arith.addf %2, %4 : vector<32x128xf32>
    %c0_5 = arith.constant 0 : index
    %c0_6 = arith.constant 0 : index
    %6 = vector.load %arg4[%c0_5, %c0_6] : memref<32x128xbf16, #tpu.memory_space<vmem>>, vector<32x128xbf16>
    %7 = arith.extf %6 : vector<32x128xbf16> to vector<32x128xf32>
    %8 = arith.addf %5, %7 : vector<32x128xf32>
    %cst_7 = arith.constant 0.000000e+00 : f32
    %9 = vector.broadcast %cst_7 : f32 to vector<32x128xf32>
    %10 = arith.maximumf %8, %9 : vector<32x128xf32>
    %11 = arith.truncf %10 : vector<32x128xf32> to vector<32x128xbf16>
    %c0_8 = arith.constant 0 : index
    %c0_9 = arith.constant 0 : index
    %12 = vector.load %arg5[%c0_8, %c0_9] : memref<32x128xbf16, #tpu.memory_space<vmem>>, vector<32x128xbf16>
    tpu.vector_store %arg5[%c0_8, %c0_9], %11 {strides = array<i32>} : memref<32x128xbf16, #tpu.memory_space<vmem>>, vector<32x128xbf16>,
    return
  }
  func.func @transform_0(%arg0: i32) -> (i32, i32) {
    %c0_i32 = arith.constant 0 : i32
    %c0_i32_0 = arith.constant 0 : i32
    return %c0_i32, %arg0 : i32, i32
  }
  func.func @transform_1(%arg0: i32) -> (i32, i32) {
    %c0_i32 = arith.constant 0 : i32
    %c0_i32_0 = arith.constant 0 : i32
    %c0_i32_1 = arith.constant 0 : i32
    return %c0_i32, %c0_i32_0 : i32, i32
  }
  func.func @transform_2(%arg0: i32) -> (i32, i32) {
    %c0_i32 = arith.constant 0 : i32
    %c0_i32_0 = arith.constant 0 : i32
    %c0_i32_1 = arith.constant 0 : i32
    return %c0_i32, %c0_i32_0 : i32, i32
  }
  func.func @transform_3(%arg0: i32) -> (i32, i32) {
    %c0_i32 = arith.constant 0 : i32
    %c0_i32_0 = arith.constant 0 : i32
    return %c0_i32, %arg0 : i32, i32
  }
  func.func @transform_4(%arg0: i32) -> (i32, i32) {
    %c0_i32 = arith.constant 0 : i32
    %c0_i32_0 = arith.constant 0 : i32
    return %c0_i32, %arg0 : i32, i32
  }
}

module attributes {stable_mosaic.version = 11 : i64} {
  func.func @kernel(%arg0: memref<32x288xbf16, #tpu.memory_space<vmem>>, %arg1: memref<288x64xbf16, #tpu.memory_space<vmem>>, %arg2: memref<1x64xf32, #tpu.memory_space<vmem>>, %arg3: memref<32x64xbf16, #tpu.memory_space<vmem>>, %arg4: memref<1x64xf32, #tpu.memory_space<vmem>>, %arg5: memref<32x64xbf16, #tpu.memory_space<vmem>>, %arg6: memref<32x64xbf16, #tpu.memory_space<vmem>>) attributes {dimension_semantics = [], scalar_prefetch = 0 : i64, scratch_operands = 0 : i64, tpu.core_type = #tpu.core_type<tc>} {
    %c0 = arith.constant 0 : index
    %c0_0 = arith.constant 0 : index
    %0 = vector.load %arg0[%c0, %c0_0] : memref<32x288xbf16, #tpu.memory_space<vmem>>, vector<32x288xbf16>
    %c0_1 = arith.constant 0 : index
    %c0_2 = arith.constant 0 : index
    %1 = vector.load %arg1[%c0_1, %c0_2] : memref<288x64xbf16, #tpu.memory_space<vmem>>, vector<288x64xbf16>
    %cst = arith.constant dense<0.000000e+00> : vector<32x64xf32>
    %2 = tpu.matmul %0, %1, %cst {dimension_numbers = #tpu.dot_dimension_numbers<[1], [0], [0], [1], [0, 0, 1, 1], [], []>} : vector<32x288xbf16>, vector<288x64xbf16>, vector<32x64xf32> -> vector<32x64xf32>
    %c0_3 = arith.constant 0 : index
    %c0_4 = arith.constant 0 : index
    %3 = vector.load %arg2[%c0_3, %c0_4] : memref<1x64xf32, #tpu.memory_space<vmem>>, vector<1x64xf32>
    %4 = vector.broadcast %3 : vector<1x64xf32> to vector<32x64xf32>
    %5 = arith.addf %2, %4 : vector<32x64xf32>
    %cst_5 = arith.constant 0.000000e+00 : f32
    %6 = vector.broadcast %cst_5 : f32 to vector<32x64xf32>
    %7 = arith.maximumf %5, %6 : vector<32x64xf32>
    %8 = arith.truncf %7 : vector<32x64xf32> to vector<32x64xbf16>
    %c0_6 = arith.constant 0 : index
    %c0_7 = arith.constant 0 : index
    %9 = vector.load %arg5[%c0_6, %c0_7] : memref<32x64xbf16, #tpu.memory_space<vmem>>, vector<32x64xbf16>
    tpu.vector_store %arg5[%c0_6, %c0_7], %8 {strides = array<i32>} : memref<32x64xbf16, #tpu.memory_space<vmem>>, vector<32x64xbf16>,
    %c0_8 = arith.constant 0 : index
    %c128 = arith.constant 128 : index
    %10 = vector.load %arg0[%c0_8, %c128] : memref<32x288xbf16, #tpu.memory_space<vmem>>, vector<32x32xbf16>
    %c0_9 = arith.constant 0 : index
    %c0_10 = arith.constant 0 : index
    %11 = vector.load %arg3[%c0_9, %c0_10] : memref<32x64xbf16, #tpu.memory_space<vmem>>, vector<32x64xbf16>
    %cst_11 = arith.constant dense<0.000000e+00> : vector<32x64xf32>
    %12 = tpu.matmul %10, %11, %cst_11 {dimension_numbers = #tpu.dot_dimension_numbers<[1], [0], [0], [1], [0, 0, 1, 1], [], []>} : vector<32x32xbf16>, vector<32x64xbf16>, vector<32x64xf32> -> vector<32x64xf32>
    %c0_12 = arith.constant 0 : index
    %c0_13 = arith.constant 0 : index
    %13 = vector.load %arg4[%c0_12, %c0_13] : memref<1x64xf32, #tpu.memory_space<vmem>>, vector<1x64xf32>
    %14 = vector.broadcast %13 : vector<1x64xf32> to vector<32x64xf32>
    %15 = arith.addf %12, %14 : vector<32x64xf32>
    %16 = arith.truncf %15 : vector<32x64xf32> to vector<32x64xbf16>
    %c0_14 = arith.constant 0 : index
    %c0_15 = arith.constant 0 : index
    %17 = vector.load %arg6[%c0_14, %c0_15] : memref<32x64xbf16, #tpu.memory_space<vmem>>, vector<32x64xbf16>
    tpu.vector_store %arg6[%c0_14, %c0_15], %16 {strides = array<i32>} : memref<32x64xbf16, #tpu.memory_space<vmem>>, vector<32x64xbf16>,
    return
  }
}

module attributes {stable_mosaic.version = 11 : i64} {
  func.func @kernel(%arg0: memref<32x576xbf16, #tpu.memory_space<vmem>>, %arg1: memref<576x64xbf16, #tpu.memory_space<vmem>>, %arg2: memref<1x64xf32, #tpu.memory_space<vmem>>, %arg3: memref<32x64xbf16, #tpu.memory_space<vmem>>, %arg4: memref<32x64xbf16, #tpu.memory_space<vmem>>) attributes {dimension_semantics = [], scalar_prefetch = 0 : i64, scratch_operands = 0 : i64, tpu.core_type = #tpu.core_type<tc>} {
    %c0 = arith.constant 0 : index
    %c0_0 = arith.constant 0 : index
    %0 = vector.load %arg0[%c0, %c0_0] : memref<32x576xbf16, #tpu.memory_space<vmem>>, vector<32x576xbf16>
    %c0_1 = arith.constant 0 : index
    %c0_2 = arith.constant 0 : index
    %1 = vector.load %arg1[%c0_1, %c0_2] : memref<576x64xbf16, #tpu.memory_space<vmem>>, vector<576x64xbf16>
    %cst = arith.constant dense<0.000000e+00> : vector<32x64xf32>
    %2 = tpu.matmul %0, %1, %cst {dimension_numbers = #tpu.dot_dimension_numbers<[1], [0], [0], [1], [0, 0, 1, 1], [], []>} : vector<32x576xbf16>, vector<576x64xbf16>, vector<32x64xf32> -> vector<32x64xf32>
    %c0_3 = arith.constant 0 : index
    %c0_4 = arith.constant 0 : index
    %3 = vector.load %arg2[%c0_3, %c0_4] : memref<1x64xf32, #tpu.memory_space<vmem>>, vector<1x64xf32>
    %4 = vector.broadcast %3 : vector<1x64xf32> to vector<32x64xf32>
    %5 = arith.addf %2, %4 : vector<32x64xf32>
    %c0_5 = arith.constant 0 : index
    %c0_6 = arith.constant 0 : index
    %6 = vector.load %arg3[%c0_5, %c0_6] : memref<32x64xbf16, #tpu.memory_space<vmem>>, vector<32x64xbf16>
    %7 = arith.extf %6 : vector<32x64xbf16> to vector<32x64xf32>
    %8 = arith.addf %5, %7 : vector<32x64xf32>
    %cst_7 = arith.constant 0.000000e+00 : f32
    %9 = vector.broadcast %cst_7 : f32 to vector<32x64xf32>
    %10 = arith.maximumf %8, %9 : vector<32x64xf32>
    %11 = arith.truncf %10 : vector<32x64xf32> to vector<32x64xbf16>
    %c0_8 = arith.constant 0 : index
    %c0_9 = arith.constant 0 : index
    %12 = vector.load %arg4[%c0_8, %c0_9] : memref<32x64xbf16, #tpu.memory_space<vmem>>, vector<32x64xbf16>
    tpu.vector_store %arg4[%c0_8, %c0_9], %11 {strides = array<i32>} : memref<32x64xbf16, #tpu.memory_space<vmem>>, vector<32x64xbf16>,
    return
  }
}

module attributes {stable_mosaic.version = 11 : i64} {
  func.func @kernel(%arg0: memref<8x576xbf16, #tpu.memory_space<vmem>>, %arg1: memref<576x128xbf16, #tpu.memory_space<vmem>>, %arg2: memref<1x128xf32, #tpu.memory_space<vmem>>, %arg3: memref<64x128xbf16, #tpu.memory_space<vmem>>, %arg4: memref<1x128xf32, #tpu.memory_space<vmem>>, %arg5: memref<8x128xbf16, #tpu.memory_space<vmem>>, %arg6: memref<8x128xbf16, #tpu.memory_space<vmem>>) attributes {dimension_semantics = [], scalar_prefetch = 0 : i64, scratch_operands = 0 : i64, tpu.core_type = #tpu.core_type<tc>} {
    %c0 = arith.constant 0 : index
    %c0_0 = arith.constant 0 : index
    %0 = vector.load %arg0[%c0, %c0_0] : memref<8x576xbf16, #tpu.memory_space<vmem>>, vector<8x576xbf16>
    %c0_1 = arith.constant 0 : index
    %c0_2 = arith.constant 0 : index
    %1 = vector.load %arg1[%c0_1, %c0_2] : memref<576x128xbf16, #tpu.memory_space<vmem>>, vector<576x128xbf16>
    %cst = arith.constant dense<0.000000e+00> : vector<8x128xf32>
    %2 = tpu.matmul %0, %1, %cst {dimension_numbers = #tpu.dot_dimension_numbers<[1], [0], [0], [1], [0, 0, 1, 1], [], []>} : vector<8x576xbf16>, vector<576x128xbf16>, vector<8x128xf32> -> vector<8x128xf32>
    %c0_3 = arith.constant 0 : index
    %c0_4 = arith.constant 0 : index
    %3 = vector.load %arg2[%c0_3, %c0_4] : memref<1x128xf32, #tpu.memory_space<vmem>>, vector<1x128xf32>
    %4 = vector.broadcast %3 : vector<1x128xf32> to vector<8x128xf32>
    %5 = arith.addf %2, %4 : vector<8x128xf32>
    %cst_5 = arith.constant 0.000000e+00 : f32
    %6 = vector.broadcast %cst_5 : f32 to vector<8x128xf32>
    %7 = arith.maximumf %5, %6 : vector<8x128xf32>
    %8 = arith.truncf %7 : vector<8x128xf32> to vector<8x128xbf16>
    %c0_6 = arith.constant 0 : index
    %c0_7 = arith.constant 0 : index
    %9 = vector.load %arg5[%c0_6, %c0_7] : memref<8x128xbf16, #tpu.memory_space<vmem>>, vector<8x128xbf16>
    tpu.vector_store %arg5[%c0_6, %c0_7], %8 {strides = array<i32>} : memref<8x128xbf16, #tpu.memory_space<vmem>>, vector<8x128xbf16>,
    %c0_8 = arith.constant 0 : index
    %c256 = arith.constant 256 : index
    %10 = vector.load %arg0[%c0_8, %c256] : memref<8x576xbf16, #tpu.memory_space<vmem>>, vector<8x64xbf16>
    %c0_9 = arith.constant 0 : index
    %c0_10 = arith.constant 0 : index
    %11 = vector.load %arg3[%c0_9, %c0_10] : memref<64x128xbf16, #tpu.memory_space<vmem>>, vector<64x128xbf16>
    %cst_11 = arith.constant dense<0.000000e+00> : vector<8x128xf32>
    %12 = tpu.matmul %10, %11, %cst_11 {dimension_numbers = #tpu.dot_dimension_numbers<[1], [0], [0], [1], [0, 0, 1, 1], [], []>} : vector<8x64xbf16>, vector<64x128xbf16>, vector<8x128xf32> -> vector<8x128xf32>
    %c0_12 = arith.constant 0 : index
    %c0_13 = arith.constant 0 : index
    %13 = vector.load %arg4[%c0_12, %c0_13] : memref<1x128xf32, #tpu.memory_space<vmem>>, vector<1x128xf32>
    %14 = vector.broadcast %13 : vector<1x128xf32> to vector<8x128xf32>
    %15 = arith.addf %12, %14 : vector<8x128xf32>
    %16 = arith.truncf %15 : vector<8x128xf32> to vector<8x128xbf16>
    %c0_14 = arith.constant 0 : index
    %c0_15 = arith.constant 0 : index
    %17 = vector.load %arg6[%c0_14, %c0_15] : memref<8x128xbf16, #tpu.memory_space<vmem>>, vector<8x128xbf16>
    tpu.vector_store %arg6[%c0_14, %c0_15], %16 {strides = array<i32>} : memref<8x128xbf16, #tpu.memory_space<vmem>>, vector<8x128xbf16>,
    return
  }
}

module attributes {stable_mosaic.version = 11 : i64} {
  func.func @kernel(%arg0: memref<8x1152xbf16, #tpu.memory_space<vmem>>, %arg1: memref<1152x128xbf16, #tpu.memory_space<vmem>>, %arg2: memref<1x128xf32, #tpu.memory_space<vmem>>, %arg3: memref<8x128xbf16, #tpu.memory_space<vmem>>, %arg4: memref<8x128xbf16, #tpu.memory_space<vmem>>) attributes {dimension_semantics = [], scalar_prefetch = 0 : i64, scratch_operands = 0 : i64, tpu.core_type = #tpu.core_type<tc>} {
    %c0 = arith.constant 0 : index
    %c0_0 = arith.constant 0 : index
    %0 = vector.load %arg0[%c0, %c0_0] : memref<8x1152xbf16, #tpu.memory_space<vmem>>, vector<8x1152xbf16>
    %c0_1 = arith.constant 0 : index
    %c0_2 = arith.constant 0 : index
    %1 = vector.load %arg1[%c0_1, %c0_2] : memref<1152x128xbf16, #tpu.memory_space<vmem>>, vector<1152x128xbf16>
    %cst = arith.constant dense<0.000000e+00> : vector<8x128xf32>
    %2 = tpu.matmul %0, %1, %cst {dimension_numbers = #tpu.dot_dimension_numbers<[1], [0], [0], [1], [0, 0, 1, 1], [], []>} : vector<8x1152xbf16>, vector<1152x128xbf16>, vector<8x128xf32> -> vector<8x128xf32>
    %c0_3 = arith.constant 0 : index
    %c0_4 = arith.constant 0 : index
    %3 = vector.load %arg2[%c0_3, %c0_4] : memref<1x128xf32, #tpu.memory_space<vmem>>, vector<1x128xf32>
    %4 = vector.broadcast %3 : vector<1x128xf32> to vector<8x128xf32>
    %5 = arith.addf %2, %4 : vector<8x128xf32>
    %c0_5 = arith.constant 0 : index
    %c0_6 = arith.constant 0 : index
    %6 = vector.load %arg3[%c0_5, %c0_6] : memref<8x128xbf16, #tpu.memory_space<vmem>>, vector<8x128xbf16>
    %7 = arith.extf %6 : vector<8x128xbf16> to vector<8x128xf32>
    %8 = arith.addf %5, %7 : vector<8x128xf32>
    %cst_7 = arith.constant 0.000000e+00 : f32
    %9 = vector.broadcast %cst_7 : f32 to vector<8x128xf32>
    %10 = arith.maximumf %8, %9 : vector<8x128xf32>
    %11 = arith.truncf %10 : vector<8x128xf32> to vector<8x128xbf16>
    %c0_8 = arith.constant 0 : index
    %c0_9 = arith.constant 0 : index
    %12 = vector.load %arg4[%c0_8, %c0_9] : memref<8x128xbf16, #tpu.memory_space<vmem>>, vector<8x128xbf16>
    tpu.vector_store %arg4[%c0_8, %c0_9], %11 {strides = array<i32>} : memref<8x128xbf16, #tpu.memory_space<vmem>>, vector<8x128xbf16>,
    return
  }
}

module attributes {stable_mosaic.version = 11 : i64} {
  func.func @_head_kernel(%arg0: memref<2x4x128xbf16, #tpu.memory_space<vmem>>, %arg1: memref<128x10xbf16, #tpu.memory_space<vmem>>, %arg2: memref<1x10xf32, #tpu.memory_space<vmem>>, %arg3: memref<2x10xf32, #tpu.memory_space<vmem>>) attributes {dimension_semantics = [], scalar_prefetch = 0 : i64, scratch_operands = 0 : i64, tpu.core_type = #tpu.core_type<tc>} {
    %c0 = arith.constant 0 : index
    %c0_0 = arith.constant 0 : index
    %c0_1 = arith.constant 0 : index
    %0 = vector.load %arg0[%c0, %c0_0, %c0_1] : memref<2x4x128xbf16, #tpu.memory_space<vmem>>, vector<2x4x128xbf16>
    %1 = arith.extf %0 : vector<2x4x128xbf16> to vector<2x4x128xf32>
    %cst = arith.constant dense<0.000000e+00> : vector<2x128xf32>
    %2 = vector.multi_reduction <add>, %1, %cst [1] : vector<2x4x128xf32> to vector<2x128xf32>
    %cst_2 = arith.constant 4.000000e+00 : f32
    %3 = vector.broadcast %cst_2 : f32 to vector<2x128xf32>
    %4 = arith.divf %2, %3 : vector<2x128xf32>
    %5 = arith.truncf %4 : vector<2x128xf32> to vector<2x128xbf16>
    %c0_3 = arith.constant 0 : index
    %c0_4 = arith.constant 0 : index
    %6 = vector.load %arg1[%c0_3, %c0_4] : memref<128x10xbf16, #tpu.memory_space<vmem>>, vector<128x10xbf16>
    %cst_5 = arith.constant dense<0.000000e+00> : vector<2x10xf32>
    %7 = tpu.matmul %5, %6, %cst_5 {dimension_numbers = #tpu.dot_dimension_numbers<[1], [0], [0], [1], [0, 0, 1, 1], [], []>} : vector<2x128xbf16>, vector<128x10xbf16>, vector<2x10xf32> -> vector<2x10xf32>
    %c0_6 = arith.constant 0 : index
    %c0_7 = arith.constant 0 : index
    %8 = vector.load %arg2[%c0_6, %c0_7] : memref<1x10xf32, #tpu.memory_space<vmem>>, vector<1x10xf32>
    %9 = vector.broadcast %8 : vector<1x10xf32> to vector<2x10xf32>
    %10 = arith.addf %7, %9 : vector<2x10xf32>
    %cst_8 = arith.constant dense<0xFF800000> : vector<2xf32>
    %11 = vector.multi_reduction <maximumf>, %10, %cst_8 [1] : vector<2x10xf32> to vector<2xf32>
    %12 = vector.shape_cast %11 : vector<2xf32> to vector<2x1xf32>
    %13 = vector.broadcast %12 : vector<2x1xf32> to vector<2x10xf32>
    %14 = arith.subf %10, %13 : vector<2x10xf32>
    %15 = math.exp %14 : vector<2x10xf32>
    %cst_9 = arith.constant dense<0.000000e+00> : vector<2xf32>
    %16 = vector.multi_reduction <add>, %15, %cst_9 [1] : vector<2x10xf32> to vector<2xf32>
    %17 = vector.shape_cast %16 : vector<2xf32> to vector<2x1xf32>
    %18 = math.log %17 : vector<2x1xf32>
    %19 = vector.broadcast %18 : vector<2x1xf32> to vector<2x10xf32>
    %20 = arith.subf %14, %19 : vector<2x10xf32>
    %c0_10 = arith.constant 0 : index
    %c0_11 = arith.constant 0 : index
    %21 = vector.load %arg3[%c0_10, %c0_11] : memref<2x10xf32, #tpu.memory_space<vmem>>, vector<2x10xf32>
    tpu.vector_store %arg3[%c0_10, %c0_11], %20 {strides = array<i32>} : memref<2x10xf32, #tpu.memory_space<vmem>>, vector<2x10xf32>,
    return
  }
}

</mosaic_0001>

<llo_original>
// kernel: resnet_forward.10
$region0: #{resnet_forward.10}
  #allocation0 [shape = 'u32[]', space=smem, size = 0x4, offset = 0x4, fixed_abs, tag = 'smem constant byte address 0x4 - core index']
  #allocation1 [shape = 'u32[72,128]{1,0:T(1,128)}', space=vmem, size = 0x9000, scoped, tag = 'internal scratch']
  %s0 = inlined_call_operand.vmem [shape: bf16[64,2048], index: 0, kind: input, shape index: {}]
  %s1 = inlined_call_operand.vmem [shape: bf16[16,64], index: 1, kind: input, shape index: {}]
  %s2 = inlined_call_operand.vmem [shape: f32[16,1], index: 2, kind: input, shape index: {}]
  %s3 = inlined_call_operand.vmem [shape: bf16[16,2048], index: 3, kind: output, shape index: {}]
  %s4 = sld [smem:[#allocation0]]
  $region87: #{resnet_forward.10} parent=0
    _
  %s6 = ssub.s32 1, %s4
  %s7 = scalar_select 0, %s6, %s4
  $region1: #{resnet_forward.10} parent=0
    #allocation2 [shape = 'u8[262144]{0}', space=vmem, size = 0x40000, scoped, tag = 'input window, operand 0']
    #allocation3 [shape = 'u8[65536]{0}', space=vmem, size = 0x10000, scoped, tag = 'output window, operand 0']
    loop: start=0, step=1, limit=4
    $region2: #{resnet_forward.10} parent=1 // loop_pre_header
      _
    $region3: #{resnet_forward.10} parent=1 // loop_header
      %s9 = sphi 0, %s13
      %p10 = scmp.ge.s32.totalorder %s9, 4
      %s19 = sphi 0, %s21
      %s22 = sphi 0, %s19
      %s23 = sphi 0, %s22
      %s39 = sphi 0, %s23
      %s43 = sphi 0, %s43
      %s45 = sphi 0, %s43
      %s46 = sphi 0, %s45
      %s60 = sphi 0, %s46
      %s64 = sphi 0, %s64
      %s66 = sphi 0, %s64
      %s67 = sphi 0, %s66
      %s81 = sphi 0, %s67
      %s87 = sphi 0, %s89
      %s90 = sphi 0, %s87
      %s91 = sphi 0, %s90
      %s107 = sphi 0, %s91
    $region4: #{resnet_forward.10} parent=1 // loop_header_branch
      %12 = sbr.rel (%p10) target = $region8
    $region5: #{resnet_forward.10} parent=1 // loop_body
      %s14 = ssub.s32 %s9, 1
      %s15 = ssub.s32 %s9, 2
      %s16 = sadd.s32 %s9, 1
      %s17 = ssub.s32 %s9, %s16
      %p18 = scmp.eq.s32.totalorder %s17, 0
      %s20 = sadd.s32 %s19, 1
      %s21 = scalar_select %p18, %s19, %s20
      %p24 = pneg %p18
      %p25 = scmp.eq.s32.totalorder %s9, 1
      %p26 = por %p24, %p25
      %p27 = scmp.ne.s32.totalorder %s19, %s22
      %p28 = scmp.eq.s32.totalorder %s9, 0
      %p29 = por %p27, %p28
      %p30 = scmp.ne.s32.totalorder %s19, %s22
      %p31 = scmp.eq.s32.totalorder %s14, 1
      %p32 = por %p30, %p31
      %p33 = scmp.ne.s32.totalorder %s22, %s23
      %p34 = scmp.eq.s32.totalorder %s14, 0
      %p35 = por %p33, %p34
      %p36 = scmp.ne.s32.totalorder %s22, %s23
      %p37 = scmp.eq.s32.totalorder %s15, 1
      %p38 = por %p36, %p37
      %p40 = scmp.ne.s32.totalorder %s23, %s39
      %p41 = scmp.eq.s32.totalorder %s15, 0
      %p42 = por %p40, %p41
      %s44 = sadd.s32 %s43, 1
      %p47 = scmp.eq.s32.totalorder %s9, 1
      %p48 = scmp.ne.s32.totalorder %s43, %s45
      %p49 = scmp.eq.s32.totalorder %s9, 0
      %p50 = por %p48, %p49
      %p51 = scmp.ne.s32.totalorder %s43, %s45
      %p52 = scmp.eq.s32.totalorder %s14, 1
      %p53 = por %p51, %p52
      %p54 = scmp.ne.s32.totalorder %s45, %s46
      %p55 = scmp.eq.s32.totalorder %s14, 0
      %p56 = por %p54, %p55
      %p57 = scmp.ne.s32.totalorder %s45, %s46
      %p58 = scmp.eq.s32.totalorder %s15, 1
      %p59 = por %p57, %p58
      %p61 = scmp.ne.s32.totalorder %s46, %s60
      %p62 = scmp.eq.s32.totalorder %s15, 0
      %p63 = por %p61, %p62
      %s65 = sadd.s32 %s64, 1
      %p68 = scmp.eq.s32.totalorder %s9, 1
      %p69 = scmp.ne.s32.totalorder %s64, %s66
      %p70 = scmp.eq.s32.totalorder %s9, 0
      %p71 = por %p69, %p70
      %p72 = scmp.ne.s32.totalorder %s64, %s66
      %p73 = scmp.eq.s32.totalorder %s14, 1
      %p74 = por %p72, %p73
      %p75 = scmp.ne.s32.totalorder %s66, %s67
      %p76 = scmp.eq.s32.totalorder %s14, 0
      %p77 = por %p75, %p76
      %p78 = scmp.ne.s32.totalorder %s66, %s67
      %p79 = scmp.eq.s32.totalorder %s15, 1
      %p80 = por %p78, %p79
      %p82 = scmp.ne.s32.totalorder %s67, %s81
      %p83 = scmp.eq.s32.totalorder %s15, 0
      %p84 = por %p82, %p83
      %s85 = ssub.s32 %s9, %s16
      %p86 = scmp.eq.s32.totalorder %s85, 0
      %s88 = sadd.s32 %s87, 1
      %s89 = scalar_select %p86, %s87, %s88
      %p92 = pneg %p86
      %p93 = scmp.eq.s32.totalorder %s9, 1
      %p94 = por %p92, %p93
      %p95 = scmp.ne.s32.totalorder %s87, %s90
      %p96 = scmp.eq.s32.totalorder %s9, 0
      %p97 = por %p95, %p96
      %p98 = scmp.ne.s32.totalorder %s87, %s90
      %p99 = scmp.eq.s32.totalorder %s14, 1
      %p100 = por %p98, %p99
      %p101 = scmp.ne.s32.totalorder %s90, %s91
      %p102 = scmp.eq.s32.totalorder %s14, 0
      %p103 = por %p101, %p102
      %p104 = scmp.ne.s32.totalorder %s90, %s91
      %p105 = scmp.eq.s32.totalorder %s15, 1
      %p106 = por %p104, %p105
      %p108 = scmp.ne.s32.totalorder %s91, %s107
      %p109 = scmp.eq.s32.totalorder %s15, 0
      %p110 = por %p108, %p109
      %p111 = scmp.le.s32.totalorder 1, %s9
      %p112 = scmp.lt.s32.totalorder %s9, 3
      %p113 = pnand %p111, %p112
      %p114 = pneg %p113
      // Predicated region
      $region9: #{resnet_forward.10} parent=5 // pred_check
        _
      $region10: #{resnet_forward.10} parent=5 // pred_check_branch
        %116 = sbr.rel (%p113) target = $region12
      $region11: #{resnet_forward.10} parent=5 // pred_region
        %s117 = ssub.s32 %s9, 1
        // Predicated region
        $region13: #{resnet_forward.10} parent=11 // pred_check
          %p118 = pneg %p56
        $region14: #{resnet_forward.10} parent=11 // pred_check_branch
          %120 = sbr.rel (%p118) target = $region16
        $region15: #{resnet_forward.10} parent=11 // pred_region
          _
        $region16: #{resnet_forward.10} parent=11 // pred_fallthru
          _
        // Predicated region
        $region17: #{resnet_forward.10} parent=11 // pred_check
          %p121 = pneg %p77
        $region18: #{resnet_forward.10} parent=11 // pred_check_branch
          %123 = sbr.rel (%p121) target = $region20
        $region19: #{resnet_forward.10} parent=11 // pred_region
          _
        $region20: #{resnet_forward.10} parent=11 // pred_fallthru
          _
      $region12: #{resnet_forward.10} parent=5 // pred_fallthru
        _
      %p124 = scmp.lt.s32.totalorder %s9, 2
      // Predicated region
      $region21: #{resnet_forward.10} parent=5 // pred_check
        %p125 = pneg %p124
      $region22: #{resnet_forward.10} parent=5 // pred_check_branch
        %127 = sbr.rel (%p125) target = $region24
      $region23: #{resnet_forward.10} parent=5 // pred_region
        // Predicated region
        $region25: #{resnet_forward.10} parent=23 // pred_check
          %p128 = pneg %p29
        $region26: #{resnet_forward.10} parent=23 // pred_check_branch
          %130 = sbr.rel (%p128) target = $region28
        $region27: #{resnet_forward.10} parent=23 // pred_region
          %s131 = sand.u32 %s19, 1
          %s132 = sand.u32 %s19, 1
          %s133 = smul.addr %s132, 256
          %s134 = scalar_lea.vmem [#allocation2], %s133
          %s135 = smul.u32 8, %s9
          %s136 = smul.addr %s135, 4
          %s137 = scalar_lea.vmem %s0, %s136
          // Predicated region
          $region29: #{resnet_forward.10} parent=27 // pred_check
            _
          $region30: #{resnet_forward.10} parent=27 // pred_check_branch
            %139 = sbr.rel (0) target = $region32
          $region31: #{resnet_forward.10} parent=27 // pred_region
            // Predicated region
            $region33: #{resnet_forward.10} parent=31 // pred_check
              _
            $region34: #{resnet_forward.10} parent=31 // pred_check_branch
              %141 = sbr.rel (0) target = $region36
            $region35: #{resnet_forward.10} parent=31 // pred_region
              loop: start=0, step=1, limit=1
              $region37: #{resnet_forward.10} parent=35 // loop_pre_header
                _
              $region38: #{resnet_forward.10} parent=35 // loop_header
                %s143 = sphi 0, %s147
                %p144 = scmp.ge.s32.totalorder %s143, 1
                %s148 = sphi %s137, %s137
                %s149 = sphi %s134, %s134
              $region39: #{resnet_forward.10} parent=35 // loop_header_branch
                %146 = sbr.rel (%p144) target = $region43
              $region40: #{resnet_forward.10} parent=35 // loop_body
                %v150 = vld [vmem:[%s148] sm:$0xff]
                %151 = vst [vmem:[%s149] sm:$0xff] %v150
                %v152 = vld [vmem:[%s148 + $0x8] sm:$0xff]
                %153 = vst [vmem:[%s149 + $0x8] sm:$0xff] %v152
                %v154 = vld [vmem:[%s148 + $0x10] sm:$0xff]
                %155 = vst [vmem:[%s149 + $0x10] sm:$0xff] %v154
                %v156 = vld [vmem:[%s148 + $0x18] sm:$0xff]
                %157 = vst [vmem:[%s149 + $0x18] sm:$0xff] %v156
                %v158 = vld [vmem:[%s148 + $0x40] sm:$0xff]
                %159 = vst [vmem:[%s149 + $0x20] sm:$0xff] %v158
                %v160 = vld [vmem:[%s148 + $0x48] sm:$0xff]
                %161 = vst [vmem:[%s149 + $0x28] sm:$0xff] %v160
                %v162 = vld [vmem:[%s148 + $0x50] sm:$0xff]
                %163 = vst [vmem:[%s149 + $0x30] sm:$0xff] %v162
                %v164 = vld [vmem:[%s148 + $0x58] sm:$0xff]
                %165 = vst [vmem:[%s149 + $0x38] sm:$0xff] %v164
                %v166 = vld [vmem:[%s148 + $0x80] sm:$0xff]
                %167 = vst [vmem:[%s149 + $0x40] sm:$0xff] %v166
                %v168 = vld [vmem:[%s148 + $0x88] sm:$0xff]
                %169 = vst [vmem:[%s149 + $0x48] sm:$0xff] %v168
                %v170 = vld [vmem:[%s148 + $0x90] sm:$0xff]
                %171 = vst [vmem:[%s149 + $0x50] sm:$0xff] %v170
                %v172 = vld [vmem:[%s148 + $0x98] sm:$0xff]
                %173 = vst [vmem:[%s149 + $0x58] sm:$0xff] %v172
                %v174 = vld [vmem:[%s148 + $0xc0] sm:$0xff]
                %175 = vst [vmem:[%s149 + $0x60] sm:$0xff] %v174
                %v176 = vld [vmem:[%s148 + $0xc8] sm:$0xff]
                %177 = vst [vmem:[%s149 + $0x68] sm:$0xff] %v176
                %v178 = vld [vmem:[%s148 + $0xd0] sm:$0xff]
                %179 = vst [vmem:[%s149 + $0x70] sm:$0xff] %v178
                %v180 = vld [vmem:[%s148 + $0xd8] sm:$0xff]
                %181 = vst [vmem:[%s149 + $0x78] sm:$0xff] %v180
                %v182 = vld [vmem:[%s148 + $0x100] sm:$0xff]
                %183 = vst [vmem:[%s149 + $0x80] sm:$0xff] %v182
                %v184 = vld [vmem:[%s148 + $0x108] sm:$0xff]
                %185 = vst [vmem:[%s149 + $0x88] sm:$0xff] %v184
                %v186 = vld [vmem:[%s148 + $0x110] sm:$0xff]
                %187 = vst [vmem:[%s149 + $0x90] sm:$0xff] %v186
                %v188 = vld [vmem:[%s148 + $0x118] sm:$0xff]
                %189 = vst [vmem:[%s149 + $0x98] sm:$0xff] %v188
                %v190 = vld [vmem:[%s148 + $0x140] sm:$0xff]
                %191 = vst [vmem:[%s149 + $0xa0] sm:$0xff] %v190
                %v192 = vld [vmem:[%s148 + $0x148] sm:$0xff]
                %193 = vst [vmem:[%s149 + $0xa8] sm:$0xff] %v192
                %v194 = vld [vmem:[%s148 + $0x150] sm:$0xff]
                %195 = vst [vmem:[%s149 + $0xb0] sm:$0xff] %v194
                %v196 = vld [vmem:[%s148 + $0x158] sm:$0xff]
                %197 = vst [vmem:[%s149 + $0xb8] sm:$0xff] %v196
                %v198 = vld [vmem:[%s148 + $0x180] sm:$0xff]
                %199 = vst [vmem:[%s149 + $0xc0] sm:$0xff] %v198
                %v200 = vld [vmem:[%s148 + $0x188] sm:$0xff]
                %201 = vst [vmem:[%s149 + $0xc8] sm:$0xff] %v200
                %v202 = vld [vmem:[%s148 + $0x190] sm:$0xff]
                %203 = vst [vmem:[%s149 + $0xd0] sm:$0xff] %v202
                %v204 = vld [vmem:[%s148 + $0x198] sm:$0xff]
                %205 = vst [vmem:[%s149 + $0xd8] sm:$0xff] %v204
                %v206 = vld [vmem:[%s148 + $0x1c0] sm:$0xff]
                %207 = vst [vmem:[%s149 + $0xe0] sm:$0xff] %v206
                %v208 = vld [vmem:[%s148 + $0x1c8] sm:$0xff]
                %209 = vst [vmem:[%s149 + $0xe8] sm:$0xff] %v208
                %v210 = vld [vmem:[%s148 + $0x1d0] sm:$0xff]
                %211 = vst [vmem:[%s149 + $0xf0] sm:$0xff] %v210
                %v212 = vld [vmem:[%s148 + $0x1d8] sm:$0xff]
                %213 = vst [vmem:[%s149 + $0xf8] sm:$0xff] %v212
              $region41: #{resnet_forward.10} parent=35 // loop_footer
                %s147 = sadd.s32 1, %s143
              $region42: #{resnet_forward.10} parent=35 // loop_footer_branch
                %142 = sbr.rel target = $region38
              $region43: #{resnet_forward.10} parent=35 // loop_exit
                _
            $region36: #{resnet_forward.10} parent=31 // pred_fallthru
              _
            // Predicated region
            $region44: #{resnet_forward.10} parent=31 // pred_check
              _
            $region45: #{resnet_forward.10} parent=31 // pred_check_branch
              %215 = sbr.rel target = $region47
            $region46: #{resnet_forward.10} parent=31 // pred_region
              _
            $region47: #{resnet_forward.10} parent=31 // pred_fallthru
              _
          $region32: #{resnet_forward.10} parent=27 // pred_fallthru
            _
          %216 = vnop
        $region28: #{resnet_forward.10} parent=23 // pred_fallthru
          _
      $region24: #{resnet_forward.10} parent=5 // pred_fallthru
        _
      %p217 = scmp.le.s32.totalorder 1, %s9
      %p218 = scmp.lt.s32.totalorder %s9, 3
      %p219 = pnand %p217, %p218
      %p220 = pneg %p219
      // Predicated region
      $region48: #{resnet_forward.10} parent=5 // pred_check
        _
      $region49: #{resnet_forward.10} parent=5 // pred_check_branch
        %222 = sbr.rel (%p219) target = $region51
      $region50: #{resnet_forward.10} parent=5 // pred_region
        %s223 = ssub.s32 %s9, 1
        %s224 = sand.u32 %s22, 1
        %s225 = sand.u32 %s22, 1
        %s226 = smul.addr %s225, 256
        %s227 = scalar_lea.vmem [#allocation2], %s226
        // Predicated region
        $region52: #{resnet_forward.10} parent=50 // pred_check
          %p228 = pneg %p35
        $region53: #{resnet_forward.10} parent=50 // pred_check_branch
          %230 = sbr.rel (%p228) target = $region55
        $region54: #{resnet_forward.10} parent=50 // pred_region
          _
        $region55: #{resnet_forward.10} parent=50 // pred_fallthru
          _
        %s231 = sand.u32 %s22, 1
        %s232 = sand.u32 %s22, 1
        %s233 = smul.addr %s232, 256
        %s234 = scalar_lea.vmem [#allocation2], %s233
        %p235 = pneg %p35
        %p236 = pneg %p32
        %p237 = pneg %p56
        %p238 = pneg %p53
        %p239 = pneg %p77
        %p240 = pneg %p74
        %p241 = pneg %p103
        %p242 = pneg %p100
        %s243 = sand.u32 %s90, 1
        %s244 = sand.u32 %s90, 1
        %s245 = smul.addr %s244, 64
        %s246 = scalar_lea.vmem [#allocation3], %s245
        %s247 = smul.u32 8, %s14
        %s248 = smul.u32 8, %s14
        %v250 = vld [vmem:[%s1] sm:$0xf]
        %v251 = vld [vmem:[%s1 + $0x4] sm:$0xf]
        %v252 = vld [vmem:[%s227] sm:$0xff]
        %v253 = vld [vmem:[%s227 + $0x8] sm:$0xff]
        %v254 = vld [vmem:[%s227 + $0x10] sm:$0xff]
        %v255 = vld [vmem:[%s227 + $0x18] sm:$0xff]
        %v256 = vld [vmem:[%s227 + $0x20] sm:$0xff]
        %v257 = vld [vmem:[%s227 + $0x28] sm:$0xff]
        %v258 = vld [vmem:[%s227 + $0x30] sm:$0xff]
        %v259 = vld [vmem:[%s227 + $0x38] sm:$0xff]
        %v260 = vld [vmem:[%s227 + $0x40] sm:$0xff]
        %v261 = vld [vmem:[%s227 + $0x48] sm:$0xff]
        %v262 = vld [vmem:[%s227 + $0x50] sm:$0xff]
        %v263 = vld [vmem:[%s227 + $0x58] sm:$0xff]
        %v264 = vld [vmem:[%s227 + $0x60] sm:$0xff]
        %v265 = vld [vmem:[%s227 + $0x68] sm:$0xff]
        %v266 = vld [vmem:[%s227 + $0x70] sm:$0xff]
        %v267 = vld [vmem:[%s227 + $0x78] sm:$0xff]
        %v268 = vld [vmem:[%s227 + $0x80] sm:$0xff]
        %v269 = vld [vmem:[%s227 + $0x88] sm:$0xff]
        %v270 = vld [vmem:[%s227 + $0x90] sm:$0xff]
        %v271 = vld [vmem:[%s227 + $0x98] sm:$0xff]
        %v272 = vld [vmem:[%s227 + $0xa0] sm:$0xff]
        %v273 = vld [vmem:[%s227 + $0xa8] sm:$0xff]
        %v274 = vld [vmem:[%s227 + $0xb0] sm:$0xff]
        %v275 = vld [vmem:[%s227 + $0xb8] sm:$0xff]
        %v276 = vld [vmem:[%s227 + $0xc0] sm:$0xff]
        %v277 = vld [vmem:[%s227 + $0xc8] sm:$0xff]
        %v278 = vld [vmem:[%s227 + $0xd0] sm:$0xff]
        %v279 = vld [vmem:[%s227 + $0xd8] sm:$0xff]
        %v280 = vld [vmem:[%s227 + $0xe0] sm:$0xff]
        %v281 = vld [vmem:[%s227 + $0xe8] sm:$0xff]
        %v282 = vld [vmem:[%s227 + $0xf0] sm:$0xff]
        %v283 = vld [vmem:[%s227 + $0xf8] sm:$0xff]
        %v284 = vld [vmem:[%s2] sm:$0xff]
        %v285 = vld [vmem:[%s2 + $0x8] sm:$0xff]
        %287 = vset.pattern.permute.xlu0 0
        %288 = vperm.xlu0 %287, %v284
        %v289 = vpop.permute.xlu0 %288
        %292 = vset.pattern.permute.xlu0 0
        %293 = vperm.xlu0 %292, %v285
        %v294 = vpop.permute.xlu0 %293
        %v298 = vunpack.c.l.b16 %v250
        %v299 = vunpack.c.l.b16 %v251
        %v300 = vpack.c.b16 %v299, %v298
        %v333 = vunpack.c.l.b16 %v252
        %v334 = vunpack.c.h.b16 %v252
        %v335 = vunpack.c.l.b16 %v253
        %v336 = vunpack.c.h.b16 %v253
        %v337 = vunpack.c.l.b16 %v254
        %v338 = vunpack.c.h.b16 %v254
        %v339 = vunpack.c.l.b16 %v255
        %v340 = vunpack.c.h.b16 %v255
        %v341 = vunpack.c.l.b16 %v256
        %v342 = vunpack.c.h.b16 %v256
        %v343 = vunpack.c.l.b16 %v257
        %v344 = vunpack.c.h.b16 %v257
        %v345 = vunpack.c.l.b16 %v258
        %v346 = vunpack.c.h.b16 %v258
        %v347 = vunpack.c.l.b16 %v259
        %v348 = vunpack.c.h.b16 %v259
        %v349 = vunpack.c.l.b16 %v260
        %v350 = vunpack.c.h.b16 %v260
        %v351 = vunpack.c.l.b16 %v261
        %v352 = vunpack.c.h.b16 %v261
        %v353 = vunpack.c.l.b16 %v262
        %v354 = vunpack.c.h.b16 %v262
        %v355 = vunpack.c.l.b16 %v263
        %v356 = vunpack.c.h.b16 %v263
        %v357 = vunpack.c.l.b16 %v264
        %v358 = vunpack.c.h.b16 %v264
        %v359 = vunpack.c.l.b16 %v265
        %v360 = vunpack.c.h.b16 %v265
        %v361 = vunpack.c.l.b16 %v266
        %v362 = vunpack.c.h.b16 %v266
        %v363 = vunpack.c.l.b16 %v267
        %v364 = vunpack.c.h.b16 %v267
        %v365 = vunpack.c.l.b16 %v268
        %v366 = vunpack.c.h.b16 %v268
        %v367 = vunpack.c.l.b16 %v269
        %v368 = vunpack.c.h.b16 %v269
        %v369 = vunpack.c.l.b16 %v270
        %v370 = vunpack.c.h.b16 %v270
        %v371 = vunpack.c.l.b16 %v271
        %v372 = vunpack.c.h.b16 %v271
        %v373 = vunpack.c.l.b16 %v272
        %v374 = vunpack.c.h.b16 %v272
        %v375 = vunpack.c.l.b16 %v273
        %v376 = vunpack.c.h.b16 %v273
        %v377 = vunpack.c.l.b16 %v274
        %v378 = vunpack.c.h.b16 %v274
        %v379 = vunpack.c.l.b16 %v275
        %v380 = vunpack.c.h.b16 %v275
        %v381 = vunpack.c.l.b16 %v276
        %v382 = vunpack.c.h.b16 %v276
        %v383 = vunpack.c.l.b16 %v277
        %v384 = vunpack.c.h.b16 %v277
        %v385 = vunpack.c.l.b16 %v278
        %v386 = vunpack.c.h.b16 %v278
        %v387 = vunpack.c.l.b16 %v279
        %v388 = vunpack.c.h.b16 %v279
        %v389 = vunpack.c.l.b16 %v280
        %v390 = vunpack.c.h.b16 %v280
        %v391 = vunpack.c.l.b16 %v281
        %v392 = vunpack.c.h.b16 %v281
        %v393 = vunpack.c.l.b16 %v282
        %v394 = vunpack.c.h.b16 %v282
        %v395 = vunpack.c.l.b16 %v283
        %v396 = vunpack.c.h.b16 %v283
        %v397 = vpack.c.b16 %v341, %v333
        %v398 = vpack.c.b16 %v342, %v334
        %v399 = vpack.c.b16 %v343, %v335
        %v400 = vpack.c.b16 %v344, %v336
        %v401 = vpack.c.b16 %v345, %v337
        %v402 = vpack.c.b16 %v346, %v338
        %v403 = vpack.c.b16 %v347, %v339
        %v404 = vpack.c.b16 %v348, %v340
        %v405 = vpack.c.b16 %v357, %v349
        %v406 = vpack.c.b16 %v358, %v350
        %v407 = vpack.c.b16 %v359, %v351
        %v408 = vpack.c.b16 %v360, %v352
        %v409 = vpack.c.b16 %v361, %v353
        %v410 = vpack.c.b16 %v362, %v354
        %v411 = vpack.c.b16 %v363, %v355
        %v412 = vpack.c.b16 %v364, %v356
        %v413 = vpack.c.b16 %v373, %v365
        %v414 = vpack.c.b16 %v374, %v366
        %v415 = vpack.c.b16 %v375, %v367
        %v416 = vpack.c.b16 %v376, %v368
        %v417 = vpack.c.b16 %v377, %v369
        %v418 = vpack.c.b16 %v378, %v370
        %v419 = vpack.c.b16 %v379, %v371
        %v420 = vpack.c.b16 %v380, %v372
        %v421 = vpack.c.b16 %v389, %v381
        %v422 = vpack.c.b16 %v390, %v382
        %v423 = vpack.c.b16 %v391, %v383
        %v424 = vpack.c.b16 %v392, %v384
        %v425 = vpack.c.b16 %v393, %v385
        %v426 = vpack.c.b16 %v394, %v386
        %v427 = vpack.c.b16 %v395, %v387
        %v428 = vpack.c.b16 %v396, %v388
        %vm461 = vcmask 523264
        %v463 = vsel %vm461, %v300, 0
        %465 = vmatpush.bf16.msra.mxu0 0
        %466 = vmatpush.bf16.msra.mxu0 0
        %467 = vmatpush.bf16.msra.mxu0 0
        %468 = vmatpush.bf16.msra.mxu0 0
        %469 = vmatpush.bf16.msra.mxu0 %v421
        %470 = vmatpush.bf16.msra.mxu0 %v413
        %471 = vmatpush.bf16.msra.mxu0 %v405
        %472 = vmatpush.bf16.msra.mxu0 %v397
        %473 = vmatmul.bf16.gmra.mxu0 %v463
        %v474 = vpop.f32.mrf.mxu0
        %v475 = vadd.f32 %v289, %v474
        %v476 = vpop.f32.mrf.mxu0
        %v477 = vadd.f32 %v294, %v476
        %478 = vdwg.mxu0
        %479 = vmatpush.bf16.msra.mxu0 0
        %480 = vmatpush.bf16.msra.mxu0 0
        %481 = vmatpush.bf16.msra.mxu0 0
        %482 = vmatpush.bf16.msra.mxu0 0
        %483 = vmatpush.bf16.msra.mxu0 %v422
        %484 = vmatpush.bf16.msra.mxu0 %v414
        %485 = vmatpush.bf16.msra.mxu0 %v406
        %486 = vmatpush.bf16.msra.mxu0 %v398
        %487 = vmatmul.bf16.gmra.mxu0 %v463
        %v488 = vpop.f32.mrf.mxu0
        %v489 = vadd.f32 %v289, %v488
        %v490 = vpop.f32.mrf.mxu0
        %v491 = vadd.f32 %v294, %v490
        %492 = vdwg.mxu0
        %493 = vmatpush.bf16.msra.mxu0 0
        %494 = vmatpush.bf16.msra.mxu0 0
        %495 = vmatpush.bf16.msra.mxu0 0
        %496 = vmatpush.bf16.msra.mxu0 0
        %497 = vmatpush.bf16.msra.mxu0 %v423
        %498 = vmatpush.bf16.msra.mxu0 %v415
        %499 = vmatpush.bf16.msra.mxu0 %v407
        %500 = vmatpush.bf16.msra.mxu0 %v399
        %501 = vmatmul.bf16.gmra.mxu0 %v463
        %v502 = vpop.f32.mrf.mxu0
        %v503 = vadd.f32 %v289, %v502
        %v504 = vpop.f32.mrf.mxu0
        %v505 = vadd.f32 %v294, %v504
        %506 = vdwg.mxu0
        %507 = vmatpush.bf16.msra.mxu0 0
        %508 = vmatpush.bf16.msra.mxu0 0
        %509 = vmatpush.bf16.msra.mxu0 0
        %510 = vmatpush.bf16.msra.mxu0 0
        %511 = vmatpush.bf16.msra.mxu0 %v424
        %512 = vmatpush.bf16.msra.mxu0 %v416
        %513 = vmatpush.bf16.msra.mxu0 %v408
        %514 = vmatpush.bf16.msra.mxu0 %v400
        %515 = vmatmul.bf16.gmra.mxu0 %v463
        %v516 = vpop.f32.mrf.mxu0
        %v517 = vadd.f32 %v289, %v516
        %v518 = vpop.f32.mrf.mxu0
        %v519 = vadd.f32 %v294, %v518
        %520 = vdwg.mxu0
        %521 = vmatpush.bf16.msra.mxu0 0
        %522 = vmatpush.bf16.msra.mxu0 0
        %523 = vmatpush.bf16.msra.mxu0 0
        %524 = vmatpush.bf16.msra.mxu0 0
        %525 = vmatpush.bf16.msra.mxu0 %v425
        %526 = vmatpush.bf16.msra.mxu0 %v417
        %527 = vmatpush.bf16.msra.mxu0 %v409
        %528 = vmatpush.bf16.msra.mxu0 %v401
        %529 = vmatmul.bf16.gmra.mxu0 %v463
        %v530 = vpop.f32.mrf.mxu0
        %v531 = vadd.f32 %v289, %v530
        %v532 = vpop.f32.mrf.mxu0
        %v533 = vadd.f32 %v294, %v532
        %534 = vdwg.mxu0
        %535 = vmatpush.bf16.msra.mxu0 0
        %536 = vmatpush.bf16.msra.mxu0 0
        %537 = vmatpush.bf16.msra.mxu0 0
        %538 = vmatpush.bf16.msra.mxu0 0
        %539 = vmatpush.bf16.msra.mxu0 %v426
        %540 = vmatpush.bf16.msra.mxu0 %v418
        %541 = vmatpush.bf16.msra.mxu0 %v410
        %542 = vmatpush.bf16.msra.mxu0 %v402
        %543 = vmatmul.bf16.gmra.mxu0 %v463
        %v544 = vpop.f32.mrf.mxu0
        %v545 = vadd.f32 %v289, %v544
        %v546 = vpop.f32.mrf.mxu0
        %v547 = vadd.f32 %v294, %v546
        %548 = vdwg.mxu0
        %549 = vmatpush.bf16.msra.mxu0 0
        %550 = vmatpush.bf16.msra.mxu0 0
        %551 = vmatpush.bf16.msra.mxu0 0
        %552 = vmatpush.bf16.msra.mxu0 0
        %553 = vmatpush.bf16.msra.mxu0 %v427
        %554 = vmatpush.bf16.msra.mxu0 %v419
        %555 = vmatpush.bf16.msra.mxu0 %v411
        %556 = vmatpush.bf16.msra.mxu0 %v403
        %557 = vmatmul.bf16.gmra.mxu0 %v463
        %v558 = vpop.f32.mrf.mxu0
        %v559 = vadd.f32 %v289, %v558
        %v560 = vpop.f32.mrf.mxu0
        %v561 = vadd.f32 %v294, %v560
        %562 = vdwg.mxu0
        %563 = vmatpush.bf16.msra.mxu0 0
        %564 = vmatpush.bf16.msra.mxu0 0
        %565 = vmatpush.bf16.msra.mxu0 0
        %566 = vmatpush.bf16.msra.mxu0 0
        %567 = vmatpush.bf16.msra.mxu0 %v428
        %568 = vmatpush.bf16.msra.mxu0 %v420
        %569 = vmatpush.bf16.msra.mxu0 %v412
        %570 = vmatpush.bf16.msra.mxu0 %v404
        %571 = vmatmul.bf16.gmra.mxu0 %v463
        %v572 = vpop.f32.mrf.mxu0
        %v573 = vadd.f32 %v289, %v572
        %v574 = vpop.f32.mrf.mxu0
        %v575 = vadd.f32 %v294, %v574
        %576 = vdwg.mxu0
        %v577 = vmax.f32 %v475, 0.0
        %v578 = vmax.f32 %v489, 0.0
        %v579 = vmax.f32 %v503, 0.0
        %v580 = vmax.f32 %v517, 0.0
        %v581 = vmax.f32 %v531, 0.0
        %v582 = vmax.f32 %v545, 0.0
        %v583 = vmax.f32 %v559, 0.0
        %v584 = vmax.f32 %v573, 0.0
        %v585 = vmax.f32 %v477, 0.0
        %v586 = vmax.f32 %v491, 0.0
        %v587 = vmax.f32 %v505, 0.0
        %v588 = vmax.f32 %v519, 0.0
        %v589 = vmax.f32 %v533, 0.0
        %v590 = vmax.f32 %v547, 0.0
        %v591 = vmax.f32 %v561, 0.0
        %v592 = vmax.f32 %v575, 0.0
        %v593 = vpack.c.bf16 %v578, %v577
        %v594 = vpack.c.bf16 %v580, %v579
        %v595 = vpack.c.bf16 %v582, %v581
        %v596 = vpack.c.bf16 %v584, %v583
        %v597 = vpack.c.bf16 %v586, %v585
        %v598 = vpack.c.bf16 %v588, %v587
        %v599 = vpack.c.bf16 %v590, %v589
        %v600 = vpack.c.bf16 %v592, %v591
        %601 = vst [vmem:[%s246] sm:$0xff] %v593
        %602 = vst [vmem:[%s246 + $0x8] sm:$0xff] %v594
        %603 = vst [vmem:[%s246 + $0x10] sm:$0xff] %v595
        %604 = vst [vmem:[%s246 + $0x18] sm:$0xff] %v596
        %605 = vst [vmem:[%s246 + $0x20] sm:$0xff] %v597
        %606 = vst [vmem:[%s246 + $0x28] sm:$0xff] %v598
        %607 = vst [vmem:[%s246 + $0x30] sm:$0xff] %v599
        %608 = vst [vmem:[%s246 + $0x38] sm:$0xff] %v600
        %s609 = sand.u32 %s90, 1
        %s610 = sand.u32 %s90, 1
        %s611 = smul.addr %s610, 64
        %s612 = scalar_lea.vmem [#allocation3], %s611
        // Predicated region
        $region56: #{resnet_forward.10} parent=50 // pred_check
          %p613 = pneg %p100
        $region57: #{resnet_forward.10} parent=50 // pred_check_branch
          %615 = sbr.rel (%p613) target = $region59
        $region58: #{resnet_forward.10} parent=50 // pred_region
          %s616 = smul.u32 8, %s14
          %s617 = smul.addr %s616, 4
          %s618 = scalar_lea.vmem %s3, %s617
          // Predicated region
          $region60: #{resnet_forward.10} parent=58 // pred_check
            _
          $region61: #{resnet_forward.10} parent=58 // pred_check_branch
            %620 = sbr.rel (0) target = $region63
          $region62: #{resnet_forward.10} parent=58 // pred_region
            // Predicated region
            $region64: #{resnet_forward.10} parent=62 // pred_check
              _
            $region65: #{resnet_forward.10} parent=62 // pred_check_branch
              %622 = sbr.rel (0) target = $region67
            $region66: #{resnet_forward.10} parent=62 // pred_region
              loop: start=0, step=1, limit=1
              $region68: #{resnet_forward.10} parent=66 // loop_pre_header
                _
              $region69: #{resnet_forward.10} parent=66 // loop_header
                %s624 = sphi 0, %s628
                %p625 = scmp.ge.s32.totalorder %s624, 1
                %s629 = sphi %s612, %s612
                %s630 = sphi %s618, %s618
              $region70: #{resnet_forward.10} parent=66 // loop_header_branch
                %627 = sbr.rel (%p625) target = $region74
              $region71: #{resnet_forward.10} parent=66 // loop_body
                %v631 = vld [vmem:[%s629] sm:$0xff]
                %632 = vst [vmem:[%s630] sm:$0xff] %v631
                %v633 = vld [vmem:[%s629 + $0x8] sm:$0xff]
                %634 = vst [vmem:[%s630 + $0x8] sm:$0xff] %v633
                %v635 = vld [vmem:[%s629 + $0x10] sm:$0xff]
                %636 = vst [vmem:[%s630 + $0x10] sm:$0xff] %v635
                %v637 = vld [vmem:[%s629 + $0x18] sm:$0xff]
                %638 = vst [vmem:[%s630 + $0x18] sm:$0xff] %v637
                %v639 = vld [vmem:[%s629 + $0x20] sm:$0xff]
                %640 = vst [vmem:[%s630 + $0x40] sm:$0xff] %v639
                %v641 = vld [vmem:[%s629 + $0x28] sm:$0xff]
                %642 = vst [vmem:[%s630 + $0x48] sm:$0xff] %v641
                %v643 = vld [vmem:[%s629 + $0x30] sm:$0xff]
                %644 = vst [vmem:[%s630 + $0x50] sm:$0xff] %v643
                %v645 = vld [vmem:[%s629 + $0x38] sm:$0xff]
                %646 = vst [vmem:[%s630 + $0x58] sm:$0xff] %v645
              $region72: #{resnet_forward.10} parent=66 // loop_footer
                %s628 = sadd.s32 1, %s624
              $region73: #{resnet_forward.10} parent=66 // loop_footer_branch
                %623 = sbr.rel target = $region69
              $region74: #{resnet_forward.10} parent=66 // loop_exit
                _
            $region67: #{resnet_forward.10} parent=62 // pred_fallthru
              _
            // Predicated region
            $region75: #{resnet_forward.10} parent=62 // pred_check
              _
            $region76: #{resnet_forward.10} parent=62 // pred_check_branch
              %648 = sbr.rel target = $region78
            $region77: #{resnet_forward.10} parent=62 // pred_region
              _
            $region78: #{resnet_forward.10} parent=62 // pred_fallthru
              _
          $region63: #{resnet_forward.10} parent=58 // pred_fallthru
            _
          %649 = vnop
        $region59: #{resnet_forward.10} parent=50 // pred_fallthru
          _
      $region51: #{resnet_forward.10} parent=5 // pred_fallthru
        _
      %p650 = scmp.le.s32.totalorder 2, %s9
      // Predicated region
      $region79: #{resnet_forward.10} parent=5 // pred_check
        %p651 = pneg %p650
      $region80: #{resnet_forward.10} parent=5 // pred_check_branch
        %653 = sbr.rel (%p651) target = $region82
      $region81: #{resnet_forward.10} parent=5 // pred_region
        %s654 = ssub.s32 %s9, 2
        // Predicated region
        $region83: #{resnet_forward.10} parent=81 // pred_check
          %p655 = pneg %p106
        $region84: #{resnet_forward.10} parent=81 // pred_check_branch
          %657 = sbr.rel (%p655) target = $region86
        $region85: #{resnet_forward.10} parent=81 // pred_region
          %s658 = sand.u32 %s91, 1
          %s659 = sand.u32 %s91, 1
          %s660 = smul.addr %s659, 64
          %s661 = scalar_lea.vmem [#allocation3], %s660
        $region86: #{resnet_forward.10} parent=81 // pred_fallthru
          _
      $region82: #{resnet_forward.10} parent=5 // pred_fallthru
        _
    $region6: #{resnet_forward.10} parent=1 // loop_footer
      %s13 = sadd.s32 1, %s9
    $region7: #{resnet_forward.10} parent=1 // loop_footer_branch
      %8 = sbr.rel target = $region3
    $region8: #{resnet_forward.10} parent=1 // loop_exit
      _

// kernel: resnet_forward.11
$region0: #{resnet_forward.11}
  #allocation0 [shape = 'u32[]', space=smem, size = 0x4, offset = 0x4, fixed_abs, tag = 'smem constant byte address 0x4 - core index']
  #allocation1 [shape = 'u32[72,128]{1,0:T(1,128)}', space=vmem, size = 0x9000, scoped, tag = 'internal scratch']
  %s0 = inlined_call_operand.vmem [shape: bf16[144,512], index: 0, kind: input, shape index: {}]
  %s1 = inlined_call_operand.vmem [shape: bf16[16,144], index: 1, kind: input, shape index: {}]
  %s2 = inlined_call_operand.vmem [shape: f32[16,1], index: 2, kind: input, shape index: {}]
  %s3 = inlined_call_operand.vmem [shape: bf16[16,512], index: 3, kind: output, shape index: {}]
  %s4 = sld [smem:[#allocation0]]
  $region117: #{resnet_forward.11} parent=0
    _
  %s6 = ssub.s32 1, %s4
  %s7 = scalar_select 0, %s6, %s4
  $region1: #{resnet_forward.11} parent=0
    #allocation2 [shape = 'u8[147456]{0}', space=vmem, size = 0x24000, scoped, tag = 'input window, operand 0']
    #allocation3 [shape = 'u8[16384]{0}', space=vmem, size = 0x4000, scoped, tag = 'output window, operand 0']
    loop: start=0, step=1, limit=4
    $region2: #{resnet_forward.11} parent=1 // loop_pre_header
      _
    $region3: #{resnet_forward.11} parent=1 // loop_header
      %s9 = sphi 0, %s13
      %p10 = scmp.ge.s32.totalorder %s9, 4
      %s19 = sphi 0, %s21
      %s22 = sphi 0, %s19
      %s23 = sphi 0, %s22
      %s39 = sphi 0, %s23
      %s43 = sphi 0, %s43
      %s45 = sphi 0, %s43
      %s46 = sphi 0, %s45
      %s60 = sphi 0, %s46
      %s64 = sphi 0, %s64
      %s66 = sphi 0, %s64
      %s67 = sphi 0, %s66
      %s81 = sphi 0, %s67
      %s87 = sphi 0, %s89
      %s90 = sphi 0, %s87
      %s91 = sphi 0, %s90
      %s107 = sphi 0, %s91
    $region4: #{resnet_forward.11} parent=1 // loop_header_branch
      %12 = sbr.rel (%p10) target = $region8
    $region5: #{resnet_forward.11} parent=1 // loop_body
      %s14 = ssub.s32 %s9, 1
      %s15 = ssub.s32 %s9, 2
      %s16 = sadd.s32 %s9, 1
      %s17 = ssub.s32 %s9, %s16
      %p18 = scmp.eq.s32.totalorder %s17, 0
      %s20 = sadd.s32 %s19, 1
      %s21 = scalar_select %p18, %s19, %s20
      %p24 = pneg %p18
      %p25 = scmp.eq.s32.totalorder %s9, 1
      %p26 = por %p24, %p25
      %p27 = scmp.ne.s32.totalorder %s19, %s22
      %p28 = scmp.eq.s32.totalorder %s9, 0
      %p29 = por %p27, %p28
      %p30 = scmp.ne.s32.totalorder %s19, %s22
      %p31 = scmp.eq.s32.totalorder %s14, 1
      %p32 = por %p30, %p31
      %p33 = scmp.ne.s32.totalorder %s22, %s23
      %p34 = scmp.eq.s32.totalorder %s14, 0
      %p35 = por %p33, %p34
      %p36 = scmp.ne.s32.totalorder %s22, %s23
      %p37 = scmp.eq.s32.totalorder %s15, 1
      %p38 = por %p36, %p37
      %p40 = scmp.ne.s32.totalorder %s23, %s39
      %p41 = scmp.eq.s32.totalorder %s15, 0
      %p42 = por %p40, %p41
      %s44 = sadd.s32 %s43, 1
      %p47 = scmp.eq.s32.totalorder %s9, 1
      %p48 = scmp.ne.s32.totalorder %s43, %s45
      %p49 = scmp.eq.s32.totalorder %s9, 0
      %p50 = por %p48, %p49
      %p51 = scmp.ne.s32.totalorder %s43, %s45
      %p52 = scmp.eq.s32.totalorder %s14, 1
      %p53 = por %p51, %p52
      %p54 = scmp.ne.s32.totalorder %s45, %s46
      %p55 = scmp.eq.s32.totalorder %s14, 0
      %p56 = por %p54, %p55
      %p57 = scmp.ne.s32.totalorder %s45, %s46
      %p58 = scmp.eq.s32.totalorder %s15, 1
      %p59 = por %p57, %p58
      %p61 = scmp.ne.s32.totalorder %s46, %s60
      %p62 = scmp.eq.s32.totalorder %s15, 0
      %p63 = por %p61, %p62
      %s65 = sadd.s32 %s64, 1
      %p68 = scmp.eq.s32.totalorder %s9, 1
      %p69 = scmp.ne.s32.totalorder %s64, %s66
      %p70 = scmp.eq.s32.totalorder %s9, 0
      %p71 = por %p69, %p70
      %p72 = scmp.ne.s32.totalorder %s64, %s66
      %p73 = scmp.eq.s32.totalorder %s14, 1
      %p74 = por %p72, %p73
      %p75 = scmp.ne.s32.totalorder %s66, %s67
      %p76 = scmp.eq.s32.totalorder %s14, 0
      %p77 = por %p75, %p76
      %p78 = scmp.ne.s32.totalorder %s66, %s67
      %p79 = scmp.eq.s32.totalorder %s15, 1
      %p80 = por %p78, %p79
      %p82 = scmp.ne.s32.totalorder %s67, %s81
      %p83 = scmp.eq.s32.totalorder %s15, 0
      %p84 = por %p82, %p83
      %s85 = ssub.s32 %s9, %s16
      %p86 = scmp.eq.s32.totalorder %s85, 0
      %s88 = sadd.s32 %s87, 1
      %s89 = scalar_select %p86, %s87, %s88
      %p92 = pneg %p86
      %p93 = scmp.eq.s32.totalorder %s9, 1
      %p94 = por %p92, %p93
      %p95 = scmp.ne.s32.totalorder %s87, %s90
      %p96 = scmp.eq.s32.totalorder %s9, 0
      %p97 = por %p95, %p96
      %p98 = scmp.ne.s32.totalorder %s87, %s90
      %p99 = scmp.eq.s32.totalorder %s14, 1
      %p100 = por %p98, %p99
      %p101 = scmp.ne.s32.totalorder %s90, %s91
      %p102 = scmp.eq.s32.totalorder %s14, 0
      %p103 = por %p101, %p102
      %p104 = scmp.ne.s32.totalorder %s90, %s91
      %p105 = scmp.eq.s32.totalorder %s15, 1
      %p106 = por %p104, %p105
      %p108 = scmp.ne.s32.totalorder %s91, %s107
      %p109 = scmp.eq.s32.totalorder %s15, 0
      %p110 = por %p108, %p109
      %p111 = scmp.le.s32.totalorder 1, %s9
      %p112 = scmp.lt.s32.totalorder %s9, 3
      %p113 = pnand %p111, %p112
      %p114 = pneg %p113
      // Predicated region
      $region9: #{resnet_forward.11} parent=5 // pred_check
        _
      $region10: #{resnet_forward.11} parent=5 // pred_check_branch
        %116 = sbr.rel (%p113) target = $region12
      $region11: #{resnet_forward.11} parent=5 // pred_region
        %s117 = ssub.s32 %s9, 1
        // Predicated region
        $region13: #{resnet_forward.11} parent=11 // pred_check
          %p118 = pneg %p56
        $region14: #{resnet_forward.11} parent=11 // pred_check_branch
          %120 = sbr.rel (%p118) target = $region16
        $region15: #{resnet_forward.11} parent=11 // pred_region
          _
        $region16: #{resnet_forward.11} parent=11 // pred_fallthru
          _
        // Predicated region
        $region17: #{resnet_forward.11} parent=11 // pred_check
          %p121 = pneg %p77
        $region18: #{resnet_forward.11} parent=11 // pred_check_branch
          %123 = sbr.rel (%p121) target = $region20
        $region19: #{resnet_forward.11} parent=11 // pred_region
          _
        $region20: #{resnet_forward.11} parent=11 // pred_fallthru
          _
      $region12: #{resnet_forward.11} parent=5 // pred_fallthru
        _
      %p124 = scmp.lt.s32.totalorder %s9, 2
      // Predicated region
      $region21: #{resnet_forward.11} parent=5 // pred_check
        %p125 = pneg %p124
      $region22: #{resnet_forward.11} parent=5 // pred_check_branch
        %127 = sbr.rel (%p125) target = $region24
      $region23: #{resnet_forward.11} parent=5 // pred_region
        // Predicated region
        $region25: #{resnet_forward.11} parent=23 // pred_check
          %p128 = pneg %p29
        $region26: #{resnet_forward.11} parent=23 // pred_check_branch
          %130 = sbr.rel (%p128) target = $region28
        $region27: #{resnet_forward.11} parent=23 // pred_region
          %s131 = sand.u32 %s19, 1
          %s132 = sand.u32 %s19, 1
          %s133 = smul.addr %s132, 144
          %s134 = scalar_lea.vmem [#allocation2], %s133
          %s135 = smul.u32 2, %s9
          %s136 = smul.addr %s135, 4
          %s137 = scalar_lea.vmem %s0, %s136
          // Predicated region
          $region29: #{resnet_forward.11} parent=27 // pred_check
            _
          $region30: #{resnet_forward.11} parent=27 // pred_check_branch
            %139 = sbr.rel (0) target = $region32
          $region31: #{resnet_forward.11} parent=27 // pred_region
            // Predicated region
            $region33: #{resnet_forward.11} parent=31 // pred_check
              _
            $region34: #{resnet_forward.11} parent=31 // pred_check_branch
              %141 = sbr.rel (0) target = $region36
            $region35: #{resnet_forward.11} parent=31 // pred_region
              // Predicated region
              $region48: #{resnet_forward.11} parent=35 // pred_check
                _
              $region49: #{resnet_forward.11} parent=35 // pred_check_branch
                %191 = sbr.rel (0) target = $region51
              $region50: #{resnet_forward.11} parent=35 // pred_region
                loop: start=0, step=1, limit=1
                $region52: #{resnet_forward.11} parent=50 // loop_pre_header
                  _
                $region53: #{resnet_forward.11} parent=50 // loop_header
                  %s193 = sphi 0, %s197
                  %p194 = scmp.ge.s32.totalorder %s193, 1
                  %s198 = sphi %s137, %s137
                  %s199 = sphi %s134, %s134
                $region54: #{resnet_forward.11} parent=50 // loop_header_branch
                  %196 = sbr.rel (%p194) target = $region58
                $region55: #{resnet_forward.11} parent=50 // loop_body
                  %v200 = vld [vmem:[%s198] sm:$0xff]
                  %201 = vst [vmem:[%s199] sm:$0xff] %v200
                  %v202 = vld [vmem:[%s198 + $0x10] sm:$0xff]
                  %203 = vst [vmem:[%s199 + $0x8] sm:$0xff] %v202
                  %v204 = vld [vmem:[%s198 + $0x20] sm:$0xff]
                  %205 = vst [vmem:[%s199 + $0x10] sm:$0xff] %v204
                  %v206 = vld [vmem:[%s198 + $0x30] sm:$0xff]
                  %207 = vst [vmem:[%s199 + $0x18] sm:$0xff] %v206
                  %v208 = vld [vmem:[%s198 + $0x40] sm:$0xff]
                  %209 = vst [vmem:[%s199 + $0x20] sm:$0xff] %v208
                  %v210 = vld [vmem:[%s198 + $0x50] sm:$0xff]
                  %211 = vst [vmem:[%s199 + $0x28] sm:$0xff] %v210
                  %v212 = vld [vmem:[%s198 + $0x60] sm:$0xff]
                  %213 = vst [vmem:[%s199 + $0x30] sm:$0xff] %v212
                  %v214 = vld [vmem:[%s198 + $0x70] sm:$0xff]
                  %215 = vst [vmem:[%s199 + $0x38] sm:$0xff] %v214
                  %v216 = vld [vmem:[%s198 + $0x80] sm:$0xff]
                  %217 = vst [vmem:[%s199 + $0x40] sm:$0xff] %v216
                  %v218 = vld [vmem:[%s198 + $0x90] sm:$0xff]
                  %219 = vst [vmem:[%s199 + $0x48] sm:$0xff] %v218
                  %v220 = vld [vmem:[%s198 + $0xa0] sm:$0xff]
                  %221 = vst [vmem:[%s199 + $0x50] sm:$0xff] %v220
                  %v222 = vld [vmem:[%s198 + $0xb0] sm:$0xff]
                  %223 = vst [vmem:[%s199 + $0x58] sm:$0xff] %v222
                  %v224 = vld [vmem:[%s198 + $0xc0] sm:$0xff]
                  %225 = vst [vmem:[%s199 + $0x60] sm:$0xff] %v224
                  %v226 = vld [vmem:[%s198 + $0xd0] sm:$0xff]
                  %227 = vst [vmem:[%s199 + $0x68] sm:$0xff] %v226
                  %v228 = vld [vmem:[%s198 + $0xe0] sm:$0xff]
                  %229 = vst [vmem:[%s199 + $0x70] sm:$0xff] %v228
                  %v230 = vld [vmem:[%s198 + $0xf0] sm:$0xff]
                  %231 = vst [vmem:[%s199 + $0x78] sm:$0xff] %v230
                  %v232 = vld [vmem:[%s198 + $0x100] sm:$0xff]
                  %233 = vst [vmem:[%s199 + $0x80] sm:$0xff] %v232
                  %v234 = vld [vmem:[%s198 + $0x110] sm:$0xff]
                  %235 = vst [vmem:[%s199 + $0x88] sm:$0xff] %v234
                $region56: #{resnet_forward.11} parent=50 // loop_footer
                  %s197 = sadd.s32 1, %s193
                $region57: #{resnet_forward.11} parent=50 // loop_footer_branch
                  %192 = sbr.rel target = $region53
                $region58: #{resnet_forward.11} parent=50 // loop_exit
                  _
              $region51: #{resnet_forward.11} parent=35 // pred_fallthru
                _
              // Predicated region
              $region59: #{resnet_forward.11} parent=35 // pred_check
                _
              $region60: #{resnet_forward.11} parent=35 // pred_check_branch
                %237 = sbr.rel target = $region62
              $region61: #{resnet_forward.11} parent=35 // pred_region
                _
              $region62: #{resnet_forward.11} parent=35 // pred_fallthru
                _
            $region36: #{resnet_forward.11} parent=31 // pred_fallthru
              _
            // Predicated region
            $region37: #{resnet_forward.11} parent=31 // pred_check
              _
            $region38: #{resnet_forward.11} parent=31 // pred_check_branch
              %143 = sbr.rel target = $region40
            $region39: #{resnet_forward.11} parent=31 // pred_region
              %s145 = ssub.s32 256, 1
              loop: start=0, step=1, limit=1
              $region41: #{resnet_forward.11} parent=39 // loop_pre_header
                _
              $region42: #{resnet_forward.11} parent=39 // loop_header
                %s147 = sphi 0, %s151
                %p148 = scmp.ge.s32.totalorder %s147, 1
                %s152 = sphi %s137, %s137
                %s153 = sphi %s134, %s134
              $region43: #{resnet_forward.11} parent=39 // loop_header_branch
                %150 = sbr.rel (%p148) target = $region47
              $region44: #{resnet_forward.11} parent=39 // loop_body
                %v154 = vld [vmem:[%s152] sm:%s145]
                %155 = vst [vmem:[%s153] sm:%s145] %v154
                %v156 = vld [vmem:[%s152 + $0x10] sm:%s145]
                %157 = vst [vmem:[%s153 + $0x8] sm:%s145] %v156
                %v158 = vld [vmem:[%s152 + $0x20] sm:%s145]
                %159 = vst [vmem:[%s153 + $0x10] sm:%s145] %v158
                %v160 = vld [vmem:[%s152 + $0x30] sm:%s145]
                %161 = vst [vmem:[%s153 + $0x18] sm:%s145] %v160
                %v162 = vld [vmem:[%s152 + $0x40] sm:%s145]
                %163 = vst [vmem:[%s153 + $0x20] sm:%s145] %v162
                %v164 = vld [vmem:[%s152 + $0x50] sm:%s145]
                %165 = vst [vmem:[%s153 + $0x28] sm:%s145] %v164
                %v166 = vld [vmem:[%s152 + $0x60] sm:%s145]
                %167 = vst [vmem:[%s153 + $0x30] sm:%s145] %v166
                %v168 = vld [vmem:[%s152 + $0x70] sm:%s145]
                %169 = vst [vmem:[%s153 + $0x38] sm:%s145] %v168
                %v170 = vld [vmem:[%s152 + $0x80] sm:%s145]
                %171 = vst [vmem:[%s153 + $0x40] sm:%s145] %v170
                %v172 = vld [vmem:[%s152 + $0x90] sm:%s145]
                %173 = vst [vmem:[%s153 + $0x48] sm:%s145] %v172
                %v174 = vld [vmem:[%s152 + $0xa0] sm:%s145]
                %175 = vst [vmem:[%s153 + $0x50] sm:%s145] %v174
                %v176 = vld [vmem:[%s152 + $0xb0] sm:%s145]
                %177 = vst [vmem:[%s153 + $0x58] sm:%s145] %v176
                %v178 = vld [vmem:[%s152 + $0xc0] sm:%s145]
                %179 = vst [vmem:[%s153 + $0x60] sm:%s145] %v178
                %v180 = vld [vmem:[%s152 + $0xd0] sm:%s145]
                %181 = vst [vmem:[%s153 + $0x68] sm:%s145] %v180
                %v182 = vld [vmem:[%s152 + $0xe0] sm:%s145]
                %183 = vst [vmem:[%s153 + $0x70] sm:%s145] %v182
                %v184 = vld [vmem:[%s152 + $0xf0] sm:%s145]
                %185 = vst [vmem:[%s153 + $0x78] sm:%s145] %v184
                %v186 = vld [vmem:[%s152 + $0x100] sm:%s145]
                %187 = vst [vmem:[%s153 + $0x80] sm:%s145] %v186
                %v188 = vld [vmem:[%s152 + $0x110] sm:%s145]
                %189 = vst [vmem:[%s153 + $0x88] sm:%s145] %v188
              $region45: #{resnet_forward.11} parent=39 // loop_footer
                %s151 = sadd.s32 1, %s147
              $region46: #{resnet_forward.11} parent=39 // loop_footer_branch
                %146 = sbr.rel target = $region42
              $region47: #{resnet_forward.11} parent=39 // loop_exit
                _
            $region40: #{resnet_forward.11} parent=31 // pred_fallthru
              _
          $region32: #{resnet_forward.11} parent=27 // pred_fallthru
            _
          %238 = vnop
        $region28: #{resnet_forward.11} parent=23 // pred_fallthru
          _
      $region24: #{resnet_forward.11} parent=5 // pred_fallthru
        _
      %p239 = scmp.le.s32.totalorder 1, %s9
      %p240 = scmp.lt.s32.totalorder %s9, 3
      %p241 = pnand %p239, %p240
      %p242 = pneg %p241
      // Predicated region
      $region63: #{resnet_forward.11} parent=5 // pred_check
        _
      $region64: #{resnet_forward.11} parent=5 // pred_check_branch
        %244 = sbr.rel (%p241) target = $region66
      $region65: #{resnet_forward.11} parent=5 // pred_region
        %s245 = ssub.s32 %s9, 1
        %s246 = sand.u32 %s22, 1
        %s247 = sand.u32 %s22, 1
        %s248 = smul.addr %s247, 144
        %s249 = scalar_lea.vmem [#allocation2], %s248
        // Predicated region
        $region67: #{resnet_forward.11} parent=65 // pred_check
          %p250 = pneg %p35
        $region68: #{resnet_forward.11} parent=65 // pred_check_branch
          %252 = sbr.rel (%p250) target = $region70
        $region69: #{resnet_forward.11} parent=65 // pred_region
          _
        $region70: #{resnet_forward.11} parent=65 // pred_fallthru
          _
        %s253 = sand.u32 %s22, 1
        %s254 = sand.u32 %s22, 1
        %s255 = smul.addr %s254, 144
        %s256 = scalar_lea.vmem [#allocation2], %s255
        %p257 = pneg %p35
        %p258 = pneg %p32
        %p259 = pneg %p56
        %p260 = pneg %p53
        %p261 = pneg %p77
        %p262 = pneg %p74
        %p263 = pneg %p103
        %p264 = pneg %p100
        %s265 = sand.u32 %s90, 1
        %s266 = sand.u32 %s90, 1
        %s267 = smul.addr %s266, 16
        %s268 = scalar_lea.vmem [#allocation3], %s267
        %s269 = smul.u32 2, %s14
        %s270 = smul.u32 2, %s14
        %v272 = vld [vmem:[%s1] sm:$0xff]
        %v273 = vld [vmem:[%s1 + $0x8] sm:$0xff]
        %v274 = vld [vmem:[%s249] sm:$0xff]
        %v275 = vld [vmem:[%s249 + $0x8] sm:$0xff]
        %v276 = vld [vmem:[%s249 + $0x10] sm:$0xff]
        %v277 = vld [vmem:[%s249 + $0x18] sm:$0xff]
        %v278 = vld [vmem:[%s249 + $0x20] sm:$0xff]
        %v279 = vld [vmem:[%s249 + $0x28] sm:$0xff]
        %v280 = vld [vmem:[%s249 + $0x30] sm:$0xff]
        %v281 = vld [vmem:[%s249 + $0x38] sm:$0xff]
        %v282 = vld [vmem:[%s249 + $0x40] sm:$0xff]
        %v283 = vld [vmem:[%s249 + $0x48] sm:$0xff]
        %v284 = vld [vmem:[%s249 + $0x50] sm:$0xff]
        %v285 = vld [vmem:[%s249 + $0x58] sm:$0xff]
        %v286 = vld [vmem:[%s249 + $0x60] sm:$0xff]
        %v287 = vld [vmem:[%s249 + $0x68] sm:$0xff]
        %v288 = vld [vmem:[%s249 + $0x70] sm:$0xff]
        %v289 = vld [vmem:[%s249 + $0x78] sm:$0xff]
        %v290 = vld [vmem:[%s249 + $0x80] sm:$0xff]
        %v291 = vld [vmem:[%s249 + $0x88] sm:$0xff]
        %v292 = vld [vmem:[%s2] sm:$0xff]
        %v293 = vld [vmem:[%s2 + $0x8] sm:$0xff]
        %295 = vset.pattern.permute.xlu0 0
        %296 = vperm.xlu0 %295, %v292
        %v297 = vpop.permute.xlu0 %296
        %300 = vset.pattern.permute.xlu0 0
        %301 = vperm.xlu0 %300, %v293
        %v302 = vpop.permute.xlu0 %301
        %v306 = vunpack.c.l.b16 %v272
        %v307 = vunpack.c.h.b16 %v272
        %v308 = vunpack.c.l.b16 %v273
        %v309 = vunpack.c.h.b16 %v273
        %v310 = vpack.c.b16 %v308, %v306
        %v311 = vpack.c.b16 %v309, %v307
        %v331 = vunpack.c.l.b16 %v274
        %v332 = vunpack.c.h.b16 %v274
        %v333 = vunpack.c.l.b16 %v275
        %v334 = vunpack.c.h.b16 %v275
        %v335 = vunpack.c.l.b16 %v276
        %v336 = vunpack.c.h.b16 %v276
        %v337 = vunpack.c.l.b16 %v277
        %v338 = vunpack.c.h.b16 %v277
        %v339 = vunpack.c.l.b16 %v278
        %v340 = vunpack.c.h.b16 %v278
        %v341 = vunpack.c.l.b16 %v279
        %v342 = vunpack.c.h.b16 %v279
        %v343 = vunpack.c.l.b16 %v280
        %v344 = vunpack.c.h.b16 %v280
        %v345 = vunpack.c.l.b16 %v281
        %v346 = vunpack.c.h.b16 %v281
        %v347 = vunpack.c.l.b16 %v282
        %v348 = vunpack.c.h.b16 %v282
        %v349 = vunpack.c.l.b16 %v283
        %v350 = vunpack.c.h.b16 %v283
        %v351 = vunpack.c.l.b16 %v284
        %v352 = vunpack.c.h.b16 %v284
        %v353 = vunpack.c.l.b16 %v285
        %v354 = vunpack.c.h.b16 %v285
        %v355 = vunpack.c.l.b16 %v286
        %v356 = vunpack.c.h.b16 %v286
        %v357 = vunpack.c.l.b16 %v287
        %v358 = vunpack.c.h.b16 %v287
        %v359 = vunpack.c.l.b16 %v288
        %v360 = vunpack.c.h.b16 %v288
        %v361 = vunpack.c.l.b16 %v289
        %v362 = vunpack.c.h.b16 %v289
        %v363 = vunpack.c.l.b16 %v290
        %v364 = vunpack.c.h.b16 %v290
        %v365 = vunpack.c.l.b16 %v291
        %v366 = vunpack.c.h.b16 %v291
        %v367 = vpack.c.b16 %v333, %v331
        %v368 = vpack.c.b16 %v334, %v332
        %v369 = vpack.c.b16 %v337, %v335
        %v370 = vpack.c.b16 %v338, %v336
        %v371 = vpack.c.b16 %v341, %v339
        %v372 = vpack.c.b16 %v342, %v340
        %v373 = vpack.c.b16 %v345, %v343
        %v374 = vpack.c.b16 %v346, %v344
        %v375 = vpack.c.b16 %v349, %v347
        %v376 = vpack.c.b16 %v350, %v348
        %v377 = vpack.c.b16 %v353, %v351
        %v378 = vpack.c.b16 %v354, %v352
        %v379 = vpack.c.b16 %v357, %v355
        %v380 = vpack.c.b16 %v358, %v356
        %v381 = vpack.c.b16 %v361, %v359
        %v382 = vpack.c.b16 %v362, %v360
        %v383 = vpack.c.b16 %v365, %v363
        %v384 = vpack.c.b16 %v366, %v364
        %vm403 = vcmask 130048
        %v405 = vsel %vm403, %v311, 0
        %407 = vmatpush.bf16.msra.mxu0 %v381
        %408 = vmatpush.bf16.msra.mxu0 %v379
        %409 = vmatpush.bf16.msra.mxu0 %v377
        %410 = vmatpush.bf16.msra.mxu0 %v375
        %411 = vmatpush.bf16.msra.mxu0 %v373
        %412 = vmatpush.bf16.msra.mxu0 %v371
        %413 = vmatpush.bf16.msra.mxu0 %v369
        %414 = vmatpush.bf16.msra.mxu0 %v367
        %415 = vmatmul.bf16.gmra.mxu0 %v310
        %v416 = vpop.f32.mrf.mxu0
        %v417 = vadd.f32 %v297, %v416
        %v418 = vpop.f32.mrf.mxu0
        %v419 = vadd.f32 %v302, %v418
        %420 = vdwg.mxu0
        %421 = vmatpush.bf16.msra.mxu0 0
        %422 = vmatpush.bf16.msra.mxu0 0
        %423 = vmatpush.bf16.msra.mxu0 0
        %424 = vmatpush.bf16.msra.mxu0 0
        %425 = vmatpush.bf16.msra.mxu0 0
        %426 = vmatpush.bf16.msra.mxu0 0
        %427 = vmatpush.bf16.msra.mxu0 0
        %428 = vmatpush.bf16.msra.mxu0 %v383
        %429 = vmatmul.bf16.gmra.mxu0 %v405
        %v430 = vpop.f32.mrf.mxu0
        %v431 = vadd.f32 %v417, %v430
        %v432 = vpop.f32.mrf.mxu0
        %v433 = vadd.f32 %v419, %v432
        %434 = vdwg.mxu0
        %435 = vmatpush.bf16.msra.mxu0 %v382
        %436 = vmatpush.bf16.msra.mxu0 %v380
        %437 = vmatpush.bf16.msra.mxu0 %v378
        %438 = vmatpush.bf16.msra.mxu0 %v376
        %439 = vmatpush.bf16.msra.mxu0 %v374
        %440 = vmatpush.bf16.msra.mxu0 %v372
        %441 = vmatpush.bf16.msra.mxu0 %v370
        %442 = vmatpush.bf16.msra.mxu0 %v368
        %443 = vmatmul.bf16.gmra.mxu0 %v310
        %v444 = vpop.f32.mrf.mxu0
        %v445 = vadd.f32 %v297, %v444
        %v446 = vpop.f32.mrf.mxu0
        %v447 = vadd.f32 %v302, %v446
        %448 = vdwg.mxu0
        %449 = vmatpush.bf16.msra.mxu0 0
        %450 = vmatpush.bf16.msra.mxu0 0
        %451 = vmatpush.bf16.msra.mxu0 0
        %452 = vmatpush.bf16.msra.mxu0 0
        %453 = vmatpush.bf16.msra.mxu0 0
        %454 = vmatpush.bf16.msra.mxu0 0
        %455 = vmatpush.bf16.msra.mxu0 0
        %456 = vmatpush.bf16.msra.mxu0 %v384
        %457 = vmatmul.bf16.gmra.mxu0 %v405
        %v458 = vpop.f32.mrf.mxu0
        %v459 = vadd.f32 %v445, %v458
        %v460 = vpop.f32.mrf.mxu0
        %v461 = vadd.f32 %v447, %v460
        %462 = vdwg.mxu0
        %v463 = vmax.f32 %v431, 0.0
        %v464 = vmax.f32 %v459, 0.0
        %v465 = vmax.f32 %v433, 0.0
        %v466 = vmax.f32 %v461, 0.0
        %v467 = vpack.c.bf16 %v464, %v463
        %v468 = vpack.c.bf16 %v466, %v465
        %469 = vst [vmem:[%s268] sm:$0xff] %v467
        %470 = vst [vmem:[%s268 + $0x8] sm:$0xff] %v468
        %s471 = sand.u32 %s90, 1
        %s472 = sand.u32 %s90, 1
        %s473 = smul.addr %s472, 16
        %s474 = scalar_lea.vmem [#allocation3], %s473
        // Predicated region
        $region71: #{resnet_forward.11} parent=65 // pred_check
          %p475 = pneg %p100
        $region72: #{resnet_forward.11} parent=65 // pred_check_branch
          %477 = sbr.rel (%p475) target = $region74
        $region73: #{resnet_forward.11} parent=65 // pred_region
          %s478 = smul.u32 2, %s14
          %s479 = smul.addr %s478, 4
          %s480 = scalar_lea.vmem %s3, %s479
          // Predicated region
          $region75: #{resnet_forward.11} parent=73 // pred_check
            _
          $region76: #{resnet_forward.11} parent=73 // pred_check_branch
            %482 = sbr.rel (0) target = $region78
          $region77: #{resnet_forward.11} parent=73 // pred_region
            // Predicated region
            $region79: #{resnet_forward.11} parent=77 // pred_check
              _
            $region80: #{resnet_forward.11} parent=77 // pred_check_branch
              %484 = sbr.rel (0) target = $region82
            $region81: #{resnet_forward.11} parent=77 // pred_region
              // Predicated region
              $region94: #{resnet_forward.11} parent=81 // pred_check
                _
              $region95: #{resnet_forward.11} parent=81 // pred_check_branch
                %502 = sbr.rel (0) target = $region97
              $region96: #{resnet_forward.11} parent=81 // pred_region
                loop: start=0, step=1, limit=1
                $region98: #{resnet_forward.11} parent=96 // loop_pre_header
                  _
                $region99: #{resnet_forward.11} parent=96 // loop_header
                  %s504 = sphi 0, %s508
                  %p505 = scmp.ge.s32.totalorder %s504, 1
                  %s509 = sphi %s474, %s474
                  %s510 = sphi %s480, %s480
                $region100: #{resnet_forward.11} parent=96 // loop_header_branch
                  %507 = sbr.rel (%p505) target = $region104
                $region101: #{resnet_forward.11} parent=96 // loop_body
                  %v511 = vld [vmem:[%s509] sm:$0xff]
                  %512 = vst [vmem:[%s510] sm:$0xff] %v511
                  %v513 = vld [vmem:[%s509 + $0x8] sm:$0xff]
                  %514 = vst [vmem:[%s510 + $0x10] sm:$0xff] %v513
                $region102: #{resnet_forward.11} parent=96 // loop_footer
                  %s508 = sadd.s32 1, %s504
                $region103: #{resnet_forward.11} parent=96 // loop_footer_branch
                  %503 = sbr.rel target = $region99
                $region104: #{resnet_forward.11} parent=96 // loop_exit
                  _
              $region97: #{resnet_forward.11} parent=81 // pred_fallthru
                _
              // Predicated region
              $region105: #{resnet_forward.11} parent=81 // pred_check
                _
              $region106: #{resnet_forward.11} parent=81 // pred_check_branch
                %516 = sbr.rel target = $region108
              $region107: #{resnet_forward.11} parent=81 // pred_region
                _
              $region108: #{resnet_forward.11} parent=81 // pred_fallthru
                _
            $region82: #{resnet_forward.11} parent=77 // pred_fallthru
              _
            // Predicated region
            $region83: #{resnet_forward.11} parent=77 // pred_check
              _
            $region84: #{resnet_forward.11} parent=77 // pred_check_branch
              %486 = sbr.rel target = $region86
            $region85: #{resnet_forward.11} parent=77 // pred_region
              %s488 = ssub.s32 256, 1
              loop: start=0, step=1, limit=1
              $region87: #{resnet_forward.11} parent=85 // loop_pre_header
                _
              $region88: #{resnet_forward.11} parent=85 // loop_header
                %s490 = sphi 0, %s494
                %p491 = scmp.ge.s32.totalorder %s490, 1
                %s495 = sphi %s474, %s474
                %s496 = sphi %s480, %s480
              $region89: #{resnet_forward.11} parent=85 // loop_header_branch
                %493 = sbr.rel (%p491) target = $region93
              $region90: #{resnet_forward.11} parent=85 // loop_body
                %v497 = vld [vmem:[%s495] sm:%s488]
                %498 = vst [vmem:[%s496] sm:%s488] %v497
                %v499 = vld [vmem:[%s495 + $0x8] sm:%s488]
                %500 = vst [vmem:[%s496 + $0x10] sm:%s488] %v499
              $region91: #{resnet_forward.11} parent=85 // loop_footer
                %s494 = sadd.s32 1, %s490
              $region92: #{resnet_forward.11} parent=85 // loop_footer_branch
                %489 = sbr.rel target = $region88
              $region93: #{resnet_forward.11} parent=85 // loop_exit
                _
            $region86: #{resnet_forward.11} parent=77 // pred_fallthru
              _
          $region78: #{resnet_forward.11} parent=73 // pred_fallthru
            _
          %517 = vnop
        $region74: #{resnet_forward.11} parent=65 // pred_fallthru
          _
      $region66: #{resnet_forward.11} parent=5 // pred_fallthru
        _
      %p518 = scmp.le.s32.totalorder 2, %s9
      // Predicated region
      $region109: #{resnet_forward.11} parent=5 // pred_check
        %p519 = pneg %p518
      $region110: #{resnet_forward.11} parent=5 // pred_check_branch
        %521 = sbr.rel (%p519) target = $region112
      $region111: #{resnet_forward.11} parent=5 // pred_region
        %s522 = ssub.s32 %s9, 2
        // Predicated region
        $region113: #{resnet_forward.11} parent=111 // pred_check
          %p523 = pneg %p106
        $region114: #{resnet_forward.11} parent=111 // pred_check_branch
          %525 = sbr.rel (%p523) target = $region116
        $region115: #{resnet_forward.11} parent=111 // pred_region
          %s526 = sand.u32 %s91, 1
          %s527 = sand.u32 %s91, 1
          %s528 = smul.addr %s527, 16
          %s529 = scalar_lea.vmem [#allocation3], %s528
        $region116: #{resnet_forward.11} parent=111 // pred_fallthru
          _
      $region112: #{resnet_forward.11} parent=5 // pred_fallthru
        _
    $region6: #{resnet_forward.11} parent=1 // loop_footer
      %s13 = sadd.s32 1, %s9
    $region7: #{resnet_forward.11} parent=1 // loop_footer_branch
      %8 = sbr.rel target = $region3
    $region8: #{resnet_forward.11} parent=1 // loop_exit
      _

// kernel: resnet_forward.12
$region0: #{resnet_forward.12}
  #allocation0 [shape = 'u32[]', space=smem, size = 0x4, offset = 0x4, fixed_abs, tag = 'smem constant byte address 0x4 - core index']
  #allocation1 [shape = 'u32[72,128]{1,0:T(1,128)}', space=vmem, size = 0x9000, scoped, tag = 'internal scratch']
  %s0 = inlined_call_operand.vmem [shape: bf16[144,512], index: 0, kind: input, shape index: {}]
  %s1 = inlined_call_operand.vmem [shape: bf16[16,144], index: 1, kind: input, shape index: {}]
  %s2 = inlined_call_operand.vmem [shape: f32[16,1], index: 2, kind: input, shape index: {}]
  %s3 = inlined_call_operand.vmem [shape: bf16[16,512], index: 3, kind: input, shape index: {}]
  %s4 = inlined_call_operand.vmem [shape: bf16[16,512], index: 4, kind: output, shape index: {}]
  %s5 = sld [smem:[#allocation0]]
  $region159: #{resnet_forward.12} parent=0
    _
  %s7 = ssub.s32 1, %s5
  %s8 = scalar_select 0, %s7, %s5
  $region1: #{resnet_forward.12} parent=0
    #allocation2 [shape = 'u8[147456]{0}', space=vmem, size = 0x24000, scoped, tag = 'input window, operand 0']
    #allocation3 [shape = 'u8[16384]{0}', space=vmem, size = 0x4000, scoped, tag = 'input window, operand 3']
    #allocation4 [shape = 'u8[16384]{0}', space=vmem, size = 0x4000, scoped, tag = 'output window, operand 0']
    loop: start=0, step=1, limit=4
    $region2: #{resnet_forward.12} parent=1 // loop_pre_header
      _
    $region3: #{resnet_forward.12} parent=1 // loop_header
      %s10 = sphi 0, %s14
      %p11 = scmp.ge.s32.totalorder %s10, 4
      %s20 = sphi 0, %s22
      %s23 = sphi 0, %s20
      %s24 = sphi 0, %s23
      %s40 = sphi 0, %s24
      %s44 = sphi 0, %s44
      %s46 = sphi 0, %s44
      %s47 = sphi 0, %s46
      %s61 = sphi 0, %s47
      %s65 = sphi 0, %s65
      %s67 = sphi 0, %s65
      %s68 = sphi 0, %s67
      %s82 = sphi 0, %s68
      %s88 = sphi 0, %s90
      %s91 = sphi 0, %s88
      %s92 = sphi 0, %s91
      %s108 = sphi 0, %s92
      %s114 = sphi 0, %s116
      %s117 = sphi 0, %s114
      %s118 = sphi 0, %s117
      %s134 = sphi 0, %s118
    $region4: #{resnet_forward.12} parent=1 // loop_header_branch
      %13 = sbr.rel (%p11) target = $region8
    $region5: #{resnet_forward.12} parent=1 // loop_body
      %s15 = ssub.s32 %s10, 1
      %s16 = ssub.s32 %s10, 2
      %s17 = sadd.s32 %s10, 1
      %s18 = ssub.s32 %s10, %s17
      %p19 = scmp.eq.s32.totalorder %s18, 0
      %s21 = sadd.s32 %s20, 1
      %s22 = scalar_select %p19, %s20, %s21
      %p25 = pneg %p19
      %p26 = scmp.eq.s32.totalorder %s10, 1
      %p27 = por %p25, %p26
      %p28 = scmp.ne.s32.totalorder %s20, %s23
      %p29 = scmp.eq.s32.totalorder %s10, 0
      %p30 = por %p28, %p29
      %p31 = scmp.ne.s32.totalorder %s20, %s23
      %p32 = scmp.eq.s32.totalorder %s15, 1
      %p33 = por %p31, %p32
      %p34 = scmp.ne.s32.totalorder %s23, %s24
      %p35 = scmp.eq.s32.totalorder %s15, 0
      %p36 = por %p34, %p35
      %p37 = scmp.ne.s32.totalorder %s23, %s24
      %p38 = scmp.eq.s32.totalorder %s16, 1
      %p39 = por %p37, %p38
      %p41 = scmp.ne.s32.totalorder %s24, %s40
      %p42 = scmp.eq.s32.totalorder %s16, 0
      %p43 = por %p41, %p42
      %s45 = sadd.s32 %s44, 1
      %p48 = scmp.eq.s32.totalorder %s10, 1
      %p49 = scmp.ne.s32.totalorder %s44, %s46
      %p50 = scmp.eq.s32.totalorder %s10, 0
      %p51 = por %p49, %p50
      %p52 = scmp.ne.s32.totalorder %s44, %s46
      %p53 = scmp.eq.s32.totalorder %s15, 1
      %p54 = por %p52, %p53
      %p55 = scmp.ne.s32.totalorder %s46, %s47
      %p56 = scmp.eq.s32.totalorder %s15, 0
      %p57 = por %p55, %p56
      %p58 = scmp.ne.s32.totalorder %s46, %s47
      %p59 = scmp.eq.s32.totalorder %s16, 1
      %p60 = por %p58, %p59
      %p62 = scmp.ne.s32.totalorder %s47, %s61
      %p63 = scmp.eq.s32.totalorder %s16, 0
      %p64 = por %p62, %p63
      %s66 = sadd.s32 %s65, 1
      %p69 = scmp.eq.s32.totalorder %s10, 1
      %p70 = scmp.ne.s32.totalorder %s65, %s67
      %p71 = scmp.eq.s32.totalorder %s10, 0
      %p72 = por %p70, %p71
      %p73 = scmp.ne.s32.totalorder %s65, %s67
      %p74 = scmp.eq.s32.totalorder %s15, 1
      %p75 = por %p73, %p74
      %p76 = scmp.ne.s32.totalorder %s67, %s68
      %p77 = scmp.eq.s32.totalorder %s15, 0
      %p78 = por %p76, %p77
      %p79 = scmp.ne.s32.totalorder %s67, %s68
      %p80 = scmp.eq.s32.totalorder %s16, 1
      %p81 = por %p79, %p80
      %p83 = scmp.ne.s32.totalorder %s68, %s82
      %p84 = scmp.eq.s32.totalorder %s16, 0
      %p85 = por %p83, %p84
      %s86 = ssub.s32 %s10, %s17
      %p87 = scmp.eq.s32.totalorder %s86, 0
      %s89 = sadd.s32 %s88, 1
      %s90 = scalar_select %p87, %s88, %s89
      %p93 = pneg %p87
      %p94 = scmp.eq.s32.totalorder %s10, 1
      %p95 = por %p93, %p94
      %p96 = scmp.ne.s32.totalorder %s88, %s91
      %p97 = scmp.eq.s32.totalorder %s10, 0
      %p98 = por %p96, %p97
      %p99 = scmp.ne.s32.totalorder %s88, %s91
      %p100 = scmp.eq.s32.totalorder %s15, 1
      %p101 = por %p99, %p100
      %p102 = scmp.ne.s32.totalorder %s91, %s92
      %p103 = scmp.eq.s32.totalorder %s15, 0
      %p104 = por %p102, %p103
      %p105 = scmp.ne.s32.totalorder %s91, %s92
      %p106 = scmp.eq.s32.totalorder %s16, 1
      %p107 = por %p105, %p106
      %p109 = scmp.ne.s32.totalorder %s92, %s108
      %p110 = scmp.eq.s32.totalorder %s16, 0
      %p111 = por %p109, %p110
      %s112 = ssub.s32 %s10, %s17
      %p113 = scmp.eq.s32.totalorder %s112, 0
      %s115 = sadd.s32 %s114, 1
      %s116 = scalar_select %p113, %s114, %s115
      %p119 = pneg %p113
      %p120 = scmp.eq.s32.totalorder %s10, 1
      %p121 = por %p119, %p120
      %p122 = scmp.ne.s32.totalorder %s114, %s117
      %p123 = scmp.eq.s32.totalorder %s10, 0
      %p124 = por %p122, %p123
      %p125 = scmp.ne.s32.totalorder %s114, %s117
      %p126 = scmp.eq.s32.totalorder %s15, 1
      %p127 = por %p125, %p126
      %p128 = scmp.ne.s32.totalorder %s117, %s118
      %p129 = scmp.eq.s32.totalorder %s15, 0
      %p130 = por %p128, %p129
      %p131 = scmp.ne.s32.totalorder %s117, %s118
      %p132 = scmp.eq.s32.totalorder %s16, 1
      %p133 = por %p131, %p132
      %p135 = scmp.ne.s32.totalorder %s118, %s134
      %p136 = scmp.eq.s32.totalorder %s16, 0
      %p137 = por %p135, %p136
      %p138 = scmp.le.s32.totalorder 1, %s10
      %p139 = scmp.lt.s32.totalorder %s10, 3
      %p140 = pnand %p138, %p139
      %p141 = pneg %p140
      // Predicated region
      $region9: #{resnet_forward.12} parent=5 // pred_check
        _
      $region10: #{resnet_forward.12} parent=5 // pred_check_branch
        %143 = sbr.rel (%p140) target = $region12
      $region11: #{resnet_forward.12} parent=5 // pred_region
        %s144 = ssub.s32 %s10, 1
        // Predicated region
        $region13: #{resnet_forward.12} parent=11 // pred_check
          %p145 = pneg %p57
        $region14: #{resnet_forward.12} parent=11 // pred_check_branch
          %147 = sbr.rel (%p145) target = $region16
        $region15: #{resnet_forward.12} parent=11 // pred_region
          _
        $region16: #{resnet_forward.12} parent=11 // pred_fallthru
          _
        // Predicated region
        $region17: #{resnet_forward.12} parent=11 // pred_check
          %p148 = pneg %p78
        $region18: #{resnet_forward.12} parent=11 // pred_check_branch
          %150 = sbr.rel (%p148) target = $region20
        $region19: #{resnet_forward.12} parent=11 // pred_region
          _
        $region20: #{resnet_forward.12} parent=11 // pred_fallthru
          _
      $region12: #{resnet_forward.12} parent=5 // pred_fallthru
        _
      %p151 = scmp.lt.s32.totalorder %s10, 2
      // Predicated region
      $region21: #{resnet_forward.12} parent=5 // pred_check
        %p152 = pneg %p151
      $region22: #{resnet_forward.12} parent=5 // pred_check_branch
        %154 = sbr.rel (%p152) target = $region24
      $region23: #{resnet_forward.12} parent=5 // pred_region
        // Predicated region
        $region25: #{resnet_forward.12} parent=23 // pred_check
          %p155 = pneg %p30
        $region26: #{resnet_forward.12} parent=23 // pred_check_branch
          %157 = sbr.rel (%p155) target = $region28
        $region27: #{resnet_forward.12} parent=23 // pred_region
          %s158 = sand.u32 %s20, 1
          %s159 = sand.u32 %s20, 1
          %s160 = smul.addr %s159, 144
          %s161 = scalar_lea.vmem [#allocation2], %s160
          %s162 = smul.u32 2, %s10
          %s163 = smul.addr %s162, 4
          %s164 = scalar_lea.vmem %s0, %s163
          // Predicated region
          $region29: #{resnet_forward.12} parent=27 // pred_check
            _
          $region30: #{resnet_forward.12} parent=27 // pred_check_branch
            %166 = sbr.rel (0) target = $region32
          $region31: #{resnet_forward.12} parent=27 // pred_region
            // Predicated region
            $region33: #{resnet_forward.12} parent=31 // pred_check
              _
            $region34: #{resnet_forward.12} parent=31 // pred_check_branch
              %168 = sbr.rel (0) target = $region36
            $region35: #{resnet_forward.12} parent=31 // pred_region
              // Predicated region
              $region48: #{resnet_forward.12} parent=35 // pred_check
                _
              $region49: #{resnet_forward.12} parent=35 // pred_check_branch
                %218 = sbr.rel (0) target = $region51
              $region50: #{resnet_forward.12} parent=35 // pred_region
                loop: start=0, step=1, limit=1
                $region52: #{resnet_forward.12} parent=50 // loop_pre_header
                  _
                $region53: #{resnet_forward.12} parent=50 // loop_header
                  %s220 = sphi 0, %s224
                  %p221 = scmp.ge.s32.totalorder %s220, 1
                  %s225 = sphi %s164, %s164
                  %s226 = sphi %s161, %s161
                $region54: #{resnet_forward.12} parent=50 // loop_header_branch
                  %223 = sbr.rel (%p221) target = $region58
                $region55: #{resnet_forward.12} parent=50 // loop_body
                  %v227 = vld [vmem:[%s225] sm:$0xff]
                  %228 = vst [vmem:[%s226] sm:$0xff] %v227
                  %v229 = vld [vmem:[%s225 + $0x10] sm:$0xff]
                  %230 = vst [vmem:[%s226 + $0x8] sm:$0xff] %v229
                  %v231 = vld [vmem:[%s225 + $0x20] sm:$0xff]
                  %232 = vst [vmem:[%s226 + $0x10] sm:$0xff] %v231
                  %v233 = vld [vmem:[%s225 + $0x30] sm:$0xff]
                  %234 = vst [vmem:[%s226 + $0x18] sm:$0xff] %v233
                  %v235 = vld [vmem:[%s225 + $0x40] sm:$0xff]
                  %236 = vst [vmem:[%s226 + $0x20] sm:$0xff] %v235
                  %v237 = vld [vmem:[%s225 + $0x50] sm:$0xff]
                  %238 = vst [vmem:[%s226 + $0x28] sm:$0xff] %v237
                  %v239 = vld [vmem:[%s225 + $0x60] sm:$0xff]
                  %240 = vst [vmem:[%s226 + $0x30] sm:$0xff] %v239
                  %v241 = vld [vmem:[%s225 + $0x70] sm:$0xff]
                  %242 = vst [vmem:[%s226 + $0x38] sm:$0xff] %v241
                  %v243 = vld [vmem:[%s225 + $0x80] sm:$0xff]
                  %244 = vst [vmem:[%s226 + $0x40] sm:$0xff] %v243
                  %v245 = vld [vmem:[%s225 + $0x90] sm:$0xff]
                  %246 = vst [vmem:[%s226 + $0x48] sm:$0xff] %v245
                  %v247 = vld [vmem:[%s225 + $0xa0] sm:$0xff]
                  %248 = vst [vmem:[%s226 + $0x50] sm:$0xff] %v247
                  %v249 = vld [vmem:[%s225 + $0xb0] sm:$0xff]
                  %250 = vst [vmem:[%s226 + $0x58] sm:$0xff] %v249
                  %v251 = vld [vmem:[%s225 + $0xc0] sm:$0xff]
                  %252 = vst [vmem:[%s226 + $0x60] sm:$0xff] %v251
                  %v253 = vld [vmem:[%s225 + $0xd0] sm:$0xff]
                  %254 = vst [vmem:[%s226 + $0x68] sm:$0xff] %v253
                  %v255 = vld [vmem:[%s225 + $0xe0] sm:$0xff]
                  %256 = vst [vmem:[%s226 + $0x70] sm:$0xff] %v255
                  %v257 = vld [vmem:[%s225 + $0xf0] sm:$0xff]
                  %258 = vst [vmem:[%s226 + $0x78] sm:$0xff] %v257
                  %v259 = vld [vmem:[%s225 + $0x100] sm:$0xff]
                  %260 = vst [vmem:[%s226 + $0x80] sm:$0xff] %v259
                  %v261 = vld [vmem:[%s225 + $0x110] sm:$0xff]
                  %262 = vst [vmem:[%s226 + $0x88] sm:$0xff] %v261
                $region56: #{resnet_forward.12} parent=50 // loop_footer
                  %s224 = sadd.s32 1, %s220
                $region57: #{resnet_forward.12} parent=50 // loop_footer_branch
                  %219 = sbr.rel target = $region53
                $region58: #{resnet_forward.12} parent=50 // loop_exit
                  _
              $region51: #{resnet_forward.12} parent=35 // pred_fallthru
                _
              // Predicated region
              $region59: #{resnet_forward.12} parent=35 // pred_check
                _
              $region60: #{resnet_forward.12} parent=35 // pred_check_branch
                %264 = sbr.rel target = $region62
              $region61: #{resnet_forward.12} parent=35 // pred_region
                _
              $region62: #{resnet_forward.12} parent=35 // pred_fallthru
                _
            $region36: #{resnet_forward.12} parent=31 // pred_fallthru
              _
            // Predicated region
            $region37: #{resnet_forward.12} parent=31 // pred_check
              _
            $region38: #{resnet_forward.12} parent=31 // pred_check_branch
              %170 = sbr.rel target = $region40
            $region39: #{resnet_forward.12} parent=31 // pred_region
              %s172 = ssub.s32 256, 1
              loop: start=0, step=1, limit=1
              $region41: #{resnet_forward.12} parent=39 // loop_pre_header
                _
              $region42: #{resnet_forward.12} parent=39 // loop_header
                %s174 = sphi 0, %s178
                %p175 = scmp.ge.s32.totalorder %s174, 1
                %s179 = sphi %s164, %s164
                %s180 = sphi %s161, %s161
              $region43: #{resnet_forward.12} parent=39 // loop_header_branch
                %177 = sbr.rel (%p175) target = $region47
              $region44: #{resnet_forward.12} parent=39 // loop_body
                %v181 = vld [vmem:[%s179] sm:%s172]
                %182 = vst [vmem:[%s180] sm:%s172] %v181
                %v183 = vld [vmem:[%s179 + $0x10] sm:%s172]
                %184 = vst [vmem:[%s180 + $0x8] sm:%s172] %v183
                %v185 = vld [vmem:[%s179 + $0x20] sm:%s172]
                %186 = vst [vmem:[%s180 + $0x10] sm:%s172] %v185
                %v187 = vld [vmem:[%s179 + $0x30] sm:%s172]
                %188 = vst [vmem:[%s180 + $0x18] sm:%s172] %v187
                %v189 = vld [vmem:[%s179 + $0x40] sm:%s172]
                %190 = vst [vmem:[%s180 + $0x20] sm:%s172] %v189
                %v191 = vld [vmem:[%s179 + $0x50] sm:%s172]
                %192 = vst [vmem:[%s180 + $0x28] sm:%s172] %v191
                %v193 = vld [vmem:[%s179 + $0x60] sm:%s172]
                %194 = vst [vmem:[%s180 + $0x30] sm:%s172] %v193
                %v195 = vld [vmem:[%s179 + $0x70] sm:%s172]
                %196 = vst [vmem:[%s180 + $0x38] sm:%s172] %v195
                %v197 = vld [vmem:[%s179 + $0x80] sm:%s172]
                %198 = vst [vmem:[%s180 + $0x40] sm:%s172] %v197
                %v199 = vld [vmem:[%s179 + $0x90] sm:%s172]
                %200 = vst [vmem:[%s180 + $0x48] sm:%s172] %v199
                %v201 = vld [vmem:[%s179 + $0xa0] sm:%s172]
                %202 = vst [vmem:[%s180 + $0x50] sm:%s172] %v201
                %v203 = vld [vmem:[%s179 + $0xb0] sm:%s172]
                %204 = vst [vmem:[%s180 + $0x58] sm:%s172] %v203
                %v205 = vld [vmem:[%s179 + $0xc0] sm:%s172]
                %206 = vst [vmem:[%s180 + $0x60] sm:%s172] %v205
                %v207 = vld [vmem:[%s179 + $0xd0] sm:%s172]
                %208 = vst [vmem:[%s180 + $0x68] sm:%s172] %v207
                %v209 = vld [vmem:[%s179 + $0xe0] sm:%s172]
                %210 = vst [vmem:[%s180 + $0x70] sm:%s172] %v209
                %v211 = vld [vmem:[%s179 + $0xf0] sm:%s172]
                %212 = vst [vmem:[%s180 + $0x78] sm:%s172] %v211
                %v213 = vld [vmem:[%s179 + $0x100] sm:%s172]
                %214 = vst [vmem:[%s180 + $0x80] sm:%s172] %v213
                %v215 = vld [vmem:[%s179 + $0x110] sm:%s172]
                %216 = vst [vmem:[%s180 + $0x88] sm:%s172] %v215
              $region45: #{resnet_forward.12} parent=39 // loop_footer
                %s178 = sadd.s32 1, %s174
              $region46: #{resnet_forward.12} parent=39 // loop_footer_branch
                %173 = sbr.rel target = $region42
              $region47: #{resnet_forward.12} parent=39 // loop_exit
                _
            $region40: #{resnet_forward.12} parent=31 // pred_fallthru
              _
          $region32: #{resnet_forward.12} parent=27 // pred_fallthru
            _
          %265 = vnop
        $region28: #{resnet_forward.12} parent=23 // pred_fallthru
          _
        // Predicated region
        $region63: #{resnet_forward.12} parent=23 // pred_check
          %p266 = pneg %p98
        $region64: #{resnet_forward.12} parent=23 // pred_check_branch
          %268 = sbr.rel (%p266) target = $region66
        $region65: #{resnet_forward.12} parent=23 // pred_region
          %s269 = sand.u32 %s88, 1
          %s270 = sand.u32 %s88, 1
          %s271 = smul.addr %s270, 16
          %s272 = scalar_lea.vmem [#allocation3], %s271
          %s273 = smul.u32 2, %s10
          %s274 = smul.addr %s273, 4
          %s275 = scalar_lea.vmem %s3, %s274
          // Predicated region
          $region67: #{resnet_forward.12} parent=65 // pred_check
            _
          $region68: #{resnet_forward.12} parent=65 // pred_check_branch
            %277 = sbr.rel (0) target = $region70
          $region69: #{resnet_forward.12} parent=65 // pred_region
            // Predicated region
            $region71: #{resnet_forward.12} parent=69 // pred_check
              _
            $region72: #{resnet_forward.12} parent=69 // pred_check_branch
              %279 = sbr.rel (0) target = $region74
            $region73: #{resnet_forward.12} parent=69 // pred_region
              // Predicated region
              $region86: #{resnet_forward.12} parent=73 // pred_check
                _
              $region87: #{resnet_forward.12} parent=73 // pred_check_branch
                %297 = sbr.rel (0) target = $region89
              $region88: #{resnet_forward.12} parent=73 // pred_region
                loop: start=0, step=1, limit=1
                $region90: #{resnet_forward.12} parent=88 // loop_pre_header
                  _
                $region91: #{resnet_forward.12} parent=88 // loop_header
                  %s299 = sphi 0, %s303
                  %p300 = scmp.ge.s32.totalorder %s299, 1
                  %s304 = sphi %s275, %s275
                  %s305 = sphi %s272, %s272
                $region92: #{resnet_forward.12} parent=88 // loop_header_branch
                  %302 = sbr.rel (%p300) target = $region96
                $region93: #{resnet_forward.12} parent=88 // loop_body
                  %v306 = vld [vmem:[%s304] sm:$0xff]
                  %307 = vst [vmem:[%s305] sm:$0xff] %v306
                  %v308 = vld [vmem:[%s304 + $0x10] sm:$0xff]
                  %309 = vst [vmem:[%s305 + $0x8] sm:$0xff] %v308
                $region94: #{resnet_forward.12} parent=88 // loop_footer
                  %s303 = sadd.s32 1, %s299
                $region95: #{resnet_forward.12} parent=88 // loop_footer_branch
                  %298 = sbr.rel target = $region91
                $region96: #{resnet_forward.12} parent=88 // loop_exit
                  _
              $region89: #{resnet_forward.12} parent=73 // pred_fallthru
                _
              // Predicated region
              $region97: #{resnet_forward.12} parent=73 // pred_check
                _
              $region98: #{resnet_forward.12} parent=73 // pred_check_branch
                %311 = sbr.rel target = $region100
              $region99: #{resnet_forward.12} parent=73 // pred_region
                _
              $region100: #{resnet_forward.12} parent=73 // pred_fallthru
                _
            $region74: #{resnet_forward.12} parent=69 // pred_fallthru
              _
            // Predicated region
            $region75: #{resnet_forward.12} parent=69 // pred_check
              _
            $region76: #{resnet_forward.12} parent=69 // pred_check_branch
              %281 = sbr.rel target = $region78
            $region77: #{resnet_forward.12} parent=69 // pred_region
              %s283 = ssub.s32 256, 1
              loop: start=0, step=1, limit=1
              $region79: #{resnet_forward.12} parent=77 // loop_pre_header
                _
              $region80: #{resnet_forward.12} parent=77 // loop_header
                %s285 = sphi 0, %s289
                %p286 = scmp.ge.s32.totalorder %s285, 1
                %s290 = sphi %s275, %s275
                %s291 = sphi %s272, %s272
              $region81: #{resnet_forward.12} parent=77 // loop_header_branch
                %288 = sbr.rel (%p286) target = $region85
              $region82: #{resnet_forward.12} parent=77 // loop_body
                %v292 = vld [vmem:[%s290] sm:%s283]
                %293 = vst [vmem:[%s291] sm:%s283] %v292
                %v294 = vld [vmem:[%s290 + $0x10] sm:%s283]
                %295 = vst [vmem:[%s291 + $0x8] sm:%s283] %v294
              $region83: #{resnet_forward.12} parent=77 // loop_footer
                %s289 = sadd.s32 1, %s285
              $region84: #{resnet_forward.12} parent=77 // loop_footer_branch
                %284 = sbr.rel target = $region80
              $region85: #{resnet_forward.12} parent=77 // loop_exit
                _
            $region78: #{resnet_forward.12} parent=69 // pred_fallthru
              _
          $region70: #{resnet_forward.12} parent=65 // pred_fallthru
            _
          %312 = vnop
        $region66: #{resnet_forward.12} parent=23 // pred_fallthru
          _
      $region24: #{resnet_forward.12} parent=5 // pred_fallthru
        _
      %p313 = scmp.le.s32.totalorder 1, %s10
      %p314 = scmp.lt.s32.totalorder %s10, 3
      %p315 = pnand %p313, %p314
      %p316 = pneg %p315
      // Predicated region
      $region101: #{resnet_forward.12} parent=5 // pred_check
        _
      $region102: #{resnet_forward.12} parent=5 // pred_check_branch
        %318 = sbr.rel (%p315) target = $region104
      $region103: #{resnet_forward.12} parent=5 // pred_region
        %s319 = ssub.s32 %s10, 1
        %s320 = sand.u32 %s23, 1
        %s321 = sand.u32 %s23, 1
        %s322 = smul.addr %s321, 144
        %s323 = scalar_lea.vmem [#allocation2], %s322
        // Predicated region
        $region105: #{resnet_forward.12} parent=103 // pred_check
          %p324 = pneg %p36
        $region106: #{resnet_forward.12} parent=103 // pred_check_branch
          %326 = sbr.rel (%p324) target = $region108
        $region107: #{resnet_forward.12} parent=103 // pred_region
          _
        $region108: #{resnet_forward.12} parent=103 // pred_fallthru
          _
        %s327 = sand.u32 %s91, 1
        %s328 = sand.u32 %s91, 1
        %s329 = smul.addr %s328, 16
        %s330 = scalar_lea.vmem [#allocation3], %s329
        // Predicated region
        $region109: #{resnet_forward.12} parent=103 // pred_check
          %p331 = pneg %p104
        $region110: #{resnet_forward.12} parent=103 // pred_check_branch
          %333 = sbr.rel (%p331) target = $region112
        $region111: #{resnet_forward.12} parent=103 // pred_region
          _
        $region112: #{resnet_forward.12} parent=103 // pred_fallthru
          _
        %s334 = sand.u32 %s23, 1
        %s335 = sand.u32 %s23, 1
        %s336 = smul.addr %s335, 144
        %s337 = scalar_lea.vmem [#allocation2], %s336
        %p338 = pneg %p36
        %p339 = pneg %p33
        %p340 = pneg %p57
        %p341 = pneg %p54
        %p342 = pneg %p78
        %p343 = pneg %p75
        %s344 = sand.u32 %s91, 1
        %s345 = sand.u32 %s91, 1
        %s346 = smul.addr %s345, 16
        %s347 = scalar_lea.vmem [#allocation3], %s346
        %p348 = pneg %p104
        %p349 = pneg %p101
        %p350 = pneg %p130
        %p351 = pneg %p127
        %s352 = sand.u32 %s117, 1
        %s353 = sand.u32 %s117, 1
        %s354 = smul.addr %s353, 16
        %s355 = scalar_lea.vmem [#allocation4], %s354
        %s356 = smul.u32 2, %s15
        %s357 = smul.u32 2, %s15
        %s358 = smul.u32 2, %s15
        %v360 = vld [vmem:[%s1] sm:$0xff]
        %v361 = vld [vmem:[%s1 + $0x8] sm:$0xff]
        %v362 = vld [vmem:[%s323] sm:$0xff]
        %v363 = vld [vmem:[%s323 + $0x8] sm:$0xff]
        %v364 = vld [vmem:[%s323 + $0x10] sm:$0xff]
        %v365 = vld [vmem:[%s323 + $0x18] sm:$0xff]
        %v366 = vld [vmem:[%s323 + $0x20] sm:$0xff]
        %v367 = vld [vmem:[%s323 + $0x28] sm:$0xff]
        %v368 = vld [vmem:[%s323 + $0x30] sm:$0xff]
        %v369 = vld [vmem:[%s323 + $0x38] sm:$0xff]
        %v370 = vld [vmem:[%s323 + $0x40] sm:$0xff]
        %v371 = vld [vmem:[%s323 + $0x48] sm:$0xff]
        %v372 = vld [vmem:[%s323 + $0x50] sm:$0xff]
        %v373 = vld [vmem:[%s323 + $0x58] sm:$0xff]
        %v374 = vld [vmem:[%s323 + $0x60] sm:$0xff]
        %v375 = vld [vmem:[%s323 + $0x68] sm:$0xff]
        %v376 = vld [vmem:[%s323 + $0x70] sm:$0xff]
        %v377 = vld [vmem:[%s323 + $0x78] sm:$0xff]
        %v378 = vld [vmem:[%s323 + $0x80] sm:$0xff]
        %v379 = vld [vmem:[%s323 + $0x88] sm:$0xff]
        %v380 = vld [vmem:[%s2] sm:$0xff]
        %v381 = vld [vmem:[%s2 + $0x8] sm:$0xff]
        %383 = vset.pattern.permute.xlu0 0
        %384 = vperm.xlu0 %383, %v380
        %v385 = vpop.permute.xlu0 %384
        %388 = vset.pattern.permute.xlu0 0
        %389 = vperm.xlu0 %388, %v381
        %v390 = vpop.permute.xlu0 %389
        %v394 = vunpack.c.l.b16 %v360
        %v395 = vunpack.c.h.b16 %v360
        %v396 = vunpack.c.l.b16 %v361
        %v397 = vunpack.c.h.b16 %v361
        %v398 = vpack.c.b16 %v396, %v394
        %v399 = vpack.c.b16 %v397, %v395
        %v419 = vunpack.c.l.b16 %v362
        %v420 = vunpack.c.h.b16 %v362
        %v421 = vunpack.c.l.b16 %v363
        %v422 = vunpack.c.h.b16 %v363
        %v423 = vunpack.c.l.b16 %v364
        %v424 = vunpack.c.h.b16 %v364
        %v425 = vunpack.c.l.b16 %v365
        %v426 = vunpack.c.h.b16 %v365
        %v427 = vunpack.c.l.b16 %v366
        %v428 = vunpack.c.h.b16 %v366
        %v429 = vunpack.c.l.b16 %v367
        %v430 = vunpack.c.h.b16 %v367
        %v431 = vunpack.c.l.b16 %v368
        %v432 = vunpack.c.h.b16 %v368
        %v433 = vunpack.c.l.b16 %v369
        %v434 = vunpack.c.h.b16 %v369
        %v435 = vunpack.c.l.b16 %v370
        %v436 = vunpack.c.h.b16 %v370
        %v437 = vunpack.c.l.b16 %v371
        %v438 = vunpack.c.h.b16 %v371
        %v439 = vunpack.c.l.b16 %v372
        %v440 = vunpack.c.h.b16 %v372
        %v441 = vunpack.c.l.b16 %v373
        %v442 = vunpack.c.h.b16 %v373
        %v443 = vunpack.c.l.b16 %v374
        %v444 = vunpack.c.h.b16 %v374
        %v445 = vunpack.c.l.b16 %v375
        %v446 = vunpack.c.h.b16 %v375
        %v447 = vunpack.c.l.b16 %v376
        %v448 = vunpack.c.h.b16 %v376
        %v449 = vunpack.c.l.b16 %v377
        %v450 = vunpack.c.h.b16 %v377
        %v451 = vunpack.c.l.b16 %v378
        %v452 = vunpack.c.h.b16 %v378
        %v453 = vunpack.c.l.b16 %v379
        %v454 = vunpack.c.h.b16 %v379
        %v455 = vpack.c.b16 %v421, %v419
        %v456 = vpack.c.b16 %v422, %v420
        %v457 = vpack.c.b16 %v425, %v423
        %v458 = vpack.c.b16 %v426, %v424
        %v459 = vpack.c.b16 %v429, %v427
        %v460 = vpack.c.b16 %v430, %v428
        %v461 = vpack.c.b16 %v433, %v431
        %v462 = vpack.c.b16 %v434, %v432
        %v463 = vpack.c.b16 %v437, %v435
        %v464 = vpack.c.b16 %v438, %v436
        %v465 = vpack.c.b16 %v441, %v439
        %v466 = vpack.c.b16 %v442, %v440
        %v467 = vpack.c.b16 %v445, %v443
        %v468 = vpack.c.b16 %v446, %v444
        %v469 = vpack.c.b16 %v449, %v447
        %v470 = vpack.c.b16 %v450, %v448
        %v471 = vpack.c.b16 %v453, %v451
        %v472 = vpack.c.b16 %v454, %v452
        %vm491 = vcmask 130048
        %v493 = vsel %vm491, %v399, 0
        %495 = vmatpush.bf16.msra.mxu0 %v469
        %496 = vmatpush.bf16.msra.mxu0 %v467
        %497 = vmatpush.bf16.msra.mxu0 %v465
        %498 = vmatpush.bf16.msra.mxu0 %v463
        %499 = vmatpush.bf16.msra.mxu0 %v461
        %500 = vmatpush.bf16.msra.mxu0 %v459
        %501 = vmatpush.bf16.msra.mxu0 %v457
        %502 = vmatpush.bf16.msra.mxu0 %v455
        %503 = vmatmul.bf16.gmra.mxu0 %v398
        %v504 = vpop.f32.mrf.mxu0
        %v505 = vadd.f32 %v385, %v504
        %v506 = vpop.f32.mrf.mxu0
        %v507 = vadd.f32 %v390, %v506
        %508 = vdwg.mxu0
        %509 = vmatpush.bf16.msra.mxu0 0
        %510 = vmatpush.bf16.msra.mxu0 0
        %511 = vmatpush.bf16.msra.mxu0 0
        %512 = vmatpush.bf16.msra.mxu0 0
        %513 = vmatpush.bf16.msra.mxu0 0
        %514 = vmatpush.bf16.msra.mxu0 0
        %515 = vmatpush.bf16.msra.mxu0 0
        %516 = vmatpush.bf16.msra.mxu0 %v471
        %517 = vmatmul.bf16.gmra.mxu0 %v493
        %v518 = vpop.f32.mrf.mxu0
        %v519 = vadd.f32 %v505, %v518
        %v520 = vpop.f32.mrf.mxu0
        %v521 = vadd.f32 %v507, %v520
        %522 = vdwg.mxu0
        %523 = vmatpush.bf16.msra.mxu0 %v470
        %524 = vmatpush.bf16.msra.mxu0 %v468
        %525 = vmatpush.bf16.msra.mxu0 %v466
        %526 = vmatpush.bf16.msra.mxu0 %v464
        %527 = vmatpush.bf16.msra.mxu0 %v462
        %528 = vmatpush.bf16.msra.mxu0 %v460
        %529 = vmatpush.bf16.msra.mxu0 %v458
        %530 = vmatpush.bf16.msra.mxu0 %v456
        %531 = vmatmul.bf16.gmra.mxu0 %v398
        %v532 = vpop.f32.mrf.mxu0
        %v533 = vadd.f32 %v385, %v532
        %v534 = vpop.f32.mrf.mxu0
        %v535 = vadd.f32 %v390, %v534
        %536 = vdwg.mxu0
        %537 = vmatpush.bf16.msra.mxu0 0
        %538 = vmatpush.bf16.msra.mxu0 0
        %539 = vmatpush.bf16.msra.mxu0 0
        %540 = vmatpush.bf16.msra.mxu0 0
        %541 = vmatpush.bf16.msra.mxu0 0
        %542 = vmatpush.bf16.msra.mxu0 0
        %543 = vmatpush.bf16.msra.mxu0 0
        %544 = vmatpush.bf16.msra.mxu0 %v472
        %545 = vmatmul.bf16.gmra.mxu0 %v493
        %v546 = vpop.f32.mrf.mxu0
        %v547 = vadd.f32 %v533, %v546
        %v548 = vpop.f32.mrf.mxu0
        %v549 = vadd.f32 %v535, %v548
        %550 = vdwg.mxu0
        %v551 = vld [vmem:[%s330] sm:$0xff]
        %v552 = vld [vmem:[%s330 + $0x8] sm:$0xff]
        %v553 = vunpack.c.l.bf16 %v551
        %v554 = vunpack.c.h.bf16 %v551
        %v555 = vunpack.c.l.bf16 %v552
        %v556 = vunpack.c.h.bf16 %v552
        %v557 = vadd.f32 %v519, %v553
        %v558 = vadd.f32 %v547, %v554
        %v559 = vadd.f32 %v521, %v555
        %v560 = vadd.f32 %v549, %v556
        %v561 = vmax.f32 %v557, 0.0
        %v562 = vmax.f32 %v558, 0.0
        %v563 = vmax.f32 %v559, 0.0
        %v564 = vmax.f32 %v560, 0.0
        %v565 = vpack.c.bf16 %v562, %v561
        %v566 = vpack.c.bf16 %v564, %v563
        %567 = vst [vmem:[%s355] sm:$0xff] %v565
        %568 = vst [vmem:[%s355 + $0x8] sm:$0xff] %v566
        %s569 = sand.u32 %s117, 1
        %s570 = sand.u32 %s117, 1
        %s571 = smul.addr %s570, 16
        %s572 = scalar_lea.vmem [#allocation4], %s571
        // Predicated region
        $region113: #{resnet_forward.12} parent=103 // pred_check
          %p573 = pneg %p127
        $region114: #{resnet_forward.12} parent=103 // pred_check_branch
          %575 = sbr.rel (%p573) target = $region116
        $region115: #{resnet_forward.12} parent=103 // pred_region
          %s576 = smul.u32 2, %s15
          %s577 = smul.addr %s576, 4
          %s578 = scalar_lea.vmem %s4, %s577
          // Predicated region
          $region117: #{resnet_forward.12} parent=115 // pred_check
            _
          $region118: #{resnet_forward.12} parent=115 // pred_check_branch
            %580 = sbr.rel (0) target = $region120
          $region119: #{resnet_forward.12} parent=115 // pred_region
            // Predicated region
            $region121: #{resnet_forward.12} parent=119 // pred_check
              _
            $region122: #{resnet_forward.12} parent=119 // pred_check_branch
              %582 = sbr.rel (0) target = $region124
            $region123: #{resnet_forward.12} parent=119 // pred_region
              // Predicated region
              $region136: #{resnet_forward.12} parent=123 // pred_check
                _
              $region137: #{resnet_forward.12} parent=123 // pred_check_branch
                %600 = sbr.rel (0) target = $region139
              $region138: #{resnet_forward.12} parent=123 // pred_region
                loop: start=0, step=1, limit=1
                $region140: #{resnet_forward.12} parent=138 // loop_pre_header
                  _
                $region141: #{resnet_forward.12} parent=138 // loop_header
                  %s602 = sphi 0, %s606
                  %p603 = scmp.ge.s32.totalorder %s602, 1
                  %s607 = sphi %s572, %s572
                  %s608 = sphi %s578, %s578
                $region142: #{resnet_forward.12} parent=138 // loop_header_branch
                  %605 = sbr.rel (%p603) target = $region146
                $region143: #{resnet_forward.12} parent=138 // loop_body
                  %v609 = vld [vmem:[%s607] sm:$0xff]
                  %610 = vst [vmem:[%s608] sm:$0xff] %v609
                  %v611 = vld [vmem:[%s607 + $0x8] sm:$0xff]
                  %612 = vst [vmem:[%s608 + $0x10] sm:$0xff] %v611
                $region144: #{resnet_forward.12} parent=138 // loop_footer
                  %s606 = sadd.s32 1, %s602
                $region145: #{resnet_forward.12} parent=138 // loop_footer_branch
                  %601 = sbr.rel target = $region141
                $region146: #{resnet_forward.12} parent=138 // loop_exit
                  _
              $region139: #{resnet_forward.12} parent=123 // pred_fallthru
                _
              // Predicated region
              $region147: #{resnet_forward.12} parent=123 // pred_check
                _
              $region148: #{resnet_forward.12} parent=123 // pred_check_branch
                %614 = sbr.rel target = $region150
              $region149: #{resnet_forward.12} parent=123 // pred_region
                _
              $region150: #{resnet_forward.12} parent=123 // pred_fallthru
                _
            $region124: #{resnet_forward.12} parent=119 // pred_fallthru
              _
            // Predicated region
            $region125: #{resnet_forward.12} parent=119 // pred_check
              _
            $region126: #{resnet_forward.12} parent=119 // pred_check_branch
              %584 = sbr.rel target = $region128
            $region127: #{resnet_forward.12} parent=119 // pred_region
              %s586 = ssub.s32 256, 1
              loop: start=0, step=1, limit=1
              $region129: #{resnet_forward.12} parent=127 // loop_pre_header
                _
              $region130: #{resnet_forward.12} parent=127 // loop_header
                %s588 = sphi 0, %s592
                %p589 = scmp.ge.s32.totalorder %s588, 1
                %s593 = sphi %s572, %s572
                %s594 = sphi %s578, %s578
              $region131: #{resnet_forward.12} parent=127 // loop_header_branch
                %591 = sbr.rel (%p589) target = $region135
              $region132: #{resnet_forward.12} parent=127 // loop_body
                %v595 = vld [vmem:[%s593] sm:%s586]
                %596 = vst [vmem:[%s594] sm:%s586] %v595
                %v597 = vld [vmem:[%s593 + $0x8] sm:%s586]
                %598 = vst [vmem:[%s594 + $0x10] sm:%s586] %v597
              $region133: #{resnet_forward.12} parent=127 // loop_footer
                %s592 = sadd.s32 1, %s588
              $region134: #{resnet_forward.12} parent=127 // loop_footer_branch
                %587 = sbr.rel target = $region130
              $region135: #{resnet_forward.12} parent=127 // loop_exit
                _
            $region128: #{resnet_forward.12} parent=119 // pred_fallthru
              _
          $region120: #{resnet_forward.12} parent=115 // pred_fallthru
            _
          %615 = vnop
        $region116: #{resnet_forward.12} parent=103 // pred_fallthru
          _
      $region104: #{resnet_forward.12} parent=5 // pred_fallthru
        _
      %p616 = scmp.le.s32.totalorder 2, %s10
      // Predicated region
      $region151: #{resnet_forward.12} parent=5 // pred_check
        %p617 = pneg %p616
      $region152: #{resnet_forward.12} parent=5 // pred_check_branch
        %619 = sbr.rel (%p617) target = $region154
      $region153: #{resnet_forward.12} parent=5 // pred_region
        %s620 = ssub.s32 %s10, 2
        // Predicated region
        $region155: #{resnet_forward.12} parent=153 // pred_check
          %p621 = pneg %p133
        $region156: #{resnet_forward.12} parent=153 // pred_check_branch
          %623 = sbr.rel (%p621) target = $region158
        $region157: #{resnet_forward.12} parent=153 // pred_region
          %s624 = sand.u32 %s118, 1
          %s625 = sand.u32 %s118, 1
          %s626 = smul.addr %s625, 16
          %s627 = scalar_lea.vmem [#allocation4], %s626
        $region158: #{resnet_forward.12} parent=153 // pred_fallthru
          _
      $region154: #{resnet_forward.12} parent=5 // pred_fallthru
        _
    $region6: #{resnet_forward.12} parent=1 // loop_footer
      %s14 = sadd.s32 1, %s10
    $region7: #{resnet_forward.12} parent=1 // loop_footer_branch
      %9 = sbr.rel target = $region3
    $region8: #{resnet_forward.12} parent=1 // loop_exit
      _

// kernel: resnet_forward.13
$region0: #{resnet_forward.13}
  #allocation0 [shape = 'u32[]', space=smem, size = 0x4, offset = 0x4, fixed_abs, tag = 'smem constant byte address 0x4 - core index']
  #allocation1 [shape = 'u32[72,128]{1,0:T(1,128)}', space=vmem, size = 0x9000, scoped, tag = 'internal scratch']
  %s0 = inlined_call_operand.vmem [shape: bf16[144,128], index: 0, kind: input, shape index: {}]
  %s1 = inlined_call_operand.vmem [shape: bf16[32,144], index: 1, kind: input, shape index: {}]
  %s2 = inlined_call_operand.vmem [shape: f32[32,1], index: 2, kind: input, shape index: {}]
  %s3 = inlined_call_operand.vmem [shape: bf16[32,16], index: 3, kind: input, shape index: {}]
  %s4 = inlined_call_operand.vmem [shape: f32[32,1], index: 4, kind: input, shape index: {}]
  %s5 = inlined_call_operand.vmem [shape: bf16[32,128], index: 5, kind: output, shape index: {0}]
  %s6 = inlined_call_operand.vmem [shape: bf16[32,128], index: 6, kind: output, shape index: {1}]
  %7 = xla_tuple %s5, %s6
  %s8 = sld [smem:[#allocation0]]
  $region38: #{resnet_forward.13} parent=0
    _
  %s10 = ssub.s32 1, %s8
  %s11 = scalar_select 0, %s10, %s8
  // Predicated region
  $region2: #{resnet_forward.13} parent=0 // pred_check
    _
  $region3: #{resnet_forward.13} parent=0 // pred_check_branch
    %13 = sbr.rel (0) target = $region5
  $region4: #{resnet_forward.13} parent=0 // pred_region
    _
  $region5: #{resnet_forward.13} parent=0 // pred_fallthru
    _
  // Predicated region
  $region6: #{resnet_forward.13} parent=0 // pred_check
    _
  $region7: #{resnet_forward.13} parent=0 // pred_check_branch
    %15 = sbr.rel (0) target = $region9
  $region8: #{resnet_forward.13} parent=0 // pred_region
    _
  $region9: #{resnet_forward.13} parent=0 // pred_fallthru
    _
  // Predicated region
  $region10: #{resnet_forward.13} parent=0 // pred_check
    _
  $region11: #{resnet_forward.13} parent=0 // pred_check_branch
    %17 = sbr.rel (0) target = $region13
  $region12: #{resnet_forward.13} parent=0 // pred_region
    _
  $region13: #{resnet_forward.13} parent=0 // pred_fallthru
    _
  // Predicated region
  $region14: #{resnet_forward.13} parent=0 // pred_check
    _
  $region15: #{resnet_forward.13} parent=0 // pred_check_branch
    %19 = sbr.rel (0) target = $region17
  $region16: #{resnet_forward.13} parent=0 // pred_region
    _
  $region17: #{resnet_forward.13} parent=0 // pred_fallthru
    _
  // Predicated region
  $region18: #{resnet_forward.13} parent=0 // pred_check
    _
  $region19: #{resnet_forward.13} parent=0 // pred_check_branch
    %21 = sbr.rel (0) target = $region21
  $region20: #{resnet_forward.13} parent=0 // pred_region
    _
  $region21: #{resnet_forward.13} parent=0 // pred_fallthru
    _
  %v23 = vld [vmem:[%s1] sm:$0xff]
  %v24 = vld [vmem:[%s1 + $0x8] sm:$0xff]
  %v25 = vld [vmem:[%s1 + $0x10] sm:$0xff]
  %v26 = vld [vmem:[%s1 + $0x18] sm:$0xff]
  %v27 = vld [vmem:[%s0] sm:$0xf]
  %v28 = vld [vmem:[%s0 + $0x4] sm:$0xf]
  %v29 = vld [vmem:[%s0 + $0x8] sm:$0xf]
  %v30 = vld [vmem:[%s0 + $0xc] sm:$0xf]
  %v31 = vld [vmem:[%s0 + $0x10] sm:$0xf]
  %v32 = vld [vmem:[%s0 + $0x14] sm:$0xf]
  %v33 = vld [vmem:[%s0 + $0x18] sm:$0xf]
  %v34 = vld [vmem:[%s0 + $0x1c] sm:$0xf]
  %v35 = vld [vmem:[%s0 + $0x20] sm:$0xf]
  %v36 = vld [vmem:[%s0 + $0x24] sm:$0xf]
  %v37 = vld [vmem:[%s0 + $0x28] sm:$0xf]
  %v38 = vld [vmem:[%s0 + $0x2c] sm:$0xf]
  %v39 = vld [vmem:[%s0 + $0x30] sm:$0xf]
  %v40 = vld [vmem:[%s0 + $0x34] sm:$0xf]
  %v41 = vld [vmem:[%s0 + $0x38] sm:$0xf]
  %v42 = vld [vmem:[%s0 + $0x3c] sm:$0xf]
  %v43 = vld [vmem:[%s0 + $0x40] sm:$0xf]
  %v44 = vld [vmem:[%s0 + $0x44] sm:$0xf]
  %v45 = vld [vmem:[%s2] sm:$0xff]
  %v46 = vld [vmem:[%s2 + $0x8] sm:$0xff]
  %v47 = vld [vmem:[%s2 + $0x10] sm:$0xff]
  %v48 = vld [vmem:[%s2 + $0x18] sm:$0xff]
  %50 = vset.pattern.permute.xlu0 0
  %51 = vperm.xlu0 %50, %v45
  %v52 = vpop.permute.xlu0 %51
  %55 = vset.pattern.permute.xlu0 0
  %56 = vperm.xlu0 %55, %v46
  %v57 = vpop.permute.xlu0 %56
  %60 = vset.pattern.permute.xlu0 0
  %61 = vperm.xlu0 %60, %v47
  %v62 = vpop.permute.xlu0 %61
  %65 = vset.pattern.permute.xlu0 0
  %66 = vperm.xlu0 %65, %v48
  %v67 = vpop.permute.xlu0 %66
  %v73 = vunpack.c.l.b16 %v23
  %v74 = vunpack.c.h.b16 %v23
  %v75 = vunpack.c.l.b16 %v24
  %v76 = vunpack.c.h.b16 %v24
  %v77 = vunpack.c.l.b16 %v25
  %v78 = vunpack.c.h.b16 %v25
  %v79 = vunpack.c.l.b16 %v26
  %v80 = vunpack.c.h.b16 %v26
  %v81 = vpack.c.b16 %v75, %v73
  %v82 = vpack.c.b16 %v76, %v74
  %v83 = vpack.c.b16 %v79, %v77
  %v84 = vpack.c.b16 %v80, %v78
  %v105 = vunpack.c.l.b16 %v27
  %v106 = vunpack.c.l.b16 %v28
  %v107 = vunpack.c.l.b16 %v29
  %v108 = vunpack.c.l.b16 %v30
  %v109 = vunpack.c.l.b16 %v31
  %v110 = vunpack.c.l.b16 %v32
  %v111 = vunpack.c.l.b16 %v33
  %v112 = vunpack.c.l.b16 %v34
  %v113 = vunpack.c.l.b16 %v35
  %v114 = vunpack.c.l.b16 %v36
  %v115 = vunpack.c.l.b16 %v37
  %v116 = vunpack.c.l.b16 %v38
  %v117 = vunpack.c.l.b16 %v39
  %v118 = vunpack.c.l.b16 %v40
  %v119 = vunpack.c.l.b16 %v41
  %v120 = vunpack.c.l.b16 %v42
  %v121 = vunpack.c.l.b16 %v43
  %v122 = vunpack.c.l.b16 %v44
  %v123 = vpack.c.b16 %v106, %v105
  %v124 = vpack.c.b16 %v108, %v107
  %v125 = vpack.c.b16 %v110, %v109
  %v126 = vpack.c.b16 %v112, %v111
  %v127 = vpack.c.b16 %v114, %v113
  %v128 = vpack.c.b16 %v116, %v115
  %v129 = vpack.c.b16 %v118, %v117
  %v130 = vpack.c.b16 %v120, %v119
  %v131 = vpack.c.b16 %v122, %v121
  %vm141 = vcmask 130048
  %v143 = vsel %vm141, %v82, 0
  %v146 = vsel %vm141, %v84, 0
  %148 = vmatpush.bf16.msra.mxu0 %v130
  %149 = vmatpush.bf16.msra.mxu0 %v129
  %150 = vmatpush.bf16.msra.mxu0 %v128
  %151 = vmatpush.bf16.msra.mxu0 %v127
  %152 = vmatpush.bf16.msra.mxu0 %v126
  %153 = vmatpush.bf16.msra.mxu0 %v125
  %154 = vmatpush.bf16.msra.mxu0 %v124
  %155 = vmatpush.bf16.msra.mxu0 %v123
  %156 = vmatmul.bf16.gmra.mxu0 %v81
  %v157 = vpop.f32.mrf.mxu0
  %v158 = vadd.f32 %v52, %v157
  %v159 = vpop.f32.mrf.mxu0
  %v160 = vadd.f32 %v57, %v159
  %161 = vmatmul.bf16.gmra.mxu0 %v83
  %v162 = vpop.f32.mrf.mxu0
  %v163 = vadd.f32 %v62, %v162
  %v164 = vpop.f32.mrf.mxu0
  %v165 = vadd.f32 %v67, %v164
  %166 = vdwg.mxu0
  %167 = vmatpush.bf16.msra.mxu0 0
  %168 = vmatpush.bf16.msra.mxu0 0
  %169 = vmatpush.bf16.msra.mxu0 0
  %170 = vmatpush.bf16.msra.mxu0 0
  %171 = vmatpush.bf16.msra.mxu0 0
  %172 = vmatpush.bf16.msra.mxu0 0
  %173 = vmatpush.bf16.msra.mxu0 0
  %174 = vmatpush.bf16.msra.mxu0 %v131
  %175 = vmatmul.bf16.gmra.mxu0 %v143
  %v176 = vpop.f32.mrf.mxu0
  %v177 = vadd.f32 %v158, %v176
  %v178 = vpop.f32.mrf.mxu0
  %v179 = vadd.f32 %v160, %v178
  %180 = vmatmul.bf16.gmra.mxu0 %v146
  %v181 = vpop.f32.mrf.mxu0
  %v182 = vadd.f32 %v163, %v181
  %v183 = vpop.f32.mrf.mxu0
  %v184 = vadd.f32 %v165, %v183
  %185 = vdwg.mxu0
  %v186 = vmax.f32 %v177, 0.0
  %v187 = vmax.f32 %v179, 0.0
  %v188 = vmax.f32 %v182, 0.0
  %v189 = vmax.f32 %v184, 0.0
  %v190 = vpack.c.bf16 %v186, %v186
  %v191 = vpack.c.bf16 %v187, %v187
  %v192 = vpack.c.bf16 %v188, %v188
  %v193 = vpack.c.bf16 %v189, %v189
  %194 = vst [vmem:[%s5] sm:$0xf] %v190
  %195 = vst [vmem:[%s5 + $0x4] sm:$0xf] %v191
  %196 = vst [vmem:[%s5 + $0x8] sm:$0xf] %v192
  %197 = vst [vmem:[%s5 + $0xc] sm:$0xf] %v193
  %v198 = vld [vmem:[%s0 + $0x20] sm:$0xf]
  %v199 = vld [vmem:[%s0 + $0x24] sm:$0xf]
  %v200 = vld [vmem:[%s3] sm:$0xf]
  %v201 = vld [vmem:[%s3 + $0x4] sm:$0xf]
  %v202 = vld [vmem:[%s3 + $0x8] sm:$0xf]
  %v203 = vld [vmem:[%s3 + $0xc] sm:$0xf]
  %v204 = vld [vmem:[%s4] sm:$0xff]
  %v205 = vld [vmem:[%s4 + $0x8] sm:$0xff]
  %v206 = vld [vmem:[%s4 + $0x10] sm:$0xff]
  %v207 = vld [vmem:[%s4 + $0x18] sm:$0xff]
  %209 = vset.pattern.permute.xlu0 0
  %210 = vperm.xlu0 %209, %v204
  %v211 = vpop.permute.xlu0 %210
  %214 = vset.pattern.permute.xlu0 0
  %215 = vperm.xlu0 %214, %v205
  %v216 = vpop.permute.xlu0 %215
  %219 = vset.pattern.permute.xlu0 0
  %220 = vperm.xlu0 %219, %v206
  %v221 = vpop.permute.xlu0 %220
  %224 = vset.pattern.permute.xlu0 0
  %225 = vperm.xlu0 %224, %v207
  %v226 = vpop.permute.xlu0 %225
  %v232 = vunpack.c.l.b16 %v200
  %v233 = vunpack.c.l.b16 %v201
  %v234 = vunpack.c.l.b16 %v202
  %v235 = vunpack.c.l.b16 %v203
  %v236 = vpack.c.b16 %v233, %v232
  %v237 = vpack.c.b16 %v235, %v234
  %v240 = vunpack.c.l.b16 %v198
  %v241 = vunpack.c.l.b16 %v199
  %v242 = vpack.c.b16 %v241, %v240
  %v245 = vsel %vm141, %v236, 0
  %v248 = vsel %vm141, %v237, 0
  %250 = vmatpush.bf16.msra.mxu0 0
  %251 = vmatpush.bf16.msra.mxu0 0
  %252 = vmatpush.bf16.msra.mxu0 0
  %253 = vmatpush.bf16.msra.mxu0 0
  %254 = vmatpush.bf16.msra.mxu0 0
  %255 = vmatpush.bf16.msra.mxu0 0
  %256 = vmatpush.bf16.msra.mxu0 0
  %257 = vmatpush.bf16.msra.mxu0 %v242
  %258 = vmatmul.bf16.gmra.mxu0 %v245
  %v259 = vpop.f32.mrf.mxu0
  %v260 = vadd.f32 %v211, %v259
  %v261 = vpop.f32.mrf.mxu0
  %v262 = vadd.f32 %v216, %v261
  %263 = vmatmul.bf16.gmra.mxu0 %v248
  %v264 = vpop.f32.mrf.mxu0
  %v265 = vadd.f32 %v221, %v264
  %v266 = vpop.f32.mrf.mxu0
  %v267 = vadd.f32 %v226, %v266
  %268 = vdwg.mxu0
  %v269 = vpack.c.bf16 %v260, %v260
  %v270 = vpack.c.bf16 %v262, %v262
  %v271 = vpack.c.bf16 %v265, %v265
  %v272 = vpack.c.bf16 %v267, %v267
  %273 = vst [vmem:[%s6] sm:$0xf] %v269
  %274 = vst [vmem:[%s6 + $0x4] sm:$0xf] %v270
  %275 = vst [vmem:[%s6 + $0x8] sm:$0xf] %v271
  %276 = vst [vmem:[%s6 + $0xc] sm:$0xf] %v272
  // Predicated region
  $region22: #{resnet_forward.13} parent=0 // pred_check
    _
  $region23: #{resnet_forward.13} parent=0 // pred_check_branch
    %278 = sbr.rel (0) target = $region25
  $region24: #{resnet_forward.13} parent=0 // pred_region
    _
  $region25: #{resnet_forward.13} parent=0 // pred_fallthru
    _
  // Predicated region
  $region26: #{resnet_forward.13} parent=0 // pred_check
    _
  $region27: #{resnet_forward.13} parent=0 // pred_check_branch
    %280 = sbr.rel (0) target = $region29
  $region28: #{resnet_forward.13} parent=0 // pred_region
    _
  $region29: #{resnet_forward.13} parent=0 // pred_fallthru
    _
  // Predicated region
  $region30: #{resnet_forward.13} parent=0 // pred_check
    _
  $region31: #{resnet_forward.13} parent=0 // pred_check_branch
    %282 = sbr.rel (0) target = $region33
  $region32: #{resnet_forward.13} parent=0 // pred_region
    _
  $region33: #{resnet_forward.13} parent=0 // pred_fallthru
    _
  // Predicated region
  $region34: #{resnet_forward.13} parent=0 // pred_check
    _
  $region35: #{resnet_forward.13} parent=0 // pred_check_branch
    %284 = sbr.rel (0) target = $region37
  $region36: #{resnet_forward.13} parent=0 // pred_region
    _
  $region37: #{resnet_forward.13} parent=0 // pred_fallthru
    _

// kernel: resnet_forward.14
$region0: #{resnet_forward.14}
  #allocation0 [shape = 'u32[]', space=smem, size = 0x4, offset = 0x4, fixed_abs, tag = 'smem constant byte address 0x4 - core index']
  #allocation1 [shape = 'u32[72,128]{1,0:T(1,128)}', space=vmem, size = 0x9000, scoped, tag = 'internal scratch']
  %s0 = inlined_call_operand.vmem [shape: bf16[288,128], index: 0, kind: input, shape index: {}]
  %s1 = inlined_call_operand.vmem [shape: bf16[32,288], index: 1, kind: input, shape index: {}]
  %s2 = inlined_call_operand.vmem [shape: f32[32,1], index: 2, kind: input, shape index: {}]
  %s3 = inlined_call_operand.vmem [shape: bf16[32,128], index: 3, kind: input, shape index: {}]
  %s4 = inlined_call_operand.vmem [shape: bf16[32,128], index: 4, kind: output, shape index: {}]
  %s5 = sld [smem:[#allocation0]]
  $region26: #{resnet_forward.14} parent=0
    _
  %s7 = ssub.s32 1, %s5
  %s8 = scalar_select 0, %s7, %s5
  // Predicated region
  $region2: #{resnet_forward.14} parent=0 // pred_check
    _
  $region3: #{resnet_forward.14} parent=0 // pred_check_branch
    %10 = sbr.rel (0) target = $region5
  $region4: #{resnet_forward.14} parent=0 // pred_region
    _
  $region5: #{resnet_forward.14} parent=0 // pred_fallthru
    _
  // Predicated region
  $region6: #{resnet_forward.14} parent=0 // pred_check
    _
  $region7: #{resnet_forward.14} parent=0 // pred_check_branch
    %12 = sbr.rel (0) target = $region9
  $region8: #{resnet_forward.14} parent=0 // pred_region
    _
  $region9: #{resnet_forward.14} parent=0 // pred_fallthru
    _
  // Predicated region
  $region10: #{resnet_forward.14} parent=0 // pred_check
    _
  $region11: #{resnet_forward.14} parent=0 // pred_check_branch
    %14 = sbr.rel (0) target = $region13
  $region12: #{resnet_forward.14} parent=0 // pred_region
    _
  $region13: #{resnet_forward.14} parent=0 // pred_fallthru
    _
  // Predicated region
  $region14: #{resnet_forward.14} parent=0 // pred_check
    _
  $region15: #{resnet_forward.14} parent=0 // pred_check_branch
    %16 = sbr.rel (0) target = $region17
  $region16: #{resnet_forward.14} parent=0 // pred_region
    _
  $region17: #{resnet_forward.14} parent=0 // pred_fallthru
    _
  %v18 = vld [vmem:[%s1] sm:$0xff]
  %v19 = vld [vmem:[%s1 + $0x8] sm:$0xf]
  %v20 = vld [vmem:[%s1 + $0xc] sm:$0xff]
  %v21 = vld [vmem:[%s1 + $0x14] sm:$0xf]
  %v22 = vld [vmem:[%s1 + $0x18] sm:$0xff]
  %v23 = vld [vmem:[%s1 + $0x20] sm:$0xf]
  %v24 = vld [vmem:[%s1 + $0x24] sm:$0xff]
  %v25 = vld [vmem:[%s1 + $0x2c] sm:$0xf]
  %v26 = vld [vmem:[%s0] sm:$0xf]
  %v27 = vld [vmem:[%s0 + $0x4] sm:$0xf]
  %v28 = vld [vmem:[%s0 + $0x8] sm:$0xf]
  %v29 = vld [vmem:[%s0 + $0xc] sm:$0xf]
  %v30 = vld [vmem:[%s0 + $0x10] sm:$0xf]
  %v31 = vld [vmem:[%s0 + $0x14] sm:$0xf]
  %v32 = vld [vmem:[%s0 + $0x18] sm:$0xf]
  %v33 = vld [vmem:[%s0 + $0x1c] sm:$0xf]
  %v34 = vld [vmem:[%s0 + $0x20] sm:$0xf]
  %v35 = vld [vmem:[%s0 + $0x24] sm:$0xf]
  %v36 = vld [vmem:[%s0 + $0x28] sm:$0xf]
  %v37 = vld [vmem:[%s0 + $0x2c] sm:$0xf]
  %v38 = vld [vmem:[%s0 + $0x30] sm:$0xf]
  %v39 = vld [vmem:[%s0 + $0x34] sm:$0xf]
  %v40 = vld [vmem:[%s0 + $0x38] sm:$0xf]
  %v41 = vld [vmem:[%s0 + $0x3c] sm:$0xf]
  %v42 = vld [vmem:[%s0 + $0x40] sm:$0xf]
  %v43 = vld [vmem:[%s0 + $0x44] sm:$0xf]
  %v44 = vld [vmem:[%s0 + $0x48] sm:$0xf]
  %v45 = vld [vmem:[%s0 + $0x4c] sm:$0xf]
  %v46 = vld [vmem:[%s0 + $0x50] sm:$0xf]
  %v47 = vld [vmem:[%s0 + $0x54] sm:$0xf]
  %v48 = vld [vmem:[%s0 + $0x58] sm:$0xf]
  %v49 = vld [vmem:[%s0 + $0x5c] sm:$0xf]
  %v50 = vld [vmem:[%s0 + $0x60] sm:$0xf]
  %v51 = vld [vmem:[%s0 + $0x64] sm:$0xf]
  %v52 = vld [vmem:[%s0 + $0x68] sm:$0xf]
  %v53 = vld [vmem:[%s0 + $0x6c] sm:$0xf]
  %v54 = vld [vmem:[%s0 + $0x70] sm:$0xf]
  %v55 = vld [vmem:[%s0 + $0x74] sm:$0xf]
  %v56 = vld [vmem:[%s0 + $0x78] sm:$0xf]
  %v57 = vld [vmem:[%s0 + $0x7c] sm:$0xf]
  %v58 = vld [vmem:[%s0 + $0x80] sm:$0xf]
  %v59 = vld [vmem:[%s0 + $0x84] sm:$0xf]
  %v60 = vld [vmem:[%s0 + $0x88] sm:$0xf]
  %v61 = vld [vmem:[%s0 + $0x8c] sm:$0xf]
  %v62 = vld [vmem:[%s2] sm:$0xff]
  %v63 = vld [vmem:[%s2 + $0x8] sm:$0xff]
  %v64 = vld [vmem:[%s2 + $0x10] sm:$0xff]
  %v65 = vld [vmem:[%s2 + $0x18] sm:$0xff]
  %67 = vset.pattern.permute.xlu0 0
  %68 = vperm.xlu0 %67, %v62
  %v69 = vpop.permute.xlu0 %68
  %72 = vset.pattern.permute.xlu0 0
  %73 = vperm.xlu0 %72, %v63
  %v74 = vpop.permute.xlu0 %73
  %77 = vset.pattern.permute.xlu0 0
  %78 = vperm.xlu0 %77, %v64
  %v79 = vpop.permute.xlu0 %78
  %82 = vset.pattern.permute.xlu0 0
  %83 = vperm.xlu0 %82, %v65
  %v84 = vpop.permute.xlu0 %83
  %v94 = vunpack.c.l.b16 %v18
  %v95 = vunpack.c.h.b16 %v18
  %v96 = vunpack.c.l.b16 %v19
  %v97 = vunpack.c.l.b16 %v20
  %v98 = vunpack.c.h.b16 %v20
  %v99 = vunpack.c.l.b16 %v21
  %v100 = vunpack.c.l.b16 %v22
  %v101 = vunpack.c.h.b16 %v22
  %v102 = vunpack.c.l.b16 %v23
  %v103 = vunpack.c.l.b16 %v24
  %v104 = vunpack.c.h.b16 %v24
  %v105 = vunpack.c.l.b16 %v25
  %v106 = vpack.c.b16 %v97, %v94
  %v107 = vpack.c.b16 %v98, %v95
  %v108 = vpack.c.b16 %v99, %v96
  %v109 = vpack.c.b16 %v103, %v100
  %v110 = vpack.c.b16 %v104, %v101
  %v111 = vpack.c.b16 %v105, %v102
  %v152 = vunpack.c.l.b16 %v26
  %v153 = vunpack.c.l.b16 %v27
  %v154 = vunpack.c.l.b16 %v28
  %v155 = vunpack.c.l.b16 %v29
  %v156 = vunpack.c.l.b16 %v30
  %v157 = vunpack.c.l.b16 %v31
  %v158 = vunpack.c.l.b16 %v32
  %v159 = vunpack.c.l.b16 %v33
  %v160 = vunpack.c.l.b16 %v34
  %v161 = vunpack.c.l.b16 %v35
  %v162 = vunpack.c.l.b16 %v36
  %v163 = vunpack.c.l.b16 %v37
  %v164 = vunpack.c.l.b16 %v38
  %v165 = vunpack.c.l.b16 %v39
  %v166 = vunpack.c.l.b16 %v40
  %v167 = vunpack.c.l.b16 %v41
  %v168 = vunpack.c.l.b16 %v42
  %v169 = vunpack.c.l.b16 %v43
  %v170 = vunpack.c.l.b16 %v44
  %v171 = vunpack.c.l.b16 %v45
  %v172 = vunpack.c.l.b16 %v46
  %v173 = vunpack.c.l.b16 %v47
  %v174 = vunpack.c.l.b16 %v48
  %v175 = vunpack.c.l.b16 %v49
  %v176 = vunpack.c.l.b16 %v50
  %v177 = vunpack.c.l.b16 %v51
  %v178 = vunpack.c.l.b16 %v52
  %v179 = vunpack.c.l.b16 %v53
  %v180 = vunpack.c.l.b16 %v54
  %v181 = vunpack.c.l.b16 %v55
  %v182 = vunpack.c.l.b16 %v56
  %v183 = vunpack.c.l.b16 %v57
  %v184 = vunpack.c.l.b16 %v58
  %v185 = vunpack.c.l.b16 %v59
  %v186 = vunpack.c.l.b16 %v60
  %v187 = vunpack.c.l.b16 %v61
  %v188 = vpack.c.b16 %v153, %v152
  %v189 = vpack.c.b16 %v155, %v154
  %v190 = vpack.c.b16 %v157, %v156
  %v191 = vpack.c.b16 %v159, %v158
  %v192 = vpack.c.b16 %v161, %v160
  %v193 = vpack.c.b16 %v163, %v162
  %v194 = vpack.c.b16 %v165, %v164
  %v195 = vpack.c.b16 %v167, %v166
  %v196 = vpack.c.b16 %v169, %v168
  %v197 = vpack.c.b16 %v171, %v170
  %v198 = vpack.c.b16 %v173, %v172
  %v199 = vpack.c.b16 %v175, %v174
  %v200 = vpack.c.b16 %v177, %v176
  %v201 = vpack.c.b16 %v179, %v178
  %v202 = vpack.c.b16 %v181, %v180
  %v203 = vpack.c.b16 %v183, %v182
  %v204 = vpack.c.b16 %v185, %v184
  %v205 = vpack.c.b16 %v187, %v186
  %vm224 = vcmask 261120
  %v226 = vsel %vm224, %v108, 0
  %v229 = vsel %vm224, %v111, 0
  %231 = vmatpush.bf16.msra.mxu0 %v195
  %232 = vmatpush.bf16.msra.mxu0 %v194
  %233 = vmatpush.bf16.msra.mxu0 %v193
  %234 = vmatpush.bf16.msra.mxu0 %v192
  %235 = vmatpush.bf16.msra.mxu0 %v191
  %236 = vmatpush.bf16.msra.mxu0 %v190
  %237 = vmatpush.bf16.msra.mxu0 %v189
  %238 = vmatpush.bf16.msra.mxu0 %v188
  %239 = vmatmul.bf16.gmra.mxu0 %v106
  %v240 = vpop.f32.mrf.mxu0
  %v241 = vadd.f32 %v69, %v240
  %v242 = vpop.f32.mrf.mxu0
  %v243 = vadd.f32 %v74, %v242
  %244 = vmatmul.bf16.gmra.mxu0 %v109
  %v245 = vpop.f32.mrf.mxu0
  %v246 = vadd.f32 %v79, %v245
  %v247 = vpop.f32.mrf.mxu0
  %v248 = vadd.f32 %v84, %v247
  %249 = vdwg.mxu0
  %250 = vmatpush.bf16.msra.mxu0 %v203
  %251 = vmatpush.bf16.msra.mxu0 %v202
  %252 = vmatpush.bf16.msra.mxu0 %v201
  %253 = vmatpush.bf16.msra.mxu0 %v200
  %254 = vmatpush.bf16.msra.mxu0 %v199
  %255 = vmatpush.bf16.msra.mxu0 %v198
  %256 = vmatpush.bf16.msra.mxu0 %v197
  %257 = vmatpush.bf16.msra.mxu0 %v196
  %258 = vmatmul.bf16.gmra.mxu0 %v107
  %v259 = vpop.f32.mrf.mxu0
  %v260 = vadd.f32 %v241, %v259
  %v261 = vpop.f32.mrf.mxu0
  %v262 = vadd.f32 %v243, %v261
  %263 = vmatmul.bf16.gmra.mxu0 %v110
  %v264 = vpop.f32.mrf.mxu0
  %v265 = vadd.f32 %v246, %v264
  %v266 = vpop.f32.mrf.mxu0
  %v267 = vadd.f32 %v248, %v266
  %268 = vdwg.mxu0
  %269 = vmatpush.bf16.msra.mxu0 0
  %270 = vmatpush.bf16.msra.mxu0 0
  %271 = vmatpush.bf16.msra.mxu0 0
  %272 = vmatpush.bf16.msra.mxu0 0
  %273 = vmatpush.bf16.msra.mxu0 0
  %274 = vmatpush.bf16.msra.mxu0 0
  %275 = vmatpush.bf16.msra.mxu0 %v205
  %276 = vmatpush.bf16.msra.mxu0 %v204
  %277 = vmatmul.bf16.gmra.mxu0 %v226
  %v278 = vpop.f32.mrf.mxu0
  %v279 = vadd.f32 %v260, %v278
  %v280 = vpop.f32.mrf.mxu0
  %v281 = vadd.f32 %v262, %v280
  %282 = vmatmul.bf16.gmra.mxu0 %v229
  %v283 = vpop.f32.mrf.mxu0
  %v284 = vadd.f32 %v265, %v283
  %v285 = vpop.f32.mrf.mxu0
  %v286 = vadd.f32 %v267, %v285
  %287 = vdwg.mxu0
  %v288 = vld [vmem:[%s3] sm:$0xf]
  %v289 = vld [vmem:[%s3 + $0x4] sm:$0xf]
  %v290 = vld [vmem:[%s3 + $0x8] sm:$0xf]
  %v291 = vld [vmem:[%s3 + $0xc] sm:$0xf]
  %v292 = vunpack.c.l.bf16 %v288
  %v293 = vunpack.c.l.bf16 %v289
  %v294 = vunpack.c.l.bf16 %v290
  %v295 = vunpack.c.l.bf16 %v291
  %v296 = vadd.f32 %v279, %v292
  %v297 = vadd.f32 %v281, %v293
  %v298 = vadd.f32 %v284, %v294
  %v299 = vadd.f32 %v286, %v295
  %v300 = vmax.f32 %v296, 0.0
  %v301 = vmax.f32 %v297, 0.0
  %v302 = vmax.f32 %v298, 0.0
  %v303 = vmax.f32 %v299, 0.0
  %v304 = vpack.c.bf16 %v300, %v300
  %v305 = vpack.c.bf16 %v301, %v301
  %v306 = vpack.c.bf16 %v302, %v302
  %v307 = vpack.c.bf16 %v303, %v303
  %308 = vst [vmem:[%s4] sm:$0xf] %v304
  %309 = vst [vmem:[%s4 + $0x4] sm:$0xf] %v305
  %310 = vst [vmem:[%s4 + $0x8] sm:$0xf] %v306
  %311 = vst [vmem:[%s4 + $0xc] sm:$0xf] %v307
  // Predicated region
  $region18: #{resnet_forward.14} parent=0 // pred_check
    _
  $region19: #{resnet_forward.14} parent=0 // pred_check_branch
    %313 = sbr.rel (0) target = $region21
  $region20: #{resnet_forward.14} parent=0 // pred_region
    _
  $region21: #{resnet_forward.14} parent=0 // pred_fallthru
    _
  // Predicated region
  $region22: #{resnet_forward.14} parent=0 // pred_check
    _
  $region23: #{resnet_forward.14} parent=0 // pred_check_branch
    %315 = sbr.rel (0) target = $region25
  $region24: #{resnet_forward.14} parent=0 // pred_region
    _
  $region25: #{resnet_forward.14} parent=0 // pred_fallthru
    _

// kernel: resnet_forward.15
$region0: #{resnet_forward.15}
  #allocation0 [shape = 'u32[]', space=smem, size = 0x4, offset = 0x4, fixed_abs, tag = 'smem constant byte address 0x4 - core index']
  #allocation1 [shape = 'u32[72,128]{1,0:T(1,128)}', space=vmem, size = 0x9000, scoped, tag = 'internal scratch']
  %s0 = inlined_call_operand.vmem [shape: bf16[32,288], index: 0, kind: input, shape index: {}]
  %s1 = inlined_call_operand.vmem [shape: bf16[288,64], index: 1, kind: input, shape index: {}]
  %s2 = inlined_call_operand.vmem [shape: f32[1,64], index: 2, kind: input, shape index: {}]
  %s3 = inlined_call_operand.vmem [shape: bf16[32,64], index: 3, kind: input, shape index: {}]
  %s4 = inlined_call_operand.vmem [shape: f32[1,64], index: 4, kind: input, shape index: {}]
  %s5 = inlined_call_operand.vmem [shape: bf16[32,64], index: 5, kind: output, shape index: {0}]
  %s6 = inlined_call_operand.vmem [shape: bf16[32,64], index: 6, kind: output, shape index: {1}]
  %7 = xla_tuple %s5, %s6
  %s8 = sld [smem:[#allocation0]]
  $region38: #{resnet_forward.15} parent=0
    _
  %s10 = ssub.s32 1, %s8
  %s11 = scalar_select 0, %s10, %s8
  // Predicated region
  $region2: #{resnet_forward.15} parent=0 // pred_check
    _
  $region3: #{resnet_forward.15} parent=0 // pred_check_branch
    %13 = sbr.rel (0) target = $region5
  $region4: #{resnet_forward.15} parent=0 // pred_region
    _
  $region5: #{resnet_forward.15} parent=0 // pred_fallthru
    _
  // Predicated region
  $region6: #{resnet_forward.15} parent=0 // pred_check
    _
  $region7: #{resnet_forward.15} parent=0 // pred_check_branch
    %15 = sbr.rel (0) target = $region9
  $region8: #{resnet_forward.15} parent=0 // pred_region
    _
  $region9: #{resnet_forward.15} parent=0 // pred_fallthru
    _
  // Predicated region
  $region10: #{resnet_forward.15} parent=0 // pred_check
    _
  $region11: #{resnet_forward.15} parent=0 // pred_check_branch
    %17 = sbr.rel (0) target = $region13
  $region12: #{resnet_forward.15} parent=0 // pred_region
    _
  $region13: #{resnet_forward.15} parent=0 // pred_fallthru
    _
  // Predicated region
  $region14: #{resnet_forward.15} parent=0 // pred_check
    _
  $region15: #{resnet_forward.15} parent=0 // pred_check_branch
    %19 = sbr.rel (0) target = $region17
  $region16: #{resnet_forward.15} parent=0 // pred_region
    _
  $region17: #{resnet_forward.15} parent=0 // pred_fallthru
    _
  // Predicated region
  $region18: #{resnet_forward.15} parent=0 // pred_check
    _
  $region19: #{resnet_forward.15} parent=0 // pred_check_branch
    %21 = sbr.rel (0) target = $region21
  $region20: #{resnet_forward.15} parent=0 // pred_region
    _
  $region21: #{resnet_forward.15} parent=0 // pred_fallthru
    _
  %v23 = vld [vmem:[%s0] sm:$0xff]
  %v24 = vld [vmem:[%s0 + $0x8] sm:$0xf]
  %v25 = vld [vmem:[%s0 + $0xc] sm:$0xff]
  %v26 = vld [vmem:[%s0 + $0x14] sm:$0xf]
  %v27 = vld [vmem:[%s0 + $0x18] sm:$0xff]
  %v28 = vld [vmem:[%s0 + $0x20] sm:$0xf]
  %v29 = vld [vmem:[%s0 + $0x24] sm:$0xff]
  %v30 = vld [vmem:[%s0 + $0x2c] sm:$0xf]
  %v31 = vld [vmem:[%s1] sm:$0xf]
  %v32 = vld [vmem:[%s1 + $0x4] sm:$0xf]
  %v33 = vld [vmem:[%s1 + $0x8] sm:$0xf]
  %v34 = vld [vmem:[%s1 + $0xc] sm:$0xf]
  %v35 = vld [vmem:[%s1 + $0x10] sm:$0xf]
  %v36 = vld [vmem:[%s1 + $0x14] sm:$0xf]
  %v37 = vld [vmem:[%s1 + $0x18] sm:$0xf]
  %v38 = vld [vmem:[%s1 + $0x1c] sm:$0xf]
  %v39 = vld [vmem:[%s1 + $0x20] sm:$0xf]
  %v40 = vld [vmem:[%s1 + $0x24] sm:$0xf]
  %v41 = vld [vmem:[%s1 + $0x28] sm:$0xf]
  %v42 = vld [vmem:[%s1 + $0x2c] sm:$0xf]
  %v43 = vld [vmem:[%s1 + $0x30] sm:$0xf]
  %v44 = vld [vmem:[%s1 + $0x34] sm:$0xf]
  %v45 = vld [vmem:[%s1 + $0x38] sm:$0xf]
  %v46 = vld [vmem:[%s1 + $0x3c] sm:$0xf]
  %v47 = vld [vmem:[%s1 + $0x40] sm:$0xf]
  %v48 = vld [vmem:[%s1 + $0x44] sm:$0xf]
  %v49 = vld [vmem:[%s1 + $0x48] sm:$0xf]
  %v50 = vld [vmem:[%s1 + $0x4c] sm:$0xf]
  %v51 = vld [vmem:[%s1 + $0x50] sm:$0xf]
  %v52 = vld [vmem:[%s1 + $0x54] sm:$0xf]
  %v53 = vld [vmem:[%s1 + $0x58] sm:$0xf]
  %v54 = vld [vmem:[%s1 + $0x5c] sm:$0xf]
  %v55 = vld [vmem:[%s1 + $0x60] sm:$0xf]
  %v56 = vld [vmem:[%s1 + $0x64] sm:$0xf]
  %v57 = vld [vmem:[%s1 + $0x68] sm:$0xf]
  %v58 = vld [vmem:[%s1 + $0x6c] sm:$0xf]
  %v59 = vld [vmem:[%s1 + $0x70] sm:$0xf]
  %v60 = vld [vmem:[%s1 + $0x74] sm:$0xf]
  %v61 = vld [vmem:[%s1 + $0x78] sm:$0xf]
  %v62 = vld [vmem:[%s1 + $0x7c] sm:$0xf]
  %v63 = vld [vmem:[%s1 + $0x80] sm:$0xf]
  %v64 = vld [vmem:[%s1 + $0x84] sm:$0xf]
  %v65 = vld [vmem:[%s1 + $0x88] sm:$0xf]
  %v66 = vld [vmem:[%s1 + $0x8c] sm:$0xf]
  %v67 = vld [vmem:[%s2] sm:$0x1]
  %v69 = vperm.slane %v67, 0
  %v79 = vunpack.c.l.b16 %v23
  %v80 = vunpack.c.h.b16 %v23
  %v81 = vunpack.c.l.b16 %v24
  %v82 = vunpack.c.l.b16 %v25
  %v83 = vunpack.c.h.b16 %v25
  %v84 = vunpack.c.l.b16 %v26
  %v85 = vunpack.c.l.b16 %v27
  %v86 = vunpack.c.h.b16 %v27
  %v87 = vunpack.c.l.b16 %v28
  %v88 = vunpack.c.l.b16 %v29
  %v89 = vunpack.c.h.b16 %v29
  %v90 = vunpack.c.l.b16 %v30
  %v91 = vpack.c.b16 %v82, %v79
  %v92 = vpack.c.b16 %v83, %v80
  %v93 = vpack.c.b16 %v84, %v81
  %v94 = vpack.c.b16 %v88, %v85
  %v95 = vpack.c.b16 %v89, %v86
  %v96 = vpack.c.b16 %v90, %v87
  %v137 = vunpack.c.l.b16 %v31
  %v138 = vunpack.c.l.b16 %v32
  %v139 = vunpack.c.l.b16 %v33
  %v140 = vunpack.c.l.b16 %v34
  %v141 = vunpack.c.l.b16 %v35
  %v142 = vunpack.c.l.b16 %v36
  %v143 = vunpack.c.l.b16 %v37
  %v144 = vunpack.c.l.b16 %v38
  %v145 = vunpack.c.l.b16 %v39
  %v146 = vunpack.c.l.b16 %v40
  %v147 = vunpack.c.l.b16 %v41
  %v148 = vunpack.c.l.b16 %v42
  %v149 = vunpack.c.l.b16 %v43
  %v150 = vunpack.c.l.b16 %v44
  %v151 = vunpack.c.l.b16 %v45
  %v152 = vunpack.c.l.b16 %v46
  %v153 = vunpack.c.l.b16 %v47
  %v154 = vunpack.c.l.b16 %v48
  %v155 = vunpack.c.l.b16 %v49
  %v156 = vunpack.c.l.b16 %v50
  %v157 = vunpack.c.l.b16 %v51
  %v158 = vunpack.c.l.b16 %v52
  %v159 = vunpack.c.l.b16 %v53
  %v160 = vunpack.c.l.b16 %v54
  %v161 = vunpack.c.l.b16 %v55
  %v162 = vunpack.c.l.b16 %v56
  %v163 = vunpack.c.l.b16 %v57
  %v164 = vunpack.c.l.b16 %v58
  %v165 = vunpack.c.l.b16 %v59
  %v166 = vunpack.c.l.b16 %v60
  %v167 = vunpack.c.l.b16 %v61
  %v168 = vunpack.c.l.b16 %v62
  %v169 = vunpack.c.l.b16 %v63
  %v170 = vunpack.c.l.b16 %v64
  %v171 = vunpack.c.l.b16 %v65
  %v172 = vunpack.c.l.b16 %v66
  %v173 = vpack.c.b16 %v138, %v137
  %v174 = vpack.c.b16 %v140, %v139
  %v175 = vpack.c.b16 %v142, %v141
  %v176 = vpack.c.b16 %v144, %v143
  %v177 = vpack.c.b16 %v146, %v145
  %v178 = vpack.c.b16 %v148, %v147
  %v179 = vpack.c.b16 %v150, %v149
  %v180 = vpack.c.b16 %v152, %v151
  %v181 = vpack.c.b16 %v154, %v153
  %v182 = vpack.c.b16 %v156, %v155
  %v183 = vpack.c.b16 %v158, %v157
  %v184 = vpack.c.b16 %v160, %v159
  %v185 = vpack.c.b16 %v162, %v161
  %v186 = vpack.c.b16 %v164, %v163
  %v187 = vpack.c.b16 %v166, %v165
  %v188 = vpack.c.b16 %v168, %v167
  %v189 = vpack.c.b16 %v170, %v169
  %v190 = vpack.c.b16 %v172, %v171
  %vm209 = vcmask 261120
  %v211 = vsel %vm209, %v93, 0
  %v214 = vsel %vm209, %v96, 0
  %216 = vmatpush.bf16.msra.mxu0 %v180
  %217 = vmatpush.bf16.msra.mxu0 %v179
  %218 = vmatpush.bf16.msra.mxu0 %v178
  %219 = vmatpush.bf16.msra.mxu0 %v177
  %220 = vmatpush.bf16.msra.mxu0 %v176
  %221 = vmatpush.bf16.msra.mxu0 %v175
  %222 = vmatpush.bf16.msra.mxu0 %v174
  %223 = vmatpush.bf16.msra.mxu0 %v173
  %224 = vmatmul.bf16.gmra.mxu0 %v91
  %v225 = vpop.f32.mrf.mxu0
  %v226 = vadd.f32 %v69, %v225
  %v227 = vpop.f32.mrf.mxu0
  %v228 = vadd.f32 %v69, %v227
  %229 = vmatmul.bf16.gmra.mxu0 %v94
  %v230 = vpop.f32.mrf.mxu0
  %v231 = vadd.f32 %v69, %v230
  %v232 = vpop.f32.mrf.mxu0
  %v233 = vadd.f32 %v69, %v232
  %234 = vdwg.mxu0
  %235 = vmatpush.bf16.msra.mxu0 %v188
  %236 = vmatpush.bf16.msra.mxu0 %v187
  %237 = vmatpush.bf16.msra.mxu0 %v186
  %238 = vmatpush.bf16.msra.mxu0 %v185
  %239 = vmatpush.bf16.msra.mxu0 %v184
  %240 = vmatpush.bf16.msra.mxu0 %v183
  %241 = vmatpush.bf16.msra.mxu0 %v182
  %242 = vmatpush.bf16.msra.mxu0 %v181
  %243 = vmatmul.bf16.gmra.mxu0 %v92
  %v244 = vpop.f32.mrf.mxu0
  %v245 = vadd.f32 %v226, %v244
  %v246 = vpop.f32.mrf.mxu0
  %v247 = vadd.f32 %v228, %v246
  %248 = vmatmul.bf16.gmra.mxu0 %v95
  %v249 = vpop.f32.mrf.mxu0
  %v250 = vadd.f32 %v231, %v249
  %v251 = vpop.f32.mrf.mxu0
  %v252 = vadd.f32 %v233, %v251
  %253 = vdwg.mxu0
  %254 = vmatpush.bf16.msra.mxu0 0
  %255 = vmatpush.bf16.msra.mxu0 0
  %256 = vmatpush.bf16.msra.mxu0 0
  %257 = vmatpush.bf16.msra.mxu0 0
  %258 = vmatpush.bf16.msra.mxu0 0
  %259 = vmatpush.bf16.msra.mxu0 0
  %260 = vmatpush.bf16.msra.mxu0 %v190
  %261 = vmatpush.bf16.msra.mxu0 %v189
  %262 = vmatmul.bf16.gmra.mxu0 %v211
  %v263 = vpop.f32.mrf.mxu0
  %v264 = vadd.f32 %v245, %v263
  %v265 = vpop.f32.mrf.mxu0
  %v266 = vadd.f32 %v247, %v265
  %267 = vmatmul.bf16.gmra.mxu0 %v214
  %v268 = vpop.f32.mrf.mxu0
  %v269 = vadd.f32 %v250, %v268
  %v270 = vpop.f32.mrf.mxu0
  %v271 = vadd.f32 %v252, %v270
  %272 = vdwg.mxu0
  %v273 = vmax.f32 %v264, 0.0
  %v274 = vmax.f32 %v266, 0.0
  %v275 = vmax.f32 %v269, 0.0
  %v276 = vmax.f32 %v271, 0.0
  %v277 = vpack.c.bf16 %v273, %v273
  %v278 = vpack.c.bf16 %v274, %v274
  %v279 = vpack.c.bf16 %v275, %v275
  %v280 = vpack.c.bf16 %v276, %v276
  %vm281 = vcmask 519168
  %282 = vst.msk [vmem:[%s5] sm:$0xf] %vm281, %v277
  %283 = vst.msk [vmem:[%s5 + $0x4] sm:$0xf] %vm281, %v278
  %284 = vst.msk [vmem:[%s5 + $0x8] sm:$0xf] %vm281, %v279
  %285 = vst.msk [vmem:[%s5 + $0xc] sm:$0xf] %vm281, %v280
  %v286 = vld [vmem:[%s0 + $0x4] sm:$0xf]
  %v287 = vld [vmem:[%s0 + $0x10] sm:$0xf]
  %v288 = vld [vmem:[%s0 + $0x1c] sm:$0xf]
  %v289 = vld [vmem:[%s0 + $0x28] sm:$0xf]
  %v290 = vld [vmem:[%s3] sm:$0xf]
  %v291 = vld [vmem:[%s3 + $0x4] sm:$0xf]
  %v292 = vld [vmem:[%s3 + $0x8] sm:$0xf]
  %v293 = vld [vmem:[%s3 + $0xc] sm:$0xf]
  %v294 = vld [vmem:[%s4] sm:$0x1]
  %v296 = vperm.slane %v294, 0
  %v302 = vunpack.c.l.b16 %v286
  %v303 = vunpack.c.l.b16 %v287
  %v304 = vunpack.c.l.b16 %v288
  %v305 = vunpack.c.l.b16 %v289
  %v306 = vpack.c.b16 %v303, %v302
  %v307 = vpack.c.b16 %v305, %v304
  %v312 = vunpack.c.l.b16 %v290
  %v313 = vunpack.c.l.b16 %v291
  %v314 = vunpack.c.l.b16 %v292
  %v315 = vunpack.c.l.b16 %v293
  %v316 = vpack.c.b16 %v313, %v312
  %v317 = vpack.c.b16 %v315, %v314
  %v321 = vsel %vm209, %v306, 0
  %v324 = vsel %vm209, %v307, 0
  %326 = vmatpush.bf16.msra.mxu0 0
  %327 = vmatpush.bf16.msra.mxu0 0
  %328 = vmatpush.bf16.msra.mxu0 0
  %329 = vmatpush.bf16.msra.mxu0 0
  %330 = vmatpush.bf16.msra.mxu0 0
  %331 = vmatpush.bf16.msra.mxu0 0
  %332 = vmatpush.bf16.msra.mxu0 %v317
  %333 = vmatpush.bf16.msra.mxu0 %v316
  %334 = vmatmul.bf16.gmra.mxu0 %v321
  %v335 = vpop.f32.mrf.mxu0
  %v336 = vadd.f32 %v296, %v335
  %v337 = vpop.f32.mrf.mxu0
  %v338 = vadd.f32 %v296, %v337
  %339 = vmatmul.bf16.gmra.mxu0 %v324
  %v340 = vpop.f32.mrf.mxu0
  %v341 = vadd.f32 %v296, %v340
  %v342 = vpop.f32.mrf.mxu0
  %v343 = vadd.f32 %v296, %v342
  %344 = vdwg.mxu0
  %v345 = vpack.c.bf16 %v336, %v336
  %v346 = vpack.c.bf16 %v338, %v338
  %v347 = vpack.c.bf16 %v341, %v341
  %v348 = vpack.c.bf16 %v343, %v343
  %349 = vst.msk [vmem:[%s6] sm:$0xf] %vm281, %v345
  %350 = vst.msk [vmem:[%s6 + $0x4] sm:$0xf] %vm281, %v346
  %351 = vst.msk [vmem:[%s6 + $0x8] sm:$0xf] %vm281, %v347
  %352 = vst.msk [vmem:[%s6 + $0xc] sm:$0xf] %vm281, %v348
  // Predicated region
  $region22: #{resnet_forward.15} parent=0 // pred_check
    _
  $region23: #{resnet_forward.15} parent=0 // pred_check_branch
    %354 = sbr.rel (0) target = $region25
  $region24: #{resnet_forward.15} parent=0 // pred_region
    _
  $region25: #{resnet_forward.15} parent=0 // pred_fallthru
    _
  // Predicated region
  $region26: #{resnet_forward.15} parent=0 // pred_check
    _
  $region27: #{resnet_forward.15} parent=0 // pred_check_branch
    %356 = sbr.rel (0) target = $region29
  $region28: #{resnet_forward.15} parent=0 // pred_region
    _
  $region29: #{resnet_forward.15} parent=0 // pred_fallthru
    _
  // Predicated region
  $region30: #{resnet_forward.15} parent=0 // pred_check
    _
  $region31: #{resnet_forward.15} parent=0 // pred_check_branch
    %358 = sbr.rel (0) target = $region33
  $region32: #{resnet_forward.15} parent=0 // pred_region
    _
  $region33: #{resnet_forward.15} parent=0 // pred_fallthru
    _
  // Predicated region
  $region34: #{resnet_forward.15} parent=0 // pred_check
    _
  $region35: #{resnet_forward.15} parent=0 // pred_check_branch
    %360 = sbr.rel (0) target = $region37
  $region36: #{resnet_forward.15} parent=0 // pred_region
    _
  $region37: #{resnet_forward.15} parent=0 // pred_fallthru
    _

// kernel: resnet_forward.16
$region0: #{resnet_forward.16}
  #allocation0 [shape = 'u32[]', space=smem, size = 0x4, offset = 0x4, fixed_abs, tag = 'smem constant byte address 0x4 - core index']
  #allocation1 [shape = 'u32[72,128]{1,0:T(1,128)}', space=vmem, size = 0x9000, scoped, tag = 'internal scratch']
  %s0 = inlined_call_operand.vmem [shape: bf16[32,576], index: 0, kind: input, shape index: {}]
  %s1 = inlined_call_operand.vmem [shape: bf16[576,64], index: 1, kind: input, shape index: {}]
  %s2 = inlined_call_operand.vmem [shape: f32[1,64], index: 2, kind: input, shape index: {}]
  %s3 = inlined_call_operand.vmem [shape: bf16[32,64], index: 3, kind: input, shape index: {}]
  %s4 = inlined_call_operand.vmem [shape: bf16[32,64], index: 4, kind: output, shape index: {}]
  %s5 = sld [smem:[#allocation0]]
  $region26: #{resnet_forward.16} parent=0
    _
  %s7 = ssub.s32 1, %s5
  %s8 = scalar_select 0, %s7, %s5
  // Predicated region
  $region2: #{resnet_forward.16} parent=0 // pred_check
    _
  $region3: #{resnet_forward.16} parent=0 // pred_check_branch
    %10 = sbr.rel (0) target = $region5
  $region4: #{resnet_forward.16} parent=0 // pred_region
    _
  $region5: #{resnet_forward.16} parent=0 // pred_fallthru
    _
  // Predicated region
  $region6: #{resnet_forward.16} parent=0 // pred_check
    _
  $region7: #{resnet_forward.16} parent=0 // pred_check_branch
    %12 = sbr.rel (0) target = $region9
  $region8: #{resnet_forward.16} parent=0 // pred_region
    _
  $region9: #{resnet_forward.16} parent=0 // pred_fallthru
    _
  // Predicated region
  $region10: #{resnet_forward.16} parent=0 // pred_check
    _
  $region11: #{resnet_forward.16} parent=0 // pred_check_branch
    %14 = sbr.rel (0) target = $region13
  $region12: #{resnet_forward.16} parent=0 // pred_region
    _
  $region13: #{resnet_forward.16} parent=0 // pred_fallthru
    _
  // Predicated region
  $region14: #{resnet_forward.16} parent=0 // pred_check
    _
  $region15: #{resnet_forward.16} parent=0 // pred_check_branch
    %16 = sbr.rel (0) target = $region17
  $region16: #{resnet_forward.16} parent=0 // pred_region
    _
  $region17: #{resnet_forward.16} parent=0 // pred_fallthru
    _
  %v18 = vld [vmem:[%s0] sm:$0xff]
  %v19 = vld [vmem:[%s0 + $0x8] sm:$0xff]
  %v20 = vld [vmem:[%s0 + $0x10] sm:$0xf]
  %v21 = vld [vmem:[%s0 + $0x14] sm:$0xff]
  %v22 = vld [vmem:[%s0 + $0x1c] sm:$0xff]
  %v23 = vld [vmem:[%s0 + $0x24] sm:$0xf]
  %v24 = vld [vmem:[%s0 + $0x28] sm:$0xff]
  %v25 = vld [vmem:[%s0 + $0x30] sm:$0xff]
  %v26 = vld [vmem:[%s0 + $0x38] sm:$0xf]
  %v27 = vld [vmem:[%s0 + $0x3c] sm:$0xff]
  %v28 = vld [vmem:[%s0 + $0x44] sm:$0xff]
  %v29 = vld [vmem:[%s0 + $0x4c] sm:$0xf]
  %v30 = vld [vmem:[%s1] sm:$0xf]
  %v31 = vld [vmem:[%s1 + $0x4] sm:$0xf]
  %v32 = vld [vmem:[%s1 + $0x8] sm:$0xf]
  %v33 = vld [vmem:[%s1 + $0xc] sm:$0xf]
  %v34 = vld [vmem:[%s1 + $0x10] sm:$0xf]
  %v35 = vld [vmem:[%s1 + $0x14] sm:$0xf]
  %v36 = vld [vmem:[%s1 + $0x18] sm:$0xf]
  %v37 = vld [vmem:[%s1 + $0x1c] sm:$0xf]
  %v38 = vld [vmem:[%s1 + $0x20] sm:$0xf]
  %v39 = vld [vmem:[%s1 + $0x24] sm:$0xf]
  %v40 = vld [vmem:[%s1 + $0x28] sm:$0xf]
  %v41 = vld [vmem:[%s1 + $0x2c] sm:$0xf]
  %v42 = vld [vmem:[%s1 + $0x30] sm:$0xf]
  %v43 = vld [vmem:[%s1 + $0x34] sm:$0xf]
  %v44 = vld [vmem:[%s1 + $0x38] sm:$0xf]
  %v45 = vld [vmem:[%s1 + $0x3c] sm:$0xf]
  %v46 = vld [vmem:[%s1 + $0x40] sm:$0xf]
  %v47 = vld [vmem:[%s1 + $0x44] sm:$0xf]
  %v48 = vld [vmem:[%s1 + $0x48] sm:$0xf]
  %v49 = vld [vmem:[%s1 + $0x4c] sm:$0xf]
  %v50 = vld [vmem:[%s1 + $0x50] sm:$0xf]
  %v51 = vld [vmem:[%s1 + $0x54] sm:$0xf]
  %v52 = vld [vmem:[%s1 + $0x58] sm:$0xf]
  %v53 = vld [vmem:[%s1 + $0x5c] sm:$0xf]
  %v54 = vld [vmem:[%s1 + $0x60] sm:$0xf]
  %v55 = vld [vmem:[%s1 + $0x64] sm:$0xf]
  %v56 = vld [vmem:[%s1 + $0x68] sm:$0xf]
  %v57 = vld [vmem:[%s1 + $0x6c] sm:$0xf]
  %v58 = vld [vmem:[%s1 + $0x70] sm:$0xf]
  %v59 = vld [vmem:[%s1 + $0x74] sm:$0xf]
  %v60 = vld [vmem:[%s1 + $0x78] sm:$0xf]
  %v61 = vld [vmem:[%s1 + $0x7c] sm:$0xf]
  %v62 = vld [vmem:[%s1 + $0x80] sm:$0xf]
  %v63 = vld [vmem:[%s1 + $0x84] sm:$0xf]
  %v64 = vld [vmem:[%s1 + $0x88] sm:$0xf]
  %v65 = vld [vmem:[%s1 + $0x8c] sm:$0xf]
  %v66 = vld [vmem:[%s1 + $0x90] sm:$0xf]
  %v67 = vld [vmem:[%s1 + $0x94] sm:$0xf]
  %v68 = vld [vmem:[%s1 + $0x98] sm:$0xf]
  %v69 = vld [vmem:[%s1 + $0x9c] sm:$0xf]
  %v70 = vld [vmem:[%s1 + $0xa0] sm:$0xf]
  %v71 = vld [vmem:[%s1 + $0xa4] sm:$0xf]
  %v72 = vld [vmem:[%s1 + $0xa8] sm:$0xf]
  %v73 = vld [vmem:[%s1 + $0xac] sm:$0xf]
  %v74 = vld [vmem:[%s1 + $0xb0] sm:$0xf]
  %v75 = vld [vmem:[%s1 + $0xb4] sm:$0xf]
  %v76 = vld [vmem:[%s1 + $0xb8] sm:$0xf]
  %v77 = vld [vmem:[%s1 + $0xbc] sm:$0xf]
  %v78 = vld [vmem:[%s1 + $0xc0] sm:$0xf]
  %v79 = vld [vmem:[%s1 + $0xc4] sm:$0xf]
  %v80 = vld [vmem:[%s1 + $0xc8] sm:$0xf]
  %v81 = vld [vmem:[%s1 + $0xcc] sm:$0xf]
  %v82 = vld [vmem:[%s1 + $0xd0] sm:$0xf]
  %v83 = vld [vmem:[%s1 + $0xd4] sm:$0xf]
  %v84 = vld [vmem:[%s1 + $0xd8] sm:$0xf]
  %v85 = vld [vmem:[%s1 + $0xdc] sm:$0xf]
  %v86 = vld [vmem:[%s1 + $0xe0] sm:$0xf]
  %v87 = vld [vmem:[%s1 + $0xe4] sm:$0xf]
  %v88 = vld [vmem:[%s1 + $0xe8] sm:$0xf]
  %v89 = vld [vmem:[%s1 + $0xec] sm:$0xf]
  %v90 = vld [vmem:[%s1 + $0xf0] sm:$0xf]
  %v91 = vld [vmem:[%s1 + $0xf4] sm:$0xf]
  %v92 = vld [vmem:[%s1 + $0xf8] sm:$0xf]
  %v93 = vld [vmem:[%s1 + $0xfc] sm:$0xf]
  %v94 = vld [vmem:[%s1 + $0x100] sm:$0xf]
  %v95 = vld [vmem:[%s1 + $0x104] sm:$0xf]
  %v96 = vld [vmem:[%s1 + $0x108] sm:$0xf]
  %v97 = vld [vmem:[%s1 + $0x10c] sm:$0xf]
  %v98 = vld [vmem:[%s1 + $0x110] sm:$0xf]
  %v99 = vld [vmem:[%s1 + $0x114] sm:$0xf]
  %v100 = vld [vmem:[%s1 + $0x118] sm:$0xf]
  %v101 = vld [vmem:[%s1 + $0x11c] sm:$0xf]
  %v102 = vld [vmem:[%s2] sm:$0x1]
  %v104 = vperm.slane %v102, 0
  %v118 = vunpack.c.l.b16 %v18
  %v119 = vunpack.c.h.b16 %v18
  %v120 = vunpack.c.l.b16 %v19
  %v121 = vunpack.c.h.b16 %v19
  %v122 = vunpack.c.l.b16 %v20
  %v123 = vunpack.c.l.b16 %v21
  %v124 = vunpack.c.h.b16 %v21
  %v125 = vunpack.c.l.b16 %v22
  %v126 = vunpack.c.h.b16 %v22
  %v127 = vunpack.c.l.b16 %v23
  %v128 = vunpack.c.l.b16 %v24
  %v129 = vunpack.c.h.b16 %v24
  %v130 = vunpack.c.l.b16 %v25
  %v131 = vunpack.c.h.b16 %v25
  %v132 = vunpack.c.l.b16 %v26
  %v133 = vunpack.c.l.b16 %v27
  %v134 = vunpack.c.h.b16 %v27
  %v135 = vunpack.c.l.b16 %v28
  %v136 = vunpack.c.h.b16 %v28
  %v137 = vunpack.c.l.b16 %v29
  %v138 = vpack.c.b16 %v123, %v118
  %v139 = vpack.c.b16 %v124, %v119
  %v140 = vpack.c.b16 %v125, %v120
  %v141 = vpack.c.b16 %v126, %v121
  %v142 = vpack.c.b16 %v127, %v122
  %v143 = vpack.c.b16 %v133, %v128
  %v144 = vpack.c.b16 %v134, %v129
  %v145 = vpack.c.b16 %v135, %v130
  %v146 = vpack.c.b16 %v136, %v131
  %v147 = vpack.c.b16 %v137, %v132
  %v228 = vunpack.c.l.b16 %v30
  %v229 = vunpack.c.l.b16 %v31
  %v230 = vunpack.c.l.b16 %v32
  %v231 = vunpack.c.l.b16 %v33
  %v232 = vunpack.c.l.b16 %v34
  %v233 = vunpack.c.l.b16 %v35
  %v234 = vunpack.c.l.b16 %v36
  %v235 = vunpack.c.l.b16 %v37
  %v236 = vunpack.c.l.b16 %v38
  %v237 = vunpack.c.l.b16 %v39
  %v238 = vunpack.c.l.b16 %v40
  %v239 = vunpack.c.l.b16 %v41
  %v240 = vunpack.c.l.b16 %v42
  %v241 = vunpack.c.l.b16 %v43
  %v242 = vunpack.c.l.b16 %v44
  %v243 = vunpack.c.l.b16 %v45
  %v244 = vunpack.c.l.b16 %v46
  %v245 = vunpack.c.l.b16 %v47
  %v246 = vunpack.c.l.b16 %v48
  %v247 = vunpack.c.l.b16 %v49
  %v248 = vunpack.c.l.b16 %v50
  %v249 = vunpack.c.l.b16 %v51
  %v250 = vunpack.c.l.b16 %v52
  %v251 = vunpack.c.l.b16 %v53
  %v252 = vunpack.c.l.b16 %v54
  %v253 = vunpack.c.l.b16 %v55
  %v254 = vunpack.c.l.b16 %v56
  %v255 = vunpack.c.l.b16 %v57
  %v256 = vunpack.c.l.b16 %v58
  %v257 = vunpack.c.l.b16 %v59
  %v258 = vunpack.c.l.b16 %v60
  %v259 = vunpack.c.l.b16 %v61
  %v260 = vunpack.c.l.b16 %v62
  %v261 = vunpack.c.l.b16 %v63
  %v262 = vunpack.c.l.b16 %v64
  %v263 = vunpack.c.l.b16 %v65
  %v264 = vunpack.c.l.b16 %v66
  %v265 = vunpack.c.l.b16 %v67
  %v266 = vunpack.c.l.b16 %v68
  %v267 = vunpack.c.l.b16 %v69
  %v268 = vunpack.c.l.b16 %v70
  %v269 = vunpack.c.l.b16 %v71
  %v270 = vunpack.c.l.b16 %v72
  %v271 = vunpack.c.l.b16 %v73
  %v272 = vunpack.c.l.b16 %v74
  %v273 = vunpack.c.l.b16 %v75
  %v274 = vunpack.c.l.b16 %v76
  %v275 = vunpack.c.l.b16 %v77
  %v276 = vunpack.c.l.b16 %v78
  %v277 = vunpack.c.l.b16 %v79
  %v278 = vunpack.c.l.b16 %v80
  %v279 = vunpack.c.l.b16 %v81
  %v280 = vunpack.c.l.b16 %v82
  %v281 = vunpack.c.l.b16 %v83
  %v282 = vunpack.c.l.b16 %v84
  %v283 = vunpack.c.l.b16 %v85
  %v284 = vunpack.c.l.b16 %v86
  %v285 = vunpack.c.l.b16 %v87
  %v286 = vunpack.c.l.b16 %v88
  %v287 = vunpack.c.l.b16 %v89
  %v288 = vunpack.c.l.b16 %v90
  %v289 = vunpack.c.l.b16 %v91
  %v290 = vunpack.c.l.b16 %v92
  %v291 = vunpack.c.l.b16 %v93
  %v292 = vunpack.c.l.b16 %v94
  %v293 = vunpack.c.l.b16 %v95
  %v294 = vunpack.c.l.b16 %v96
  %v295 = vunpack.c.l.b16 %v97
  %v296 = vunpack.c.l.b16 %v98
  %v297 = vunpack.c.l.b16 %v99
  %v298 = vunpack.c.l.b16 %v100
  %v299 = vunpack.c.l.b16 %v101
  %v300 = vpack.c.b16 %v229, %v228
  %v301 = vpack.c.b16 %v231, %v230
  %v302 = vpack.c.b16 %v233, %v232
  %v303 = vpack.c.b16 %v235, %v234
  %v304 = vpack.c.b16 %v237, %v236
  %v305 = vpack.c.b16 %v239, %v238
  %v306 = vpack.c.b16 %v241, %v240
  %v307 = vpack.c.b16 %v243, %v242
  %v308 = vpack.c.b16 %v245, %v244
  %v309 = vpack.c.b16 %v247, %v246
  %v310 = vpack.c.b16 %v249, %v248
  %v311 = vpack.c.b16 %v251, %v250
  %v312 = vpack.c.b16 %v253, %v252
  %v313 = vpack.c.b16 %v255, %v254
  %v314 = vpack.c.b16 %v257, %v256
  %v315 = vpack.c.b16 %v259, %v258
  %v316 = vpack.c.b16 %v261, %v260
  %v317 = vpack.c.b16 %v263, %v262
  %v318 = vpack.c.b16 %v265, %v264
  %v319 = vpack.c.b16 %v267, %v266
  %v320 = vpack.c.b16 %v269, %v268
  %v321 = vpack.c.b16 %v271, %v270
  %v322 = vpack.c.b16 %v273, %v272
  %v323 = vpack.c.b16 %v275, %v274
  %v324 = vpack.c.b16 %v277, %v276
  %v325 = vpack.c.b16 %v279, %v278
  %v326 = vpack.c.b16 %v281, %v280
  %v327 = vpack.c.b16 %v283, %v282
  %v328 = vpack.c.b16 %v285, %v284
  %v329 = vpack.c.b16 %v287, %v286
  %v330 = vpack.c.b16 %v289, %v288
  %v331 = vpack.c.b16 %v291, %v290
  %v332 = vpack.c.b16 %v293, %v292
  %v333 = vpack.c.b16 %v295, %v294
  %v334 = vpack.c.b16 %v297, %v296
  %v335 = vpack.c.b16 %v299, %v298
  %vm372 = vcmask 523264
  %v374 = vsel %vm372, %v142, 0
  %v377 = vsel %vm372, %v147, 0
  %379 = vmatpush.bf16.msra.mxu0 %v307
  %380 = vmatpush.bf16.msra.mxu0 %v306
  %381 = vmatpush.bf16.msra.mxu0 %v305
  %382 = vmatpush.bf16.msra.mxu0 %v304
  %383 = vmatpush.bf16.msra.mxu0 %v303
  %384 = vmatpush.bf16.msra.mxu0 %v302
  %385 = vmatpush.bf16.msra.mxu0 %v301
  %386 = vmatpush.bf16.msra.mxu0 %v300
  %387 = vmatmul.bf16.gmra.mxu0 %v138
  %v388 = vpop.f32.mrf.mxu0
  %v389 = vadd.f32 %v104, %v388
  %v390 = vpop.f32.mrf.mxu0
  %v391 = vadd.f32 %v104, %v390
  %392 = vmatmul.bf16.gmra.mxu0 %v143
  %v393 = vpop.f32.mrf.mxu0
  %v394 = vadd.f32 %v104, %v393
  %v395 = vpop.f32.mrf.mxu0
  %v396 = vadd.f32 %v104, %v395
  %397 = vdwg.mxu0
  %398 = vmatpush.bf16.msra.mxu0 %v315
  %399 = vmatpush.bf16.msra.mxu0 %v314
  %400 = vmatpush.bf16.msra.mxu0 %v313
  %401 = vmatpush.bf16.msra.mxu0 %v312
  %402 = vmatpush.bf16.msra.mxu0 %v311
  %403 = vmatpush.bf16.msra.mxu0 %v310
  %404 = vmatpush.bf16.msra.mxu0 %v309
  %405 = vmatpush.bf16.msra.mxu0 %v308
  %406 = vmatmul.bf16.gmra.mxu0 %v139
  %v407 = vpop.f32.mrf.mxu0
  %v408 = vadd.f32 %v389, %v407
  %v409 = vpop.f32.mrf.mxu0
  %v410 = vadd.f32 %v391, %v409
  %411 = vmatmul.bf16.gmra.mxu0 %v144
  %v412 = vpop.f32.mrf.mxu0
  %v413 = vadd.f32 %v394, %v412
  %v414 = vpop.f32.mrf.mxu0
  %v415 = vadd.f32 %v396, %v414
  %416 = vdwg.mxu0
  %417 = vmatpush.bf16.msra.mxu0 %v323
  %418 = vmatpush.bf16.msra.mxu0 %v322
  %419 = vmatpush.bf16.msra.mxu0 %v321
  %420 = vmatpush.bf16.msra.mxu0 %v320
  %421 = vmatpush.bf16.msra.mxu0 %v319
  %422 = vmatpush.bf16.msra.mxu0 %v318
  %423 = vmatpush.bf16.msra.mxu0 %v317
  %424 = vmatpush.bf16.msra.mxu0 %v316
  %425 = vmatmul.bf16.gmra.mxu0 %v140
  %v426 = vpop.f32.mrf.mxu0
  %v427 = vadd.f32 %v408, %v426
  %v428 = vpop.f32.mrf.mxu0
  %v429 = vadd.f32 %v410, %v428
  %430 = vmatmul.bf16.gmra.mxu0 %v145
  %v431 = vpop.f32.mrf.mxu0
  %v432 = vadd.f32 %v413, %v431
  %v433 = vpop.f32.mrf.mxu0
  %v434 = vadd.f32 %v415, %v433
  %435 = vdwg.mxu0
  %436 = vmatpush.bf16.msra.mxu0 %v331
  %437 = vmatpush.bf16.msra.mxu0 %v330
  %438 = vmatpush.bf16.msra.mxu0 %v329
  %439 = vmatpush.bf16.msra.mxu0 %v328
  %440 = vmatpush.bf16.msra.mxu0 %v327
  %441 = vmatpush.bf16.msra.mxu0 %v326
  %442 = vmatpush.bf16.msra.mxu0 %v325
  %443 = vmatpush.bf16.msra.mxu0 %v324
  %444 = vmatmul.bf16.gmra.mxu0 %v141
  %v445 = vpop.f32.mrf.mxu0
  %v446 = vadd.f32 %v427, %v445
  %v447 = vpop.f32.mrf.mxu0
  %v448 = vadd.f32 %v429, %v447
  %449 = vmatmul.bf16.gmra.mxu0 %v146
  %v450 = vpop.f32.mrf.mxu0
  %v451 = vadd.f32 %v432, %v450
  %v452 = vpop.f32.mrf.mxu0
  %v453 = vadd.f32 %v434, %v452
  %454 = vdwg.mxu0
  %455 = vmatpush.bf16.msra.mxu0 0
  %456 = vmatpush.bf16.msra.mxu0 0
  %457 = vmatpush.bf16.msra.mxu0 0
  %458 = vmatpush.bf16.msra.mxu0 0
  %459 = vmatpush.bf16.msra.mxu0 %v335
  %460 = vmatpush.bf16.msra.mxu0 %v334
  %461 = vmatpush.bf16.msra.mxu0 %v333
  %462 = vmatpush.bf16.msra.mxu0 %v332
  %463 = vmatmul.bf16.gmra.mxu0 %v374
  %v464 = vpop.f32.mrf.mxu0
  %v465 = vadd.f32 %v446, %v464
  %v466 = vpop.f32.mrf.mxu0
  %v467 = vadd.f32 %v448, %v466
  %468 = vmatmul.bf16.gmra.mxu0 %v377
  %v469 = vpop.f32.mrf.mxu0
  %v470 = vadd.f32 %v451, %v469
  %v471 = vpop.f32.mrf.mxu0
  %v472 = vadd.f32 %v453, %v471
  %473 = vdwg.mxu0
  %v474 = vld [vmem:[%s3] sm:$0xf]
  %v475 = vld [vmem:[%s3 + $0x4] sm:$0xf]
  %v476 = vld [vmem:[%s3 + $0x8] sm:$0xf]
  %v477 = vld [vmem:[%s3 + $0xc] sm:$0xf]
  %v478 = vunpack.c.l.bf16 %v474
  %v479 = vunpack.c.l.bf16 %v475
  %v480 = vunpack.c.l.bf16 %v476
  %v481 = vunpack.c.l.bf16 %v477
  %v482 = vadd.f32 %v465, %v478
  %v483 = vadd.f32 %v467, %v479
  %v484 = vadd.f32 %v470, %v480
  %v485 = vadd.f32 %v472, %v481
  %v486 = vmax.f32 %v482, 0.0
  %v487 = vmax.f32 %v483, 0.0
  %v488 = vmax.f32 %v484, 0.0
  %v489 = vmax.f32 %v485, 0.0
  %v490 = vpack.c.bf16 %v486, %v486
  %v491 = vpack.c.bf16 %v487, %v487
  %v492 = vpack.c.bf16 %v488, %v488
  %v493 = vpack.c.bf16 %v489, %v489
  %vm494 = vcmask 519168
  %495 = vst.msk [vmem:[%s4] sm:$0xf] %vm494, %v490
  %496 = vst.msk [vmem:[%s4 + $0x4] sm:$0xf] %vm494, %v491
  %497 = vst.msk [vmem:[%s4 + $0x8] sm:$0xf] %vm494, %v492
  %498 = vst.msk [vmem:[%s4 + $0xc] sm:$0xf] %vm494, %v493
  // Predicated region
  $region18: #{resnet_forward.16} parent=0 // pred_check
    _
  $region19: #{resnet_forward.16} parent=0 // pred_check_branch
    %500 = sbr.rel (0) target = $region21
  $region20: #{resnet_forward.16} parent=0 // pred_region
    _
  $region21: #{resnet_forward.16} parent=0 // pred_fallthru
    _
  // Predicated region
  $region22: #{resnet_forward.16} parent=0 // pred_check
    _
  $region23: #{resnet_forward.16} parent=0 // pred_check_branch
    %502 = sbr.rel (0) target = $region25
  $region24: #{resnet_forward.16} parent=0 // pred_region
    _
  $region25: #{resnet_forward.16} parent=0 // pred_fallthru
    _

// kernel: resnet_forward.17
$region0: #{resnet_forward.17}
  #allocation0 [shape = 'u32[]', space=smem, size = 0x4, offset = 0x4, fixed_abs, tag = 'smem constant byte address 0x4 - core index']
  #allocation1 [shape = 'u32[72,128]{1,0:T(1,128)}', space=vmem, size = 0x9000, scoped, tag = 'internal scratch']
  %s0 = inlined_call_operand.vmem [shape: bf16[8,576], index: 0, kind: input, shape index: {}]
  %s1 = inlined_call_operand.vmem [shape: bf16[576,128], index: 1, kind: input, shape index: {}]
  %s2 = inlined_call_operand.vmem [shape: f32[1,128], index: 2, kind: input, shape index: {}]
  %s3 = inlined_call_operand.vmem [shape: bf16[64,128], index: 3, kind: input, shape index: {}]
  %s4 = inlined_call_operand.vmem [shape: f32[1,128], index: 4, kind: input, shape index: {}]
  %s5 = inlined_call_operand.vmem [shape: bf16[8,128], index: 5, kind: output, shape index: {0}]
  %s6 = inlined_call_operand.vmem [shape: bf16[8,128], index: 6, kind: output, shape index: {1}]
  %7 = xla_tuple %s5, %s6
  %s8 = sld [smem:[#allocation0]]
  $region38: #{resnet_forward.17} parent=0
    _
  %s10 = ssub.s32 1, %s8
  %s11 = scalar_select 0, %s10, %s8
  // Predicated region
  $region2: #{resnet_forward.17} parent=0 // pred_check
    _
  $region3: #{resnet_forward.17} parent=0 // pred_check_branch
    %13 = sbr.rel (0) target = $region5
  $region4: #{resnet_forward.17} parent=0 // pred_region
    _
  $region5: #{resnet_forward.17} parent=0 // pred_fallthru
    _
  // Predicated region
  $region6: #{resnet_forward.17} parent=0 // pred_check
    _
  $region7: #{resnet_forward.17} parent=0 // pred_check_branch
    %15 = sbr.rel (0) target = $region9
  $region8: #{resnet_forward.17} parent=0 // pred_region
    _
  $region9: #{resnet_forward.17} parent=0 // pred_fallthru
    _
  // Predicated region
  $region10: #{resnet_forward.17} parent=0 // pred_check
    _
  $region11: #{resnet_forward.17} parent=0 // pred_check_branch
    %17 = sbr.rel (0) target = $region13
  $region12: #{resnet_forward.17} parent=0 // pred_region
    _
  $region13: #{resnet_forward.17} parent=0 // pred_fallthru
    _
  // Predicated region
  $region14: #{resnet_forward.17} parent=0 // pred_check
    _
  $region15: #{resnet_forward.17} parent=0 // pred_check_branch
    %19 = sbr.rel (0) target = $region17
  $region16: #{resnet_forward.17} parent=0 // pred_region
    _
  $region17: #{resnet_forward.17} parent=0 // pred_fallthru
    _
  // Predicated region
  $region18: #{resnet_forward.17} parent=0 // pred_check
    _
  $region19: #{resnet_forward.17} parent=0 // pred_check_branch
    %21 = sbr.rel (0) target = $region21
  $region20: #{resnet_forward.17} parent=0 // pred_region
    _
  $region21: #{resnet_forward.17} parent=0 // pred_fallthru
    _
  %v23 = vld [vmem:[%s0] sm:$0xff]
  %v24 = vld [vmem:[%s0 + $0x8] sm:$0xff]
  %v25 = vld [vmem:[%s0 + $0x10] sm:$0xf]
  %v26 = vld [vmem:[%s1] sm:$0xf]
  %v27 = vld [vmem:[%s1 + $0x4] sm:$0xf]
  %v28 = vld [vmem:[%s1 + $0x8] sm:$0xf]
  %v29 = vld [vmem:[%s1 + $0xc] sm:$0xf]
  %v30 = vld [vmem:[%s1 + $0x10] sm:$0xf]
  %v31 = vld [vmem:[%s1 + $0x14] sm:$0xf]
  %v32 = vld [vmem:[%s1 + $0x18] sm:$0xf]
  %v33 = vld [vmem:[%s1 + $0x1c] sm:$0xf]
  %v34 = vld [vmem:[%s1 + $0x20] sm:$0xf]
  %v35 = vld [vmem:[%s1 + $0x24] sm:$0xf]
  %v36 = vld [vmem:[%s1 + $0x28] sm:$0xf]
  %v37 = vld [vmem:[%s1 + $0x2c] sm:$0xf]
  %v38 = vld [vmem:[%s1 + $0x30] sm:$0xf]
  %v39 = vld [vmem:[%s1 + $0x34] sm:$0xf]
  %v40 = vld [vmem:[%s1 + $0x38] sm:$0xf]
  %v41 = vld [vmem:[%s1 + $0x3c] sm:$0xf]
  %v42 = vld [vmem:[%s1 + $0x40] sm:$0xf]
  %v43 = vld [vmem:[%s1 + $0x44] sm:$0xf]
  %v44 = vld [vmem:[%s1 + $0x48] sm:$0xf]
  %v45 = vld [vmem:[%s1 + $0x4c] sm:$0xf]
  %v46 = vld [vmem:[%s1 + $0x50] sm:$0xf]
  %v47 = vld [vmem:[%s1 + $0x54] sm:$0xf]
  %v48 = vld [vmem:[%s1 + $0x58] sm:$0xf]
  %v49 = vld [vmem:[%s1 + $0x5c] sm:$0xf]
  %v50 = vld [vmem:[%s1 + $0x60] sm:$0xf]
  %v51 = vld [vmem:[%s1 + $0x64] sm:$0xf]
  %v52 = vld [vmem:[%s1 + $0x68] sm:$0xf]
  %v53 = vld [vmem:[%s1 + $0x6c] sm:$0xf]
  %v54 = vld [vmem:[%s1 + $0x70] sm:$0xf]
  %v55 = vld [vmem:[%s1 + $0x74] sm:$0xf]
  %v56 = vld [vmem:[%s1 + $0x78] sm:$0xf]
  %v57 = vld [vmem:[%s1 + $0x7c] sm:$0xf]
  %v58 = vld [vmem:[%s1 + $0x80] sm:$0xf]
  %v59 = vld [vmem:[%s1 + $0x84] sm:$0xf]
  %v60 = vld [vmem:[%s1 + $0x88] sm:$0xf]
  %v61 = vld [vmem:[%s1 + $0x8c] sm:$0xf]
  %v62 = vld [vmem:[%s1 + $0x90] sm:$0xf]
  %v63 = vld [vmem:[%s1 + $0x94] sm:$0xf]
  %v64 = vld [vmem:[%s1 + $0x98] sm:$0xf]
  %v65 = vld [vmem:[%s1 + $0x9c] sm:$0xf]
  %v66 = vld [vmem:[%s1 + $0xa0] sm:$0xf]
  %v67 = vld [vmem:[%s1 + $0xa4] sm:$0xf]
  %v68 = vld [vmem:[%s1 + $0xa8] sm:$0xf]
  %v69 = vld [vmem:[%s1 + $0xac] sm:$0xf]
  %v70 = vld [vmem:[%s1 + $0xb0] sm:$0xf]
  %v71 = vld [vmem:[%s1 + $0xb4] sm:$0xf]
  %v72 = vld [vmem:[%s1 + $0xb8] sm:$0xf]
  %v73 = vld [vmem:[%s1 + $0xbc] sm:$0xf]
  %v74 = vld [vmem:[%s1 + $0xc0] sm:$0xf]
  %v75 = vld [vmem:[%s1 + $0xc4] sm:$0xf]
  %v76 = vld [vmem:[%s1 + $0xc8] sm:$0xf]
  %v77 = vld [vmem:[%s1 + $0xcc] sm:$0xf]
  %v78 = vld [vmem:[%s1 + $0xd0] sm:$0xf]
  %v79 = vld [vmem:[%s1 + $0xd4] sm:$0xf]
  %v80 = vld [vmem:[%s1 + $0xd8] sm:$0xf]
  %v81 = vld [vmem:[%s1 + $0xdc] sm:$0xf]
  %v82 = vld [vmem:[%s1 + $0xe0] sm:$0xf]
  %v83 = vld [vmem:[%s1 + $0xe4] sm:$0xf]
  %v84 = vld [vmem:[%s1 + $0xe8] sm:$0xf]
  %v85 = vld [vmem:[%s1 + $0xec] sm:$0xf]
  %v86 = vld [vmem:[%s1 + $0xf0] sm:$0xf]
  %v87 = vld [vmem:[%s1 + $0xf4] sm:$0xf]
  %v88 = vld [vmem:[%s1 + $0xf8] sm:$0xf]
  %v89 = vld [vmem:[%s1 + $0xfc] sm:$0xf]
  %v90 = vld [vmem:[%s1 + $0x100] sm:$0xf]
  %v91 = vld [vmem:[%s1 + $0x104] sm:$0xf]
  %v92 = vld [vmem:[%s1 + $0x108] sm:$0xf]
  %v93 = vld [vmem:[%s1 + $0x10c] sm:$0xf]
  %v94 = vld [vmem:[%s1 + $0x110] sm:$0xf]
  %v95 = vld [vmem:[%s1 + $0x114] sm:$0xf]
  %v96 = vld [vmem:[%s1 + $0x118] sm:$0xf]
  %v97 = vld [vmem:[%s1 + $0x11c] sm:$0xf]
  %v98 = vld [vmem:[%s2] sm:$0x1]
  %v100 = vperm.slane %v98, 0
  %v105 = vunpack.c.l.b16 %v23
  %v106 = vunpack.c.h.b16 %v23
  %v107 = vunpack.c.l.b16 %v24
  %v108 = vunpack.c.h.b16 %v24
  %v109 = vunpack.c.l.b16 %v25
  %v110 = vpack.c.b16 %v105, %v105
  %v111 = vpack.c.b16 %v106, %v106
  %v112 = vpack.c.b16 %v107, %v107
  %v113 = vpack.c.b16 %v108, %v108
  %v114 = vpack.c.b16 %v109, %v109
  %v191 = vunpack.c.l.b16 %v26
  %v192 = vunpack.c.l.b16 %v27
  %v193 = vunpack.c.l.b16 %v28
  %v194 = vunpack.c.l.b16 %v29
  %v195 = vunpack.c.l.b16 %v30
  %v196 = vunpack.c.l.b16 %v31
  %v197 = vunpack.c.l.b16 %v32
  %v198 = vunpack.c.l.b16 %v33
  %v199 = vunpack.c.l.b16 %v34
  %v200 = vunpack.c.l.b16 %v35
  %v201 = vunpack.c.l.b16 %v36
  %v202 = vunpack.c.l.b16 %v37
  %v203 = vunpack.c.l.b16 %v38
  %v204 = vunpack.c.l.b16 %v39
  %v205 = vunpack.c.l.b16 %v40
  %v206 = vunpack.c.l.b16 %v41
  %v207 = vunpack.c.l.b16 %v42
  %v208 = vunpack.c.l.b16 %v43
  %v209 = vunpack.c.l.b16 %v44
  %v210 = vunpack.c.l.b16 %v45
  %v211 = vunpack.c.l.b16 %v46
  %v212 = vunpack.c.l.b16 %v47
  %v213 = vunpack.c.l.b16 %v48
  %v214 = vunpack.c.l.b16 %v49
  %v215 = vunpack.c.l.b16 %v50
  %v216 = vunpack.c.l.b16 %v51
  %v217 = vunpack.c.l.b16 %v52
  %v218 = vunpack.c.l.b16 %v53
  %v219 = vunpack.c.l.b16 %v54
  %v220 = vunpack.c.l.b16 %v55
  %v221 = vunpack.c.l.b16 %v56
  %v222 = vunpack.c.l.b16 %v57
  %v223 = vunpack.c.l.b16 %v58
  %v224 = vunpack.c.l.b16 %v59
  %v225 = vunpack.c.l.b16 %v60
  %v226 = vunpack.c.l.b16 %v61
  %v227 = vunpack.c.l.b16 %v62
  %v228 = vunpack.c.l.b16 %v63
  %v229 = vunpack.c.l.b16 %v64
  %v230 = vunpack.c.l.b16 %v65
  %v231 = vunpack.c.l.b16 %v66
  %v232 = vunpack.c.l.b16 %v67
  %v233 = vunpack.c.l.b16 %v68
  %v234 = vunpack.c.l.b16 %v69
  %v235 = vunpack.c.l.b16 %v70
  %v236 = vunpack.c.l.b16 %v71
  %v237 = vunpack.c.l.b16 %v72
  %v238 = vunpack.c.l.b16 %v73
  %v239 = vunpack.c.l.b16 %v74
  %v240 = vunpack.c.l.b16 %v75
  %v241 = vunpack.c.l.b16 %v76
  %v242 = vunpack.c.l.b16 %v77
  %v243 = vunpack.c.l.b16 %v78
  %v244 = vunpack.c.l.b16 %v79
  %v245 = vunpack.c.l.b16 %v80
  %v246 = vunpack.c.l.b16 %v81
  %v247 = vunpack.c.l.b16 %v82
  %v248 = vunpack.c.l.b16 %v83
  %v249 = vunpack.c.l.b16 %v84
  %v250 = vunpack.c.l.b16 %v85
  %v251 = vunpack.c.l.b16 %v86
  %v252 = vunpack.c.l.b16 %v87
  %v253 = vunpack.c.l.b16 %v88
  %v254 = vunpack.c.l.b16 %v89
  %v255 = vunpack.c.l.b16 %v90
  %v256 = vunpack.c.l.b16 %v91
  %v257 = vunpack.c.l.b16 %v92
  %v258 = vunpack.c.l.b16 %v93
  %v259 = vunpack.c.l.b16 %v94
  %v260 = vunpack.c.l.b16 %v95
  %v261 = vunpack.c.l.b16 %v96
  %v262 = vunpack.c.l.b16 %v97
  %v263 = vpack.c.b16 %v192, %v191
  %v264 = vpack.c.b16 %v194, %v193
  %v265 = vpack.c.b16 %v196, %v195
  %v266 = vpack.c.b16 %v198, %v197
  %v267 = vpack.c.b16 %v200, %v199
  %v268 = vpack.c.b16 %v202, %v201
  %v269 = vpack.c.b16 %v204, %v203
  %v270 = vpack.c.b16 %v206, %v205
  %v271 = vpack.c.b16 %v208, %v207
  %v272 = vpack.c.b16 %v210, %v209
  %v273 = vpack.c.b16 %v212, %v211
  %v274 = vpack.c.b16 %v214, %v213
  %v275 = vpack.c.b16 %v216, %v215
  %v276 = vpack.c.b16 %v218, %v217
  %v277 = vpack.c.b16 %v220, %v219
  %v278 = vpack.c.b16 %v222, %v221
  %v279 = vpack.c.b16 %v224, %v223
  %v280 = vpack.c.b16 %v226, %v225
  %v281 = vpack.c.b16 %v228, %v227
  %v282 = vpack.c.b16 %v230, %v229
  %v283 = vpack.c.b16 %v232, %v231
  %v284 = vpack.c.b16 %v234, %v233
  %v285 = vpack.c.b16 %v236, %v235
  %v286 = vpack.c.b16 %v238, %v237
  %v287 = vpack.c.b16 %v240, %v239
  %v288 = vpack.c.b16 %v242, %v241
  %v289 = vpack.c.b16 %v244, %v243
  %v290 = vpack.c.b16 %v246, %v245
  %v291 = vpack.c.b16 %v248, %v247
  %v292 = vpack.c.b16 %v250, %v249
  %v293 = vpack.c.b16 %v252, %v251
  %v294 = vpack.c.b16 %v254, %v253
  %v295 = vpack.c.b16 %v256, %v255
  %v296 = vpack.c.b16 %v258, %v257
  %v297 = vpack.c.b16 %v260, %v259
  %v298 = vpack.c.b16 %v262, %v261
  %vm335 = vcmask 523264
  %v337 = vsel %vm335, %v114, 0
  %339 = vmatpush.bf16.msra.mxu0 %v270
  %340 = vmatpush.bf16.msra.mxu0 %v269
  %341 = vmatpush.bf16.msra.mxu0 %v268
  %342 = vmatpush.bf16.msra.mxu0 %v267
  %343 = vmatpush.bf16.msra.mxu0 %v266
  %344 = vmatpush.bf16.msra.mxu0 %v265
  %345 = vmatpush.bf16.msra.mxu0 %v264
  %346 = vmatpush.bf16.msra.mxu0 %v263
  %347 = vmatmul.bf16.gmra.mxu0 %v110
  %v348 = vpop.f32.mrf.mxu0
  %v349 = vadd.f32 %v100, %v348
  %v350 = vpop.f32.mrf.mxu0
  %351 = vdwg.mxu0
  %352 = vmatpush.bf16.msra.mxu0 %v278
  %353 = vmatpush.bf16.msra.mxu0 %v277
  %354 = vmatpush.bf16.msra.mxu0 %v276
  %355 = vmatpush.bf16.msra.mxu0 %v275
  %356 = vmatpush.bf16.msra.mxu0 %v274
  %357 = vmatpush.bf16.msra.mxu0 %v273
  %358 = vmatpush.bf16.msra.mxu0 %v272
  %359 = vmatpush.bf16.msra.mxu0 %v271
  %360 = vmatmul.bf16.gmra.mxu0 %v111
  %v361 = vpop.f32.mrf.mxu0
  %v362 = vadd.f32 %v349, %v361
  %v363 = vpop.f32.mrf.mxu0
  %364 = vdwg.mxu0
  %365 = vmatpush.bf16.msra.mxu0 %v286
  %366 = vmatpush.bf16.msra.mxu0 %v285
  %367 = vmatpush.bf16.msra.mxu0 %v284
  %368 = vmatpush.bf16.msra.mxu0 %v283
  %369 = vmatpush.bf16.msra.mxu0 %v282
  %370 = vmatpush.bf16.msra.mxu0 %v281
  %371 = vmatpush.bf16.msra.mxu0 %v280
  %372 = vmatpush.bf16.msra.mxu0 %v279
  %373 = vmatmul.bf16.gmra.mxu0 %v112
  %v374 = vpop.f32.mrf.mxu0
  %v375 = vadd.f32 %v362, %v374
  %v376 = vpop.f32.mrf.mxu0
  %377 = vdwg.mxu0
  %378 = vmatpush.bf16.msra.mxu0 %v294
  %379 = vmatpush.bf16.msra.mxu0 %v293
  %380 = vmatpush.bf16.msra.mxu0 %v292
  %381 = vmatpush.bf16.msra.mxu0 %v291
  %382 = vmatpush.bf16.msra.mxu0 %v290
  %383 = vmatpush.bf16.msra.mxu0 %v289
  %384 = vmatpush.bf16.msra.mxu0 %v288
  %385 = vmatpush.bf16.msra.mxu0 %v287
  %386 = vmatmul.bf16.gmra.mxu0 %v113
  %v387 = vpop.f32.mrf.mxu0
  %v388 = vadd.f32 %v375, %v387
  %v389 = vpop.f32.mrf.mxu0
  %390 = vdwg.mxu0
  %391 = vmatpush.bf16.msra.mxu0 0
  %392 = vmatpush.bf16.msra.mxu0 0
  %393 = vmatpush.bf16.msra.mxu0 0
  %394 = vmatpush.bf16.msra.mxu0 0
  %395 = vmatpush.bf16.msra.mxu0 %v298
  %396 = vmatpush.bf16.msra.mxu0 %v297
  %397 = vmatpush.bf16.msra.mxu0 %v296
  %398 = vmatpush.bf16.msra.mxu0 %v295
  %399 = vmatmul.bf16.gmra.mxu0 %v337
  %v400 = vpop.f32.mrf.mxu0
  %v401 = vadd.f32 %v388, %v400
  %v402 = vpop.f32.mrf.mxu0
  %403 = vdwg.mxu0
  %v404 = vmax.f32 %v401, 0.0
  %v405 = vpack.c.bf16 %v404, %v404
  %406 = vst [vmem:[%s5] sm:$0xf] %v405
  %v407 = vld [vmem:[%s0 + $0x8] sm:$0xf]
  %v408 = vld [vmem:[%s3] sm:$0xf]
  %v409 = vld [vmem:[%s3 + $0x4] sm:$0xf]
  %v410 = vld [vmem:[%s3 + $0x8] sm:$0xf]
  %v411 = vld [vmem:[%s3 + $0xc] sm:$0xf]
  %v412 = vld [vmem:[%s3 + $0x10] sm:$0xf]
  %v413 = vld [vmem:[%s3 + $0x14] sm:$0xf]
  %v414 = vld [vmem:[%s3 + $0x18] sm:$0xf]
  %v415 = vld [vmem:[%s3 + $0x1c] sm:$0xf]
  %v416 = vld [vmem:[%s4] sm:$0x1]
  %v418 = vperm.slane %v416, 0
  %v428 = vunpack.c.l.b16 %v408
  %v429 = vunpack.c.l.b16 %v409
  %v430 = vunpack.c.l.b16 %v410
  %v431 = vunpack.c.l.b16 %v411
  %v432 = vunpack.c.l.b16 %v412
  %v433 = vunpack.c.l.b16 %v413
  %v434 = vunpack.c.l.b16 %v414
  %v435 = vunpack.c.l.b16 %v415
  %v436 = vpack.c.b16 %v429, %v428
  %v437 = vpack.c.b16 %v431, %v430
  %v438 = vpack.c.b16 %v433, %v432
  %v439 = vpack.c.b16 %v435, %v434
  %v445 = vsel %vm335, %v407, 0
  %447 = vmatpush.bf16.msra.mxu0 0
  %448 = vmatpush.bf16.msra.mxu0 0
  %449 = vmatpush.bf16.msra.mxu0 0
  %450 = vmatpush.bf16.msra.mxu0 0
  %451 = vmatpush.bf16.msra.mxu0 %v439
  %452 = vmatpush.bf16.msra.mxu0 %v438
  %453 = vmatpush.bf16.msra.mxu0 %v437
  %454 = vmatpush.bf16.msra.mxu0 %v436
  %455 = vmatmul.bf16.gmra.mxu0 %v445
  %v456 = vpop.f32.mrf.mxu0
  %v457 = vadd.f32 %v418, %v456
  %v458 = vpop.f32.mrf.mxu0
  %459 = vdwg.mxu0
  %v460 = vpack.c.bf16 %v457, %v457
  %461 = vst [vmem:[%s6] sm:$0xf] %v460
  // Predicated region
  $region22: #{resnet_forward.17} parent=0 // pred_check
    _
  $region23: #{resnet_forward.17} parent=0 // pred_check_branch
    %463 = sbr.rel (0) target = $region25
  $region24: #{resnet_forward.17} parent=0 // pred_region
    _
  $region25: #{resnet_forward.17} parent=0 // pred_fallthru
    _
  // Predicated region
  $region26: #{resnet_forward.17} parent=0 // pred_check
    _
  $region27: #{resnet_forward.17} parent=0 // pred_check_branch
    %465 = sbr.rel (0) target = $region29
  $region28: #{resnet_forward.17} parent=0 // pred_region
    _
  $region29: #{resnet_forward.17} parent=0 // pred_fallthru
    _
  // Predicated region
  $region30: #{resnet_forward.17} parent=0 // pred_check
    _
  $region31: #{resnet_forward.17} parent=0 // pred_check_branch
    %467 = sbr.rel (0) target = $region33
  $region32: #{resnet_forward.17} parent=0 // pred_region
    _
  $region33: #{resnet_forward.17} parent=0 // pred_fallthru
    _
  // Predicated region
  $region34: #{resnet_forward.17} parent=0 // pred_check
    _
  $region35: #{resnet_forward.17} parent=0 // pred_check_branch
    %469 = sbr.rel (0) target = $region37
  $region36: #{resnet_forward.17} parent=0 // pred_region
    _
  $region37: #{resnet_forward.17} parent=0 // pred_fallthru
    _

// kernel: resnet_forward.19
$region0: #{resnet_forward.19}
  #allocation0 [shape = 'u32[]', space=smem, size = 0x4, offset = 0x4, fixed_abs, tag = 'smem constant byte address 0x4 - core index']
  #allocation1 [shape = 'u32[72,128]{1,0:T(1,128)}', space=vmem, size = 0x9000, scoped, tag = 'internal scratch']
  %s0 = inlined_call_operand.vmem [shape: bf16[2,4,128], index: 0, kind: input, shape index: {}]
  %s1 = inlined_call_operand.vmem [shape: bf16[128,10], index: 1, kind: input, shape index: {}]
  %s2 = inlined_call_operand.vmem [shape: f32[1,10], index: 2, kind: input, shape index: {}]
  %s3 = inlined_call_operand.hbm [shape: f32[2,10], index: 3, kind: output, shape index: {}]
  %s4 = sld [smem:[#allocation0]]
  $region22: #{resnet_forward.19} parent=0
    _
  %s6 = ssub.s32 1, %s4
  %s7 = scalar_select 0, %s6, %s4
  $region1: #{resnet_forward.19} parent=0
    #allocation2 [shape = 'u8[1024]{0}', space=vmem, size = 0x400, scoped, tag = 'output window, operand 0, single buffered']
    #allocation3 [shape = 's32[1]{0}', space=sflag, size = 0x4, scoped, tag = 'scoped memory for resnet_forward.19']
    %8 = vsyncpa [#allocation3], 0
    // Predicated region
    $region2: #{resnet_forward.19} parent=1 // pred_check
      _
    $region3: #{resnet_forward.19} parent=1 // pred_check_branch
      %10 = sbr.rel (0) target = $region5
    $region4: #{resnet_forward.19} parent=1 // pred_region
      _
    $region5: #{resnet_forward.19} parent=1 // pred_fallthru
      _
    // Predicated region
    $region6: #{resnet_forward.19} parent=1 // pred_check
      _
    $region7: #{resnet_forward.19} parent=1 // pred_check_branch
      %12 = sbr.rel (0) target = $region9
    $region8: #{resnet_forward.19} parent=1 // pred_region
      _
    $region9: #{resnet_forward.19} parent=1 // pred_fallthru
      _
    // Predicated region
    $region10: #{resnet_forward.19} parent=1 // pred_check
      _
    $region11: #{resnet_forward.19} parent=1 // pred_check_branch
      %14 = sbr.rel (0) target = $region13
    $region12: #{resnet_forward.19} parent=1 // pred_region
      _
    $region13: #{resnet_forward.19} parent=1 // pred_fallthru
      _
    %v15 = vld [vmem:[%s0] sm:$0x3]
    %v16 = vld [vmem:[%s0 + $0x2] sm:$0x3]
    %v17 = vunpack.c.l.bf16 %v15
    %v18 = vunpack.c.l.bf16 %v16
    %vm19 = vcmask 1043456
    %v20 = vsel %vm19, %v17, 0.0
    %v21 = vrot.slane %v20, 4
    %v22 = vadd.f32 %v20, %v21
    %v23 = vrot.slane %v22, 2
    %v24 = vadd.f32 %v22, %v23
    %v25 = vrot.slane %v24, 1
    %v26 = vadd.f32 %v24, %v25
    %v27 = vsel %vm19, %v18, 0.0
    %v28 = vrot.slane %v27, 4
    %v29 = vadd.f32 %v27, %v28
    %v30 = vrot.slane %v29, 2
    %v31 = vadd.f32 %v29, %v30
    %v32 = vrot.slane %v31, 1
    %v33 = vadd.f32 %v31, %v32
    %v34 = vrcp.pop 4.0
    %v35 = vmul.f32 4.0, %v34
    %v36 = vsub.f32 1.0, %v35
    %v37 = vmul.f32 %v34, %v36
    %v38 = vadd.f32 %v34, %v37
    %vm39 = vweird.f32 %v34
    %v40 = vsel %vm39, %v34, %v38
    %v41 = vmul.f32 %v26, %v40
    %v42 = vmul.f32 %v33, %v40
    %v43 = vpack.c.bf16 %v41, %v41
    %v44 = vpack.c.bf16 %v42, %v42
    %v45 = vld [vmem:[%s1] sm:$0xf]
    %v46 = vld [vmem:[%s1 + $0x4] sm:$0xf]
    %v47 = vld [vmem:[%s1 + $0x8] sm:$0xf]
    %v48 = vld [vmem:[%s1 + $0xc] sm:$0xf]
    %v49 = vld [vmem:[%s1 + $0x10] sm:$0xf]
    %v50 = vld [vmem:[%s1 + $0x14] sm:$0xf]
    %v51 = vld [vmem:[%s1 + $0x18] sm:$0xf]
    %v52 = vld [vmem:[%s1 + $0x1c] sm:$0xf]
    %v53 = vld [vmem:[%s1 + $0x20] sm:$0xf]
    %v54 = vld [vmem:[%s1 + $0x24] sm:$0xf]
    %v55 = vld [vmem:[%s1 + $0x28] sm:$0xf]
    %v56 = vld [vmem:[%s1 + $0x2c] sm:$0xf]
    %v57 = vld [vmem:[%s1 + $0x30] sm:$0xf]
    %v58 = vld [vmem:[%s1 + $0x34] sm:$0xf]
    %v59 = vld [vmem:[%s1 + $0x38] sm:$0xf]
    %v60 = vld [vmem:[%s1 + $0x3c] sm:$0xf]
    %v61 = vld [vmem:[%s2] sm:$0x1]
    %v63 = vperm.slane %v61, 0
    %v67 = vunpack.c.l.b16 %v43
    %v68 = vunpack.c.l.b16 %v44
    %vm69 = vcmask 1041409
    %v70 = vsel %vm69, %v68, %v67
    %v71 = vpack.c.b16 %v70, %v70
    %v89 = vunpack.c.l.b16 %v45
    %v90 = vunpack.c.l.b16 %v46
    %v91 = vunpack.c.l.b16 %v47
    %v92 = vunpack.c.l.b16 %v48
    %v93 = vunpack.c.l.b16 %v49
    %v94 = vunpack.c.l.b16 %v50
    %v95 = vunpack.c.l.b16 %v51
    %v96 = vunpack.c.l.b16 %v52
    %v97 = vunpack.c.l.b16 %v53
    %v98 = vunpack.c.l.b16 %v54
    %v99 = vunpack.c.l.b16 %v55
    %v100 = vunpack.c.l.b16 %v56
    %v101 = vunpack.c.l.b16 %v57
    %v102 = vunpack.c.l.b16 %v58
    %v103 = vunpack.c.l.b16 %v59
    %v104 = vunpack.c.l.b16 %v60
    %v105 = vpack.c.b16 %v90, %v89
    %v106 = vpack.c.b16 %v92, %v91
    %v107 = vpack.c.b16 %v94, %v93
    %v108 = vpack.c.b16 %v96, %v95
    %v109 = vpack.c.b16 %v98, %v97
    %v110 = vpack.c.b16 %v100, %v99
    %v111 = vpack.c.b16 %v102, %v101
    %v112 = vpack.c.b16 %v104, %v103
    %121 = vmatpush.bf16.msra.mxu0 %v112
    %122 = vmatpush.bf16.msra.mxu0 %v111
    %123 = vmatpush.bf16.msra.mxu0 %v110
    %124 = vmatpush.bf16.msra.mxu0 %v109
    %125 = vmatpush.bf16.msra.mxu0 %v108
    %126 = vmatpush.bf16.msra.mxu0 %v107
    %127 = vmatpush.bf16.msra.mxu0 %v106
    %128 = vmatpush.bf16.msra.mxu0 %v105
    %129 = vmatmul.bf16.gmra.mxu0 %v71
    %v130 = vpop.f32.mrf.mxu0
    %v131 = vadd.f32 %v63, %v130
    %v132 = vpop.f32.mrf.mxu0
    %133 = vdwg.mxu0
    %vm134 = vcmask 74752
    %v135 = vsel %vm134, %v131, -inf
    %136 = vmax.xlane.f32.xlu0 %v135
    %v137 = vpop.xlane.xlu0 %136
    %v138 = vsub.f32 %v131, %v137
    %v139 = vmul.f32 %v138, 1.442695
    %v140 = vpow.pop %v139
    %v141 = vsel %vm134, %v140, 0.0
    %142 = vadd.xlane.f32.xlu0 %v141
    %v143 = vpop.xlane.xlu0 %142
    %v144 = vlog2.pop %v143
    %v145 = vmul.f32 %v144, 0.6931472
    %v146 = vsub.f32 %v138, %v145
    %147 = vst.msk [vmem:[#allocation2] sm:$0x3] %vm134, %v146
    // Predicated region
    $region14: #{resnet_forward.19} parent=1 // pred_check
      _
    $region15: #{resnet_forward.19} parent=1 // pred_check_branch
      %149 = sbr.rel (0) target = $region17
    $region16: #{resnet_forward.19} parent=1 // pred_region
      %151 = vsyncadd [#allocation3], 0
      %s153 = sshll.u32 [#allocation2], 4
      %s154 = int_to_ptr.vmem [resolvable:$true] %s153
      %s155 = sshll.u32 %s3, 4
      %s156 = int_to_ptr.hbm [resolvable:$true] %s155
      %158 = dma.vmem_to_hbm [thread:$0]  %s154, 32, %s156, [#allocation3]
    $region17: #{resnet_forward.19} parent=1 // pred_fallthru
      _
    // Predicated region
    $region18: #{resnet_forward.19} parent=1 // pred_check
      _
    $region19: #{resnet_forward.19} parent=1 // pred_check_branch
      %160 = sbr.rel (0) target = $region21
    $region20: #{resnet_forward.19} parent=1 // pred_region
      %162 = dma.done [#allocation3], 32
    $region21: #{resnet_forward.19} parent=1 // pred_fallthru
      _
    %163 = vsyncpa [#allocation3], 1

// kernel: resnet_forward.18
$region0: #{resnet_forward.18}
  #allocation0 [shape = 'u32[]', space=smem, size = 0x4, offset = 0x4, fixed_abs, tag = 'smem constant byte address 0x4 - core index']
  #allocation1 [shape = 'u32[72,128]{1,0:T(1,128)}', space=vmem, size = 0x9000, scoped, tag = 'internal scratch']
  %s0 = inlined_call_operand.vmem [shape: bf16[8,1152], index: 0, kind: input, shape index: {}]
  %s1 = inlined_call_operand.vmem [shape: bf16[1152,128], index: 1, kind: input, shape index: {}]
  %s2 = inlined_call_operand.vmem [shape: f32[1,128], index: 2, kind: input, shape index: {}]
  %s3 = inlined_call_operand.vmem [shape: bf16[8,128], index: 3, kind: input, shape index: {}]
  %s4 = inlined_call_operand.vmem [shape: bf16[8,128], index: 4, kind: output, shape index: {}]
  %s5 = sld [smem:[#allocation0]]
  $region26: #{resnet_forward.18} parent=0
    _
  %s7 = ssub.s32 1, %s5
  %s8 = scalar_select 0, %s7, %s5
  // Predicated region
  $region2: #{resnet_forward.18} parent=0 // pred_check
    _
  $region3: #{resnet_forward.18} parent=0 // pred_check_branch
    %10 = sbr.rel (0) target = $region5
  $region4: #{resnet_forward.18} parent=0 // pred_region
    _
  $region5: #{resnet_forward.18} parent=0 // pred_fallthru
    _
  // Predicated region
  $region6: #{resnet_forward.18} parent=0 // pred_check
    _
  $region7: #{resnet_forward.18} parent=0 // pred_check_branch
    %12 = sbr.rel (0) target = $region9
  $region8: #{resnet_forward.18} parent=0 // pred_region
    _
  $region9: #{resnet_forward.18} parent=0 // pred_fallthru
    _
  // Predicated region
  $region10: #{resnet_forward.18} parent=0 // pred_check
    _
  $region11: #{resnet_forward.18} parent=0 // pred_check_branch
    %14 = sbr.rel (0) target = $region13
  $region12: #{resnet_forward.18} parent=0 // pred_region
    _
  $region13: #{resnet_forward.18} parent=0 // pred_fallthru
    _
  // Predicated region
  $region14: #{resnet_forward.18} parent=0 // pred_check
    _
  $region15: #{resnet_forward.18} parent=0 // pred_check_branch
    %16 = sbr.rel (0) target = $region17
  $region16: #{resnet_forward.18} parent=0 // pred_region
    _
  $region17: #{resnet_forward.18} parent=0 // pred_fallthru
    _
  %v17 = vld [vmem:[%s0] sm:$0xff]
  %v18 = vld [vmem:[%s0 + $0x8] sm:$0xff]
  %v19 = vld [vmem:[%s0 + $0x10] sm:$0xff]
  %v20 = vld [vmem:[%s0 + $0x18] sm:$0xff]
  %v21 = vld [vmem:[%s0 + $0x20] sm:$0xf]
  %v22 = vld [vmem:[%s1] sm:$0xf]
  %v23 = vld [vmem:[%s1 + $0x4] sm:$0xf]
  %v24 = vld [vmem:[%s1 + $0x8] sm:$0xf]
  %v25 = vld [vmem:[%s1 + $0xc] sm:$0xf]
  %v26 = vld [vmem:[%s1 + $0x10] sm:$0xf]
  %v27 = vld [vmem:[%s1 + $0x14] sm:$0xf]
  %v28 = vld [vmem:[%s1 + $0x18] sm:$0xf]
  %v29 = vld [vmem:[%s1 + $0x1c] sm:$0xf]
  %v30 = vld [vmem:[%s1 + $0x20] sm:$0xf]
  %v31 = vld [vmem:[%s1 + $0x24] sm:$0xf]
  %v32 = vld [vmem:[%s1 + $0x28] sm:$0xf]
  %v33 = vld [vmem:[%s1 + $0x2c] sm:$0xf]
  %v34 = vld [vmem:[%s1 + $0x30] sm:$0xf]
  %v35 = vld [vmem:[%s1 + $0x34] sm:$0xf]
  %v36 = vld [vmem:[%s1 + $0x38] sm:$0xf]
  %v37 = vld [vmem:[%s1 + $0x3c] sm:$0xf]
  %v38 = vld [vmem:[%s1 + $0x40] sm:$0xf]
  %v39 = vld [vmem:[%s1 + $0x44] sm:$0xf]
  %v40 = vld [vmem:[%s1 + $0x48] sm:$0xf]
  %v41 = vld [vmem:[%s1 + $0x4c] sm:$0xf]
  %v42 = vld [vmem:[%s1 + $0x50] sm:$0xf]
  %v43 = vld [vmem:[%s1 + $0x54] sm:$0xf]
  %v44 = vld [vmem:[%s1 + $0x58] sm:$0xf]
  %v45 = vld [vmem:[%s1 + $0x5c] sm:$0xf]
  %v46 = vld [vmem:[%s1 + $0x60] sm:$0xf]
  %v47 = vld [vmem:[%s1 + $0x64] sm:$0xf]
  %v48 = vld [vmem:[%s1 + $0x68] sm:$0xf]
  %v49 = vld [vmem:[%s1 + $0x6c] sm:$0xf]
  %v50 = vld [vmem:[%s1 + $0x70] sm:$0xf]
  %v51 = vld [vmem:[%s1 + $0x74] sm:$0xf]
  %v52 = vld [vmem:[%s1 + $0x78] sm:$0xf]
  %v53 = vld [vmem:[%s1 + $0x7c] sm:$0xf]
  %v54 = vld [vmem:[%s1 + $0x80] sm:$0xf]
  %v55 = vld [vmem:[%s1 + $0x84] sm:$0xf]
  %v56 = vld [vmem:[%s1 + $0x88] sm:$0xf]
  %v57 = vld [vmem:[%s1 + $0x8c] sm:$0xf]
  %v58 = vld [vmem:[%s1 + $0x90] sm:$0xf]
  %v59 = vld [vmem:[%s1 + $0x94] sm:$0xf]
  %v60 = vld [vmem:[%s1 + $0x98] sm:$0xf]
  %v61 = vld [vmem:[%s1 + $0x9c] sm:$0xf]
  %v62 = vld [vmem:[%s1 + $0xa0] sm:$0xf]
  %v63 = vld [vmem:[%s1 + $0xa4] sm:$0xf]
  %v64 = vld [vmem:[%s1 + $0xa8] sm:$0xf]
  %v65 = vld [vmem:[%s1 + $0xac] sm:$0xf]
  %v66 = vld [vmem:[%s1 + $0xb0] sm:$0xf]
  %v67 = vld [vmem:[%s1 + $0xb4] sm:$0xf]
  %v68 = vld [vmem:[%s1 + $0xb8] sm:$0xf]
  %v69 = vld [vmem:[%s1 + $0xbc] sm:$0xf]
  %v70 = vld [vmem:[%s1 + $0xc0] sm:$0xf]
  %v71 = vld [vmem:[%s1 + $0xc4] sm:$0xf]
  %v72 = vld [vmem:[%s1 + $0xc8] sm:$0xf]
  %v73 = vld [vmem:[%s1 + $0xcc] sm:$0xf]
  %v74 = vld [vmem:[%s1 + $0xd0] sm:$0xf]
  %v75 = vld [vmem:[%s1 + $0xd4] sm:$0xf]
  %v76 = vld [vmem:[%s1 + $0xd8] sm:$0xf]
  %v77 = vld [vmem:[%s1 + $0xdc] sm:$0xf]
  %v78 = vld [vmem:[%s1 + $0xe0] sm:$0xf]
  %v79 = vld [vmem:[%s1 + $0xe4] sm:$0xf]
  %v80 = vld [vmem:[%s1 + $0xe8] sm:$0xf]
  %v81 = vld [vmem:[%s1 + $0xec] sm:$0xf]
  %v82 = vld [vmem:[%s1 + $0xf0] sm:$0xf]
  %v83 = vld [vmem:[%s1 + $0xf4] sm:$0xf]
  %v84 = vld [vmem:[%s1 + $0xf8] sm:$0xf]
  %v85 = vld [vmem:[%s1 + $0xfc] sm:$0xf]
  %v86 = vld [vmem:[%s1 + $0x100] sm:$0xf]
  %v87 = vld [vmem:[%s1 + $0x104] sm:$0xf]
  %v88 = vld [vmem:[%s1 + $0x108] sm:$0xf]
  %v89 = vld [vmem:[%s1 + $0x10c] sm:$0xf]
  %v90 = vld [vmem:[%s1 + $0x110] sm:$0xf]
  %v91 = vld [vmem:[%s1 + $0x114] sm:$0xf]
  %v92 = vld [vmem:[%s1 + $0x118] sm:$0xf]
  %v93 = vld [vmem:[%s1 + $0x11c] sm:$0xf]
  %v94 = vld [vmem:[%s1 + $0x120] sm:$0xf]
  %v95 = vld [vmem:[%s1 + $0x124] sm:$0xf]
  %v96 = vld [vmem:[%s1 + $0x128] sm:$0xf]
  %v97 = vld [vmem:[%s1 + $0x12c] sm:$0xf]
  %v98 = vld [vmem:[%s1 + $0x130] sm:$0xf]
  %v99 = vld [vmem:[%s1 + $0x134] sm:$0xf]
  %v100 = vld [vmem:[%s1 + $0x138] sm:$0xf]
  %v101 = vld [vmem:[%s1 + $0x13c] sm:$0xf]
  %v102 = vld [vmem:[%s1 + $0x140] sm:$0xf]
  %v103 = vld [vmem:[%s1 + $0x144] sm:$0xf]
  %v104 = vld [vmem:[%s1 + $0x148] sm:$0xf]
  %v105 = vld [vmem:[%s1 + $0x14c] sm:$0xf]
  %v106 = vld [vmem:[%s1 + $0x150] sm:$0xf]
  %v107 = vld [vmem:[%s1 + $0x154] sm:$0xf]
  %v108 = vld [vmem:[%s1 + $0x158] sm:$0xf]
  %v109 = vld [vmem:[%s1 + $0x15c] sm:$0xf]
  %v110 = vld [vmem:[%s1 + $0x160] sm:$0xf]
  %v111 = vld [vmem:[%s1 + $0x164] sm:$0xf]
  %v112 = vld [vmem:[%s1 + $0x168] sm:$0xf]
  %v113 = vld [vmem:[%s1 + $0x16c] sm:$0xf]
  %v114 = vld [vmem:[%s1 + $0x170] sm:$0xf]
  %v115 = vld [vmem:[%s1 + $0x174] sm:$0xf]
  %v116 = vld [vmem:[%s1 + $0x178] sm:$0xf]
  %v117 = vld [vmem:[%s1 + $0x17c] sm:$0xf]
  %v118 = vld [vmem:[%s1 + $0x180] sm:$0xf]
  %v119 = vld [vmem:[%s1 + $0x184] sm:$0xf]
  %v120 = vld [vmem:[%s1 + $0x188] sm:$0xf]
  %v121 = vld [vmem:[%s1 + $0x18c] sm:$0xf]
  %v122 = vld [vmem:[%s1 + $0x190] sm:$0xf]
  %v123 = vld [vmem:[%s1 + $0x194] sm:$0xf]
  %v124 = vld [vmem:[%s1 + $0x198] sm:$0xf]
  %v125 = vld [vmem:[%s1 + $0x19c] sm:$0xf]
  %v126 = vld [vmem:[%s1 + $0x1a0] sm:$0xf]
  %v127 = vld [vmem:[%s1 + $0x1a4] sm:$0xf]
  %v128 = vld [vmem:[%s1 + $0x1a8] sm:$0xf]
  %v129 = vld [vmem:[%s1 + $0x1ac] sm:$0xf]
  %v130 = vld [vmem:[%s1 + $0x1b0] sm:$0xf]
  %v131 = vld [vmem:[%s1 + $0x1b4] sm:$0xf]
  %v132 = vld [vmem:[%s1 + $0x1b8] sm:$0xf]
  %v133 = vld [vmem:[%s1 + $0x1bc] sm:$0xf]
  %v134 = vld [vmem:[%s1 + $0x1c0] sm:$0xf]
  %v135 = vld [vmem:[%s1 + $0x1c4] sm:$0xf]
  %v136 = vld [vmem:[%s1 + $0x1c8] sm:$0xf]
  %v137 = vld [vmem:[%s1 + $0x1cc] sm:$0xf]
  %v138 = vld [vmem:[%s1 + $0x1d0] sm:$0xf]
  %v139 = vld [vmem:[%s1 + $0x1d4] sm:$0xf]
  %v140 = vld [vmem:[%s1 + $0x1d8] sm:$0xf]
  %v141 = vld [vmem:[%s1 + $0x1dc] sm:$0xf]
  %v142 = vld [vmem:[%s1 + $0x1e0] sm:$0xf]
  %v143 = vld [vmem:[%s1 + $0x1e4] sm:$0xf]
  %v144 = vld [vmem:[%s1 + $0x1e8] sm:$0xf]
  %v145 = vld [vmem:[%s1 + $0x1ec] sm:$0xf]
  %v146 = vld [vmem:[%s1 + $0x1f0] sm:$0xf]
  %v147 = vld [vmem:[%s1 + $0x1f4] sm:$0xf]
  %v148 = vld [vmem:[%s1 + $0x1f8] sm:$0xf]
  %v149 = vld [vmem:[%s1 + $0x1fc] sm:$0xf]
  %v150 = vld [vmem:[%s1 + $0x200] sm:$0xf]
  %v151 = vld [vmem:[%s1 + $0x204] sm:$0xf]
  %v152 = vld [vmem:[%s1 + $0x208] sm:$0xf]
  %v153 = vld [vmem:[%s1 + $0x20c] sm:$0xf]
  %v154 = vld [vmem:[%s1 + $0x210] sm:$0xf]
  %v155 = vld [vmem:[%s1 + $0x214] sm:$0xf]
  %v156 = vld [vmem:[%s1 + $0x218] sm:$0xf]
  %v157 = vld [vmem:[%s1 + $0x21c] sm:$0xf]
  %v158 = vld [vmem:[%s1 + $0x220] sm:$0xf]
  %v159 = vld [vmem:[%s1 + $0x224] sm:$0xf]
  %v160 = vld [vmem:[%s1 + $0x228] sm:$0xf]
  %v161 = vld [vmem:[%s1 + $0x22c] sm:$0xf]
  %v162 = vld [vmem:[%s1 + $0x230] sm:$0xf]
  %v163 = vld [vmem:[%s1 + $0x234] sm:$0xf]
  %v164 = vld [vmem:[%s1 + $0x238] sm:$0xf]
  %v165 = vld [vmem:[%s1 + $0x23c] sm:$0xf]
  %v166 = vld [vmem:[%s2] sm:$0x1]
  %v168 = vperm.slane %v166, 0
  %v175 = vunpack.c.l.b16 %v17
  %v176 = vunpack.c.h.b16 %v17
  %v177 = vunpack.c.l.b16 %v18
  %v178 = vunpack.c.h.b16 %v18
  %v179 = vunpack.c.l.b16 %v19
  %v180 = vunpack.c.h.b16 %v19
  %v181 = vunpack.c.l.b16 %v20
  %v182 = vunpack.c.h.b16 %v20
  %v183 = vunpack.c.l.b16 %v21
  %v184 = vpack.c.b16 %v175, %v175
  %v185 = vpack.c.b16 %v176, %v176
  %v186 = vpack.c.b16 %v177, %v177
  %v187 = vpack.c.b16 %v178, %v178
  %v188 = vpack.c.b16 %v179, %v179
  %v189 = vpack.c.b16 %v180, %v180
  %v190 = vpack.c.b16 %v181, %v181
  %v191 = vpack.c.b16 %v182, %v182
  %v192 = vpack.c.b16 %v183, %v183
  %v346 = vunpack.c.l.b16 %v22
  %v347 = vunpack.c.l.b16 %v23
  %v348 = vunpack.c.l.b16 %v24
  %v349 = vunpack.c.l.b16 %v25
  %v350 = vunpack.c.l.b16 %v26
  %v351 = vunpack.c.l.b16 %v27
  %v352 = vunpack.c.l.b16 %v28
  %v353 = vunpack.c.l.b16 %v29
  %v354 = vunpack.c.l.b16 %v30
  %v355 = vunpack.c.l.b16 %v31
  %v356 = vunpack.c.l.b16 %v32
  %v357 = vunpack.c.l.b16 %v33
  %v358 = vunpack.c.l.b16 %v34
  %v359 = vunpack.c.l.b16 %v35
  %v360 = vunpack.c.l.b16 %v36
  %v361 = vunpack.c.l.b16 %v37
  %v362 = vunpack.c.l.b16 %v38
  %v363 = vunpack.c.l.b16 %v39
  %v364 = vunpack.c.l.b16 %v40
  %v365 = vunpack.c.l.b16 %v41
  %v366 = vunpack.c.l.b16 %v42
  %v367 = vunpack.c.l.b16 %v43
  %v368 = vunpack.c.l.b16 %v44
  %v369 = vunpack.c.l.b16 %v45
  %v370 = vunpack.c.l.b16 %v46
  %v371 = vunpack.c.l.b16 %v47
  %v372 = vunpack.c.l.b16 %v48
  %v373 = vunpack.c.l.b16 %v49
  %v374 = vunpack.c.l.b16 %v50
  %v375 = vunpack.c.l.b16 %v51
  %v376 = vunpack.c.l.b16 %v52
  %v377 = vunpack.c.l.b16 %v53
  %v378 = vunpack.c.l.b16 %v54
  %v379 = vunpack.c.l.b16 %v55
  %v380 = vunpack.c.l.b16 %v56
  %v381 = vunpack.c.l.b16 %v57
  %v382 = vunpack.c.l.b16 %v58
  %v383 = vunpack.c.l.b16 %v59
  %v384 = vunpack.c.l.b16 %v60
  %v385 = vunpack.c.l.b16 %v61
  %v386 = vunpack.c.l.b16 %v62
  %v387 = vunpack.c.l.b16 %v63
  %v388 = vunpack.c.l.b16 %v64
  %v389 = vunpack.c.l.b16 %v65
  %v390 = vunpack.c.l.b16 %v66
  %v391 = vunpack.c.l.b16 %v67
  %v392 = vunpack.c.l.b16 %v68
  %v393 = vunpack.c.l.b16 %v69
  %v394 = vunpack.c.l.b16 %v70
  %v395 = vunpack.c.l.b16 %v71
  %v396 = vunpack.c.l.b16 %v72
  %v397 = vunpack.c.l.b16 %v73
  %v398 = vunpack.c.l.b16 %v74
  %v399 = vunpack.c.l.b16 %v75
  %v400 = vunpack.c.l.b16 %v76
  %v401 = vunpack.c.l.b16 %v77
  %v402 = vunpack.c.l.b16 %v78
  %v403 = vunpack.c.l.b16 %v79
  %v404 = vunpack.c.l.b16 %v80
  %v405 = vunpack.c.l.b16 %v81
  %v406 = vunpack.c.l.b16 %v82
  %v407 = vunpack.c.l.b16 %v83
  %v408 = vunpack.c.l.b16 %v84
  %v409 = vunpack.c.l.b16 %v85
  %v410 = vunpack.c.l.b16 %v86
  %v411 = vunpack.c.l.b16 %v87
  %v412 = vunpack.c.l.b16 %v88
  %v413 = vunpack.c.l.b16 %v89
  %v414 = vunpack.c.l.b16 %v90
  %v415 = vunpack.c.l.b16 %v91
  %v416 = vunpack.c.l.b16 %v92
  %v417 = vunpack.c.l.b16 %v93
  %v418 = vunpack.c.l.b16 %v94
  %v419 = vunpack.c.l.b16 %v95
  %v420 = vunpack.c.l.b16 %v96
  %v421 = vunpack.c.l.b16 %v97
  %v422 = vunpack.c.l.b16 %v98
  %v423 = vunpack.c.l.b16 %v99
  %v424 = vunpack.c.l.b16 %v100
  %v425 = vunpack.c.l.b16 %v101
  %v426 = vunpack.c.l.b16 %v102
  %v427 = vunpack.c.l.b16 %v103
  %v428 = vunpack.c.l.b16 %v104
  %v429 = vunpack.c.l.b16 %v105
  %v430 = vunpack.c.l.b16 %v106
  %v431 = vunpack.c.l.b16 %v107
  %v432 = vunpack.c.l.b16 %v108
  %v433 = vunpack.c.l.b16 %v109
  %v434 = vunpack.c.l.b16 %v110
  %v435 = vunpack.c.l.b16 %v111
  %v436 = vunpack.c.l.b16 %v112
  %v437 = vunpack.c.l.b16 %v113
  %v438 = vunpack.c.l.b16 %v114
  %v439 = vunpack.c.l.b16 %v115
  %v440 = vunpack.c.l.b16 %v116
  %v441 = vunpack.c.l.b16 %v117
  %v442 = vunpack.c.l.b16 %v118
  %v443 = vunpack.c.l.b16 %v119
  %v444 = vunpack.c.l.b16 %v120
  %v445 = vunpack.c.l.b16 %v121
  %v446 = vunpack.c.l.b16 %v122
  %v447 = vunpack.c.l.b16 %v123
  %v448 = vunpack.c.l.b16 %v124
  %v449 = vunpack.c.l.b16 %v125
  %v450 = vunpack.c.l.b16 %v126
  %v451 = vunpack.c.l.b16 %v127
  %v452 = vunpack.c.l.b16 %v128
  %v453 = vunpack.c.l.b16 %v129
  %v454 = vunpack.c.l.b16 %v130
  %v455 = vunpack.c.l.b16 %v131
  %v456 = vunpack.c.l.b16 %v132
  %v457 = vunpack.c.l.b16 %v133
  %v458 = vunpack.c.l.b16 %v134
  %v459 = vunpack.c.l.b16 %v135
  %v460 = vunpack.c.l.b16 %v136
  %v461 = vunpack.c.l.b16 %v137
  %v462 = vunpack.c.l.b16 %v138
  %v463 = vunpack.c.l.b16 %v139
  %v464 = vunpack.c.l.b16 %v140
  %v465 = vunpack.c.l.b16 %v141
  %v466 = vunpack.c.l.b16 %v142
  %v467 = vunpack.c.l.b16 %v143
  %v468 = vunpack.c.l.b16 %v144
  %v469 = vunpack.c.l.b16 %v145
  %v470 = vunpack.c.l.b16 %v146
  %v471 = vunpack.c.l.b16 %v147
  %v472 = vunpack.c.l.b16 %v148
  %v473 = vunpack.c.l.b16 %v149
  %v474 = vunpack.c.l.b16 %v150
  %v475 = vunpack.c.l.b16 %v151
  %v476 = vunpack.c.l.b16 %v152
  %v477 = vunpack.c.l.b16 %v153
  %v478 = vunpack.c.l.b16 %v154
  %v479 = vunpack.c.l.b16 %v155
  %v480 = vunpack.c.l.b16 %v156
  %v481 = vunpack.c.l.b16 %v157
  %v482 = vunpack.c.l.b16 %v158
  %v483 = vunpack.c.l.b16 %v159
  %v484 = vunpack.c.l.b16 %v160
  %v485 = vunpack.c.l.b16 %v161
  %v486 = vunpack.c.l.b16 %v162
  %v487 = vunpack.c.l.b16 %v163
  %v488 = vunpack.c.l.b16 %v164
  %v489 = vunpack.c.l.b16 %v165
  %v490 = vpack.c.b16 %v347, %v346
  %v491 = vpack.c.b16 %v349, %v348
  %v492 = vpack.c.b16 %v351, %v350
  %v493 = vpack.c.b16 %v353, %v352
  %v494 = vpack.c.b16 %v355, %v354
  %v495 = vpack.c.b16 %v357, %v356
  %v496 = vpack.c.b16 %v359, %v358
  %v497 = vpack.c.b16 %v361, %v360
  %v498 = vpack.c.b16 %v363, %v362
  %v499 = vpack.c.b16 %v365, %v364
  %v500 = vpack.c.b16 %v367, %v366
  %v501 = vpack.c.b16 %v369, %v368
  %v502 = vpack.c.b16 %v371, %v370
  %v503 = vpack.c.b16 %v373, %v372
  %v504 = vpack.c.b16 %v375, %v374
  %v505 = vpack.c.b16 %v377, %v376
  %v506 = vpack.c.b16 %v379, %v378
  %v507 = vpack.c.b16 %v381, %v380
  %v508 = vpack.c.b16 %v383, %v382
  %v509 = vpack.c.b16 %v385, %v384
  %v510 = vpack.c.b16 %v387, %v386
  %v511 = vpack.c.b16 %v389, %v388
  %v512 = vpack.c.b16 %v391, %v390
  %v513 = vpack.c.b16 %v393, %v392
  %v514 = vpack.c.b16 %v395, %v394
  %v515 = vpack.c.b16 %v397, %v396
  %v516 = vpack.c.b16 %v399, %v398
  %v517 = vpack.c.b16 %v401, %v400
  %v518 = vpack.c.b16 %v403, %v402
  %v519 = vpack.c.b16 %v405, %v404
  %v520 = vpack.c.b16 %v407, %v406
  %v521 = vpack.c.b16 %v409, %v408
  %v522 = vpack.c.b16 %v411, %v410
  %v523 = vpack.c.b16 %v413, %v412
  %v524 = vpack.c.b16 %v415, %v414
  %v525 = vpack.c.b16 %v417, %v416
  %v526 = vpack.c.b16 %v419, %v418
  %v527 = vpack.c.b16 %v421, %v420
  %v528 = vpack.c.b16 %v423, %v422
  %v529 = vpack.c.b16 %v425, %v424
  %v530 = vpack.c.b16 %v427, %v426
  %v531 = vpack.c.b16 %v429, %v428
  %v532 = vpack.c.b16 %v431, %v430
  %v533 = vpack.c.b16 %v433, %v432
  %v534 = vpack.c.b16 %v435, %v434
  %v535 = vpack.c.b16 %v437, %v436
  %v536 = vpack.c.b16 %v439, %v438
  %v537 = vpack.c.b16 %v441, %v440
  %v538 = vpack.c.b16 %v443, %v442
  %v539 = vpack.c.b16 %v445, %v444
  %v540 = vpack.c.b16 %v447, %v446
  %v541 = vpack.c.b16 %v449, %v448
  %v542 = vpack.c.b16 %v451, %v450
  %v543 = vpack.c.b16 %v453, %v452
  %v544 = vpack.c.b16 %v455, %v454
  %v545 = vpack.c.b16 %v457, %v456
  %v546 = vpack.c.b16 %v459, %v458
  %v547 = vpack.c.b16 %v461, %v460
  %v548 = vpack.c.b16 %v463, %v462
  %v549 = vpack.c.b16 %v465, %v464
  %v550 = vpack.c.b16 %v467, %v466
  %v551 = vpack.c.b16 %v469, %v468
  %v552 = vpack.c.b16 %v471, %v470
  %v553 = vpack.c.b16 %v473, %v472
  %v554 = vpack.c.b16 %v475, %v474
  %v555 = vpack.c.b16 %v477, %v476
  %v556 = vpack.c.b16 %v479, %v478
  %v557 = vpack.c.b16 %v481, %v480
  %v558 = vpack.c.b16 %v483, %v482
  %v559 = vpack.c.b16 %v485, %v484
  %v560 = vpack.c.b16 %v487, %v486
  %v561 = vpack.c.b16 %v489, %v488
  %634 = vmatpush.bf16.msra.mxu0 %v497
  %635 = vmatpush.bf16.msra.mxu0 %v496
  %636 = vmatpush.bf16.msra.mxu0 %v495
  %637 = vmatpush.bf16.msra.mxu0 %v494
  %638 = vmatpush.bf16.msra.mxu0 %v493
  %639 = vmatpush.bf16.msra.mxu0 %v492
  %640 = vmatpush.bf16.msra.mxu0 %v491
  %641 = vmatpush.bf16.msra.mxu0 %v490
  %642 = vmatmul.bf16.gmra.mxu0 %v184
  %v643 = vpop.f32.mrf.mxu0
  %v644 = vadd.f32 %v168, %v643
  %v645 = vpop.f32.mrf.mxu0
  %646 = vdwg.mxu0
  %647 = vmatpush.bf16.msra.mxu0 %v505
  %648 = vmatpush.bf16.msra.mxu0 %v504
  %649 = vmatpush.bf16.msra.mxu0 %v503
  %650 = vmatpush.bf16.msra.mxu0 %v502
  %651 = vmatpush.bf16.msra.mxu0 %v501
  %652 = vmatpush.bf16.msra.mxu0 %v500
  %653 = vmatpush.bf16.msra.mxu0 %v499
  %654 = vmatpush.bf16.msra.mxu0 %v498
  %655 = vmatmul.bf16.gmra.mxu0 %v185
  %v656 = vpop.f32.mrf.mxu0
  %v657 = vadd.f32 %v644, %v656
  %v658 = vpop.f32.mrf.mxu0
  %659 = vdwg.mxu0
  %660 = vmatpush.bf16.msra.mxu0 %v513
  %661 = vmatpush.bf16.msra.mxu0 %v512
  %662 = vmatpush.bf16.msra.mxu0 %v511
  %663 = vmatpush.bf16.msra.mxu0 %v510
  %664 = vmatpush.bf16.msra.mxu0 %v509
  %665 = vmatpush.bf16.msra.mxu0 %v508
  %666 = vmatpush.bf16.msra.mxu0 %v507
  %667 = vmatpush.bf16.msra.mxu0 %v506
  %668 = vmatmul.bf16.gmra.mxu0 %v186
  %v669 = vpop.f32.mrf.mxu0
  %v670 = vadd.f32 %v657, %v669
  %v671 = vpop.f32.mrf.mxu0
  %672 = vdwg.mxu0
  %673 = vmatpush.bf16.msra.mxu0 %v521
  %674 = vmatpush.bf16.msra.mxu0 %v520
  %675 = vmatpush.bf16.msra.mxu0 %v519
  %676 = vmatpush.bf16.msra.mxu0 %v518
  %677 = vmatpush.bf16.msra.mxu0 %v517
  %678 = vmatpush.bf16.msra.mxu0 %v516
  %679 = vmatpush.bf16.msra.mxu0 %v515
  %680 = vmatpush.bf16.msra.mxu0 %v514
  %681 = vmatmul.bf16.gmra.mxu0 %v187
  %v682 = vpop.f32.mrf.mxu0
  %v683 = vadd.f32 %v670, %v682
  %v684 = vpop.f32.mrf.mxu0
  %685 = vdwg.mxu0
  %686 = vmatpush.bf16.msra.mxu0 %v529
  %687 = vmatpush.bf16.msra.mxu0 %v528
  %688 = vmatpush.bf16.msra.mxu0 %v527
  %689 = vmatpush.bf16.msra.mxu0 %v526
  %690 = vmatpush.bf16.msra.mxu0 %v525
  %691 = vmatpush.bf16.msra.mxu0 %v524
  %692 = vmatpush.bf16.msra.mxu0 %v523
  %693 = vmatpush.bf16.msra.mxu0 %v522
  %694 = vmatmul.bf16.gmra.mxu0 %v188
  %v695 = vpop.f32.mrf.mxu0
  %v696 = vadd.f32 %v683, %v695
  %v697 = vpop.f32.mrf.mxu0
  %698 = vdwg.mxu0
  %699 = vmatpush.bf16.msra.mxu0 %v537
  %700 = vmatpush.bf16.msra.mxu0 %v536
  %701 = vmatpush.bf16.msra.mxu0 %v535
  %702 = vmatpush.bf16.msra.mxu0 %v534
  %703 = vmatpush.bf16.msra.mxu0 %v533
  %704 = vmatpush.bf16.msra.mxu0 %v532
  %705 = vmatpush.bf16.msra.mxu0 %v531
  %706 = vmatpush.bf16.msra.mxu0 %v530
  %707 = vmatmul.bf16.gmra.mxu0 %v189
  %v708 = vpop.f32.mrf.mxu0
  %v709 = vadd.f32 %v696, %v708
  %v710 = vpop.f32.mrf.mxu0
  %711 = vdwg.mxu0
  %712 = vmatpush.bf16.msra.mxu0 %v545
  %713 = vmatpush.bf16.msra.mxu0 %v544
  %714 = vmatpush.bf16.msra.mxu0 %v543
  %715 = vmatpush.bf16.msra.mxu0 %v542
  %716 = vmatpush.bf16.msra.mxu0 %v541
  %717 = vmatpush.bf16.msra.mxu0 %v540
  %718 = vmatpush.bf16.msra.mxu0 %v539
  %719 = vmatpush.bf16.msra.mxu0 %v538
  %720 = vmatmul.bf16.gmra.mxu0 %v190
  %v721 = vpop.f32.mrf.mxu0
  %v722 = vadd.f32 %v709, %v721
  %v723 = vpop.f32.mrf.mxu0
  %724 = vdwg.mxu0
  %725 = vmatpush.bf16.msra.mxu0 %v553
  %726 = vmatpush.bf16.msra.mxu0 %v552
  %727 = vmatpush.bf16.msra.mxu0 %v551
  %728 = vmatpush.bf16.msra.mxu0 %v550
  %729 = vmatpush.bf16.msra.mxu0 %v549
  %730 = vmatpush.bf16.msra.mxu0 %v548
  %731 = vmatpush.bf16.msra.mxu0 %v547
  %732 = vmatpush.bf16.msra.mxu0 %v546
  %733 = vmatmul.bf16.gmra.mxu0 %v191
  %v734 = vpop.f32.mrf.mxu0
  %v735 = vadd.f32 %v722, %v734
  %v736 = vpop.f32.mrf.mxu0
  %737 = vdwg.mxu0
  %738 = vmatpush.bf16.msra.mxu0 %v561
  %739 = vmatpush.bf16.msra.mxu0 %v560
  %740 = vmatpush.bf16.msra.mxu0 %v559
  %741 = vmatpush.bf16.msra.mxu0 %v558
  %742 = vmatpush.bf16.msra.mxu0 %v557
  %743 = vmatpush.bf16.msra.mxu0 %v556
  %744 = vmatpush.bf16.msra.mxu0 %v555
  %745 = vmatpush.bf16.msra.mxu0 %v554
  %746 = vmatmul.bf16.gmra.mxu0 %v192
  %v747 = vpop.f32.mrf.mxu0
  %v748 = vadd.f32 %v735, %v747
  %v749 = vpop.f32.mrf.mxu0
  %750 = vdwg.mxu0
  %v751 = vld [vmem:[%s3] sm:$0xf]
  %v752 = vunpack.c.l.bf16 %v751
  %v753 = vadd.f32 %v748, %v752
  %v754 = vmax.f32 %v753, 0.0
  %v755 = vpack.c.bf16 %v754, %v754
  %756 = vst [vmem:[%s4] sm:$0xf] %v755
  // Predicated region
  $region18: #{resnet_forward.18} parent=0 // pred_check
    _
  $region19: #{resnet_forward.18} parent=0 // pred_check_branch
    %758 = sbr.rel (0) target = $region21
  $region20: #{resnet_forward.18} parent=0 // pred_region
    _
  $region21: #{resnet_forward.18} parent=0 // pred_fallthru
    _
  // Predicated region
  $region22: #{resnet_forward.18} parent=0 // pred_check
    _
  $region23: #{resnet_forward.18} parent=0 // pred_check_branch
    %760 = sbr.rel (0) target = $region25
  $region24: #{resnet_forward.18} parent=0 // pred_region
    _
  $region25: #{resnet_forward.18} parent=0 // pred_fallthru
    _

</llo_original>
